<compile_context>
chip_gen: v6e
topology: v6e:2x2x1
jax: 0.10.0
libtpu: 0.0.40
codegen_flags: <defaults>
</compile_context>

<pallas_src>
import functools
import math

import jax
import jax.numpy as jnp
import numpy as np
from jax.experimental import pallas as pl
from jax.experimental.pallas import tpu as pltpu

# ---- model configuration (scaled-down but structurally identical) -----------
DIM = 128                 # PyTorch default 768 (must be divisible by 16 heads)
HIDDEN = 256              # PyTorch Encoder default 1536
HEADS = 16                # fixed inside MultiHeadAttention
DIM_HEAD = DIM // HEADS   # 768 // 16 -> here 8
SCALE = DIM_HEAD ** -0.5
EPS = 1e-12               # nn.LayerNorm(dim, eps=1e-12) in the Encoder
ROW_TILE = 8              # (8,128)-aligned row tile for the qkv projection grid


# =============================== kernels =====================================

def _qkv_kernel(x_ref, w_ref, o_ref):
    # (tile, D) @ (D, 3D) -> (tile, 3D); to_qkv has bias=False.
    # bf16 MXU operands, f32 accumulation; output stays lane-dense (3D = 384 lanes).
    x = x_ref[...].astype(jnp.bfloat16)
    o_ref[...] = jnp.dot(x, w_ref[...], preferred_element_type=jnp.float32)


def _attention_kernel(q_ref, k_ref, v_ref, o_ref, *, scale):
    # One (reshape-)batch element per grid step; all 16 heads batched in one einsum
    # so the per-step overhead is amortized 16x vs. the old per-(b,h) grid.
    q = q_ref[...].astype(jnp.bfloat16)            # (heads, N, dim_head)
    k = k_ref[...].astype(jnp.bfloat16)
    v = v_ref[...].astype(jnp.bfloat16)
    s = jnp.einsum("hnd,hmd->hnm", q, k,
                   preferred_element_type=jnp.float32) * scale
    m = jnp.max(s, axis=-1, keepdims=True)
    p = jnp.exp(s - m)                             # f32 softmax math (EUP exp)
    inv = pl.reciprocal(jnp.sum(p, axis=-1, keepdims=True), approx=True)
    w = p * inv
    o_ref[...] = jnp.einsum("hnm,hmd->hnd", w.astype(jnp.bfloat16), v,
                            preferred_element_type=jnp.float32)


def _post_attention_kernel(ctx_ref, x_ref, wo_ref, bo_ref, g1_ref, be1_ref,
                           w1_ref, b1_ref, w2_ref, b2_ref, g2_ref, be2_ref,
                           o_ref):
    # Fused: W_o projection + dropout(identity) + residual + LayerNorm1
    #        + Linear -> exact GELU -> Linear + dropout(identity) + residual + LayerNorm2
    # TODO(synk): nn.Dropout layers are treated as identity (inference mode).
    ctx = ctx_ref[...]                                       # (N, D) f32, lane-dense
    x = x_ref[...]                                           # (N, D) f32
    proj = jnp.dot(ctx.astype(jnp.bfloat16), wo_ref[...],
                   preferred_element_type=jnp.float32) + bo_ref[...]
    y = x + proj
    mu = jnp.mean(y, axis=-1, keepdims=True)
    var = jnp.mean((y - mu) ** 2, axis=-1, keepdims=True)    # biased var (PyTorch LN)
    y = (y - mu) * jax.lax.rsqrt(var + EPS) * g1_ref[...] + be1_ref[...]

    h = jnp.dot(y.astype(jnp.bfloat16), w1_ref[...],
                preferred_element_type=jnp.float32) + b1_ref[...]
    g = 0.5 * h * (1.0 + jax.lax.erf(h * (2.0 ** -0.5)))     # nn.GELU() exact (erf), f32
    m2 = jnp.dot(g.astype(jnp.bfloat16), w2_ref[...],
                 preferred_element_type=jnp.float32) + b2_ref[...]
    z = y + m2
    mu2 = jnp.mean(z, axis=-1, keepdims=True)
    var2 = jnp.mean((z - mu2) ** 2, axis=-1, keepdims=True)
    o_ref[...] = (z - mu2) * jax.lax.rsqrt(var2 + EPS) * g2_ref[...] + be2_ref[...]


# ============================ pallas_call wrappers ============================

def qkv_projection(x2d, wqkv_t):
    # NOTE: at the real config (DIM=768, large B*N) keep this M-tiled (tile 256-512),
    # weights resident via the constant index_map, and set vmem_limit_bytes explicitly.
    M, K = x2d.shape
    N3 = wqkv_t.shape[1]
    return pl.pallas_call(
        _qkv_kernel,
        out_shape=jax.ShapeDtypeStruct((M, N3), jnp.float32),
        grid=(M // ROW_TILE,),
        in_specs=[pl.BlockSpec((ROW_TILE, K), lambda i: (i, 0)),
                  pl.BlockSpec((K, N3), lambda i: (0, 0))],
        out_specs=pl.BlockSpec((ROW_TILE, N3), lambda i: (i, 0)),
        compiler_params=pltpu.CompilerParams(dimension_semantics=("parallel",)),
    )(x2d, wqkv_t)


def attention(q, k, v):
    # q, k, v: (B, heads, N, dim_head); grid over B only (2 parallel steps).
    B, H, N, dh = q.shape
    spec = pl.BlockSpec((None, H, N, dh), lambda b: (b, 0, 0, 0))
    return pl.pallas_call(
        functools.partial(_attention_kernel, scale=SCALE),
        out_shape=jax.ShapeDtypeStruct((B, H, N, dh), jnp.float32),
        grid=(B,),
        in_specs=[spec, spec, spec],
        out_specs=spec,
        compiler_params=pltpu.CompilerParams(dimension_semantics=("parallel",)),
    )(q, k, v)


def post_attention(concat, x, p):
    # Fused W_o + residual + LN1 + MLP + residual + LN2.  Lane-dense (N, 128) blocks.
    B, N, D = x.shape
    tok = pl.BlockSpec((None, N, D), lambda b: (b, 0, 0))
    full = lambda a: pl.BlockSpec(a.shape, lambda b: (0, 0))
    return pl.pallas_call(
        _post_attention_kernel,
        out_shape=jax.ShapeDtypeStruct((B, N, D), jnp.float32),
        grid=(B,),
        in_specs=[tok, tok,
                  full(p["wo_t"]), full(p["bo"]), full(p["g1"]), full(p["be1"]),
                  full(p["w1_t"]), full(p["b1"]), full(p["w2_t"]), full(p["b2"]),
                  full(p["g2"]), full(p["be2"])],
        out_specs=tok,
        compiler_params=pltpu.CompilerParams(dimension_semantics=("parallel",)),
    )(concat, x, p["wo_t"], p["bo"], p["g1"], p["be1"],
      p["w1_t"], p["b1"], p["w2_t"], p["b2"], p["g2"], p["be2"])


# ================================ forward =====================================

@jax.jit
def encoder_forward(x, prep):
    B, N, D = x.shape
    h, dh = HEADS, DIM_HEAD

    # --- MultiHeadAttention ---
    qkv = qkv_projection(x.reshape(B * N, D), prep["wqkv_t"])   # (B*N, 3*D)
    # Exact PyTorch `qkv.view(3, B, h, -1, dim_head)` — a flat reshape, done as a
    # zero-cost XLA reshape between kernels (in-kernel it would be a lane relayout).
    qkv = qkv.reshape(3, B, h, N, dh)
    ctx = attention(qkv[0], qkv[1], qkv[2])                     # (B, h, N, dh)
    # Exact PyTorch `context.view(B, -1, dim_head * h)` — flat reshape in XLA.
    concat = ctx.reshape(B, N, D)

    # --- W_o + dropout + residual + LN1 + MLP + residual + LN2 (one fused kernel) ---
    return post_attention(concat, x, prep)


# ============================ pure-JAX reference ==============================

def _ln_ref(x, gamma, beta):
    mu = jnp.mean(x, axis=-1, keepdims=True)
    var = jnp.mean((x - mu) ** 2, axis=-1, keepdims=True)
    return (x - mu) * jax.lax.rsqrt(var + EPS) * gamma + beta


def encoder_reference(x, p):
    B, N, D = x.shape
    h, dh = HEADS, DIM_HEAD
    qkv = (x.reshape(B * N, D) @ p["wqkv"].T).reshape(3, B, h, N, dh)
    q, k, v = qkv[0], qkv[1], qkv[2]
    attn = jnp.einsum("bhnd,bhmd->bhnm", q, k) * SCALE
    w = jax.nn.softmax(attn, axis=-1)
    ctx = jnp.einsum("bhnm,bhmd->bhnd", w, v).reshape(B, N, D)
    y = _ln_ref(x + (ctx @ p["wo"].T + p["bo"]), p["g1"], p["be1"])
    hid = y @ p["w1"].T + p["b1"]
    g = 0.5 * hid * (1.0 + jax.lax.erf(hid * (2.0 ** -0.5)))
    z = y + (g @ p["w2"].T + p["b2"])
    return _ln_ref(z, p["g2"], p["be2"])


# ============================ parameter init ==================================

def init_params(key):
    ks = jax.random.split(key, 8)

    def uniform(k, shape, fan_in):
        bound = 1.0 / math.sqrt(fan_in)
        return jax.random.uniform(k, shape, jnp.float32, -bound, bound)

    return {
        # PyTorch nn.Linear weights are (out_features, in_features)
        "wqkv": uniform(ks[0], (3 * DIM, DIM), DIM),   # to_qkv, bias=False
        "wo":   uniform(ks[1], (DIM, DIM), DIM),
        "bo":   uniform(ks[2], (1, DIM), DIM),
        "w1":   uniform(ks[3], (HIDDEN, DIM), DIM),
        "b1":   uniform(ks[4], (1, HIDDEN), DIM),
        "w2":   uniform(ks[5], (DIM, HIDDEN), HIDDEN),
        "b2":   uniform(ks[6], (1, DIM), HIDDEN),
        # LayerNorm affine params (PyTorch default init: ones / zeros)
        "g1":  jnp.ones((1, DIM), jnp.float32),
        "be1": jnp.zeros((1, DIM), jnp.float32),
        "g2":  jnp.ones((1, DIM), jnp.float32),
        "be2": jnp.zeros((1, DIM), jnp.float32),
    }


def prepare_params(p):
    """One-time prep: transpose Linear weights to (in, out) and cast MXU operands to bf16.

    Done once outside the forward so no per-call XLA transposes / casts hit HBM.
    """
    return {
        "wqkv_t": p["wqkv"].T.astype(jnp.bfloat16),
        "wo_t":   p["wo"].T.astype(jnp.bfloat16),
        "w1_t":   p["w1"].T.astype(jnp.bfloat16),
        "w2_t":   p["w2"].T.astype(jnp.bfloat16),
        "bo": p["bo"], "b1": p["b1"], "b2": p["b2"],
        "g1": p["g1"], "be1": p["be1"], "g2": p["g2"], "be2": p["be2"],
    }


if __name__ == "__main__":
    key = jax.random.PRNGKey(0)
    pkey, xkey = jax.random.split(key)
    params = init_params(pkey)
    prep = prepare_params(params)            # one-time weight transpose + bf16 cast

    B, N = 2, 8
    x = jax.random.normal(xkey, (B, N, DIM), jnp.float32)

    out = jax.block_until_ready(encoder_forward(x, prep))
    ref = jax.block_until_ready(encoder_reference(x, params))
    # Slightly looser tolerance than pure-f32 because MXU operands are bf16
    # (accumulation stays f32); elementwise / LN / softmax math is all f32.
    np.testing.assert_allclose(np.asarray(out), np.asarray(ref), atol=5e-2, rtol=5e-2)

    print("KERNEL_OK")
</pallas_src>

<mosaic_0001>
module attributes {stable_mosaic.version = 11 : i64} {
  func.func @_qkv_kernel(%arg0: i32, %arg1: memref<8x128xf32, #tpu.memory_space<vmem>>, %arg2: memref<128x384xbf16, #tpu.memory_space<vmem>>, %arg3: memref<8x384xf32, #tpu.memory_space<vmem>>) attributes {dimension_semantics = [#tpu.dimension_semantics<parallel>], iteration_bounds = array<i64: 2>, scalar_prefetch = 0 : i64, scratch_operands = 0 : i64, tpu.core_type = #tpu.core_type<tc>, window_params = [{transform_indices = @transform_0, window_bounds = array<i64: 8, 128>}, {pipeline_mode = #tpu.pipeline_mode<synchronous>, transform_indices = @transform_1, window_bounds = array<i64: 128, 384>}, {transform_indices = @transform_2, window_bounds = array<i64: 8, 384>}]} {
    %c0 = arith.constant 0 : index
    %c0_0 = arith.constant 0 : index
    %0 = vector.load %arg1[%c0, %c0_0] : memref<8x128xf32, #tpu.memory_space<vmem>>, vector<8x128xf32>
    %1 = arith.truncf %0 : vector<8x128xf32> to vector<8x128xbf16>
    %c0_1 = arith.constant 0 : index
    %c0_2 = arith.constant 0 : index
    %2 = vector.load %arg2[%c0_1, %c0_2] : memref<128x384xbf16, #tpu.memory_space<vmem>>, vector<128x384xbf16>
    %cst = arith.constant dense<0.000000e+00> : vector<8x384xf32>
    %3 = tpu.matmul %1, %2, %cst {dimension_numbers = #tpu.dot_dimension_numbers<[1], [0], [0], [1], [0, 0, 1, 1], [], []>} : vector<8x128xbf16>, vector<128x384xbf16>, vector<8x384xf32> -> vector<8x384xf32>
    %c0_3 = arith.constant 0 : index
    %c0_4 = arith.constant 0 : index
    %4 = vector.load %arg3[%c0_3, %c0_4] : memref<8x384xf32, #tpu.memory_space<vmem>>, vector<8x384xf32>
    tpu.vector_store %arg3[%c0_3, %c0_4], %3 {strides = array<i32>} : memref<8x384xf32, #tpu.memory_space<vmem>>, vector<8x384xf32>,
    return
  }
  func.func @transform_0(%arg0: i32) -> (i32, i32) {
    %c0_i32 = arith.constant 0 : i32
    %c0_i32_0 = arith.constant 0 : i32
    return %arg0, %c0_i32 : i32, i32
  }
  func.func @transform_1(%arg0: i32) -> (i32, i32) {
    %c0_i32 = arith.constant 0 : i32
    %c0_i32_0 = arith.constant 0 : i32
    %c0_i32_1 = arith.constant 0 : i32
    return %c0_i32, %c0_i32_0 : i32, i32
  }
  func.func @transform_2(%arg0: i32) -> (i32, i32) {
    %c0_i32 = arith.constant 0 : i32
    %c0_i32_0 = arith.constant 0 : i32
    return %arg0, %c0_i32 : i32, i32
  }
}

module attributes {stable_mosaic.version = 11 : i64} {
  func.func @_attention_kernel(%arg0: i32, %arg1: memref<1x16x8x8xf32, #tpu.memory_space<vmem>>, %arg2: memref<1x16x8x8xf32, #tpu.memory_space<vmem>>, %arg3: memref<1x16x8x8xf32, #tpu.memory_space<vmem>>, %arg4: memref<1x16x8x8xf32, #tpu.memory_space<vmem>>) attributes {dimension_semantics = [#tpu.dimension_semantics<parallel>], iteration_bounds = array<i64: 2>, scalar_prefetch = 0 : i64, scratch_operands = 0 : i64, tpu.core_type = #tpu.core_type<tc>, window_params = [{transform_indices = @transform_0, window_bounds = array<i64: 1, 16, 8, 8>}, {transform_indices = @transform_1, window_bounds = array<i64: 1, 16, 8, 8>}, {transform_indices = @transform_2, window_bounds = array<i64: 1, 16, 8, 8>}, {transform_indices = @transform_3, window_bounds = array<i64: 1, 16, 8, 8>}]} {
    %c0 = arith.constant 0 : index
    %c0_0 = arith.constant 0 : index
    %c0_1 = arith.constant 0 : index
    %c0_2 = arith.constant 0 : index
    %0 = vector.load %arg1[%c0, %c0_0, %c0_1, %c0_2] : memref<1x16x8x8xf32, #tpu.memory_space<vmem>>, vector<1x16x8x8xf32>
    %1 = vector.shape_cast %0 : vector<1x16x8x8xf32> to vector<16x8x8xf32>
    %2 = arith.truncf %1 : vector<16x8x8xf32> to vector<16x8x8xbf16>
    %c0_3 = arith.constant 0 : index
    %c0_4 = arith.constant 0 : index
    %c0_5 = arith.constant 0 : index
    %c0_6 = arith.constant 0 : index
    %3 = vector.load %arg2[%c0_3, %c0_4, %c0_5, %c0_6] : memref<1x16x8x8xf32, #tpu.memory_space<vmem>>, vector<1x16x8x8xf32>
    %4 = vector.shape_cast %3 : vector<1x16x8x8xf32> to vector<16x8x8xf32>
    %5 = arith.truncf %4 : vector<16x8x8xf32> to vector<16x8x8xbf16>
    %c0_7 = arith.constant 0 : index
    %c0_8 = arith.constant 0 : index
    %c0_9 = arith.constant 0 : index
    %c0_10 = arith.constant 0 : index
    %6 = vector.load %arg3[%c0_7, %c0_8, %c0_9, %c0_10] : memref<1x16x8x8xf32, #tpu.memory_space<vmem>>, vector<1x16x8x8xf32>
    %7 = vector.shape_cast %6 : vector<1x16x8x8xf32> to vector<16x8x8xf32>
    %8 = arith.truncf %7 : vector<16x8x8xf32> to vector<16x8x8xbf16>
    "tpu.trace_start"() <{level = 10 : i32, message = "hnd,hmd->hnm"}> : () -> ()
    %cst = arith.constant dense<0.000000e+00> : vector<16x8x8xf32>
    %9 = tpu.matmul %2, %5, %cst {dimension_numbers = #tpu.dot_dimension_numbers<[2], [2], [1], [1], [0, 0, 0, 1, 1, 1], [0], [0]>} : vector<16x8x8xbf16>, vector<16x8x8xbf16>, vector<16x8x8xf32> -> vector<16x8x8xf32>
    "tpu.trace_stop"() : () -> ()
    %cst_11 = arith.constant 0.353553385 : f32
    %10 = vector.broadcast %cst_11 : f32 to vector<16x8x8xf32>
    %11 = arith.mulf %9, %10 : vector<16x8x8xf32>
    %cst_12 = arith.constant dense<0xFF800000> : vector<16x8xf32>
    %12 = vector.multi_reduction <maximumf>, %11, %cst_12 [2] : vector<16x8x8xf32> to vector<16x8xf32>
    %13 = vector.shape_cast %12 : vector<16x8xf32> to vector<16x8x1xf32>
    %14 = vector.broadcast %13 : vector<16x8x1xf32> to vector<16x8x8xf32>
    %15 = arith.subf %11, %14 : vector<16x8x8xf32>
    %16 = math.exp %15 : vector<16x8x8xf32>
    %cst_13 = arith.constant dense<0.000000e+00> : vector<16x8xf32>
    %17 = vector.multi_reduction <add>, %16, %cst_13 [2] : vector<16x8x8xf32> to vector<16x8xf32>
    %18 = vector.shape_cast %17 : vector<16x8xf32> to vector<16x8x1xf32>
    %19 = tpu.reciprocal %18 {approx = true} : vector<16x8x1xf32> -> vector<16x8x1xf32>
    %20 = vector.broadcast %19 : vector<16x8x1xf32> to vector<16x8x8xf32>
    %21 = arith.mulf %16, %20 : vector<16x8x8xf32>
    %22 = arith.truncf %21 : vector<16x8x8xf32> to vector<16x8x8xbf16>
    "tpu.trace_start"() <{level = 10 : i32, message = "hnm,hmd->hnd"}> : () -> ()
    %cst_14 = arith.constant dense<0.000000e+00> : vector<16x8x8xf32>
    %23 = tpu.matmul %22, %8, %cst_14 {dimension_numbers = #tpu.dot_dimension_numbers<[2], [1], [1], [2], [0, 0, 0, 1, 1, 2], [0], [0]>} : vector<16x8x8xbf16>, vector<16x8x8xbf16>, vector<16x8x8xf32> -> vector<16x8x8xf32>
    "tpu.trace_stop"() : () -> ()
    %c0_15 = arith.constant 0 : index
    %c0_16 = arith.constant 0 : index
    %c0_17 = arith.constant 0 : index
    %c0_18 = arith.constant 0 : index
    %24 = vector.load %arg4[%c0_15, %c0_16, %c0_17, %c0_18] : memref<1x16x8x8xf32, #tpu.memory_space<vmem>>, vector<1x16x8x8xf32>
    %25 = vector.shape_cast %24 : vector<1x16x8x8xf32> to vector<16x8x8xf32>
    %26 = vector.shape_cast %23 : vector<16x8x8xf32> to vector<1x16x8x8xf32>
    tpu.vector_store %arg4[%c0_15, %c0_16, %c0_17, %c0_18], %26 {strides = array<i32>} : memref<1x16x8x8xf32, #tpu.memory_space<vmem>>, vector<1x16x8x8xf32>,
    return
  }
  func.func @transform_0(%arg0: i32) -> (i32, i32, i32, i32) {
    %c0_i32 = arith.constant 0 : i32
    %c0_i32_0 = arith.constant 0 : i32
    %c0_i32_1 = arith.constant 0 : i32
    %c0_i32_2 = arith.constant 0 : i32
    return %arg0, %c0_i32, %c0_i32_0, %c0_i32_1 : i32, i32, i32, i32
  }
  func.func @transform_1(%arg0: i32) -> (i32, i32, i32, i32) {
    %c0_i32 = arith.constant 0 : i32
    %c0_i32_0 = arith.constant 0 : i32
    %c0_i32_1 = arith.constant 0 : i32
    %c0_i32_2 = arith.constant 0 : i32
    return %arg0, %c0_i32, %c0_i32_0, %c0_i32_1 : i32, i32, i32, i32
  }
  func.func @transform_2(%arg0: i32) -> (i32, i32, i32, i32) {
    %c0_i32 = arith.constant 0 : i32
    %c0_i32_0 = arith.constant 0 : i32
    %c0_i32_1 = arith.constant 0 : i32
    %c0_i32_2 = arith.constant 0 : i32
    return %arg0, %c0_i32, %c0_i32_0, %c0_i32_1 : i32, i32, i32, i32
  }
  func.func @transform_3(%arg0: i32) -> (i32, i32, i32, i32) {
    %c0_i32 = arith.constant 0 : i32
    %c0_i32_0 = arith.constant 0 : i32
    %c0_i32_1 = arith.constant 0 : i32
    %c0_i32_2 = arith.constant 0 : i32
    return %arg0, %c0_i32, %c0_i32_0, %c0_i32_1 : i32, i32, i32, i32
  }
}

module attributes {stable_mosaic.version = 11 : i64} {
  func.func @_post_attention_kernel(%arg0: i32, %arg1: memref<1x8x128xf32, #tpu.memory_space<vmem>>, %arg2: memref<1x8x128xf32, #tpu.memory_space<vmem>>, %arg3: memref<128x128xbf16, #tpu.memory_space<vmem>>, %arg4: memref<1x128xf32, #tpu.memory_space<vmem>>, %arg5: memref<1x128xf32, #tpu.memory_space<vmem>>, %arg6: memref<1x128xf32, #tpu.memory_space<vmem>>, %arg7: memref<128x256xbf16, #tpu.memory_space<vmem>>, %arg8: memref<1x256xf32, #tpu.memory_space<vmem>>, %arg9: memref<256x128xbf16, #tpu.memory_space<vmem>>, %arg10: memref<1x128xf32, #tpu.memory_space<vmem>>, %arg11: memref<1x128xf32, #tpu.memory_space<vmem>>, %arg12: memref<1x128xf32, #tpu.memory_space<vmem>>, %arg13: memref<1x8x128xf32, #tpu.memory_space<vmem>>) attributes {dimension_semantics = [#tpu.dimension_semantics<parallel>], iteration_bounds = array<i64: 2>, scalar_prefetch = 0 : i64, scratch_operands = 0 : i64, tpu.core_type = #tpu.core_type<tc>, window_params = [{transform_indices = @transform_0, window_bounds = array<i64: 1, 8, 128>}, {transform_indices = @transform_1, window_bounds = array<i64: 1, 8, 128>}, {pipeline_mode = #tpu.pipeline_mode<synchronous>, transform_indices = @transform_2, window_bounds = array<i64: 128, 128>}, {pipeline_mode = #tpu.pipeline_mode<synchronous>, transform_indices = @transform_3, window_bounds = array<i64: 1, 128>}, {pipeline_mode = #tpu.pipeline_mode<synchronous>, transform_indices = @transform_4, window_bounds = array<i64: 1, 128>}, {pipeline_mode = #tpu.pipeline_mode<synchronous>, transform_indices = @transform_5, window_bounds = array<i64: 1, 128>}, {pipeline_mode = #tpu.pipeline_mode<synchronous>, transform_indices = @transform_6, window_bounds = array<i64: 128, 256>}, {pipeline_mode = #tpu.pipeline_mode<synchronous>, transform_indices = @transform_7, window_bounds = array<i64: 1, 256>}, {pipeline_mode = #tpu.pipeline_mode<synchronous>, transform_indices = @transform_8, window_bounds = array<i64: 256, 128>}, {pipeline_mode = #tpu.pipeline_mode<synchronous>, transform_indices = @transform_9, window_bounds = array<i64: 1, 128>}, {pipeline_mode = #tpu.pipeline_mode<synchronous>, transform_indices = @transform_10, window_bounds = array<i64: 1, 128>}, {pipeline_mode = #tpu.pipeline_mode<synchronous>, transform_indices = @transform_11, window_bounds = array<i64: 1, 128>}, {transform_indices = @transform_12, window_bounds = array<i64: 1, 8, 128>}]} {
    %c0 = arith.constant 0 : index
    %c0_0 = arith.constant 0 : index
    %c0_1 = arith.constant 0 : index
    %0 = vector.load %arg1[%c0, %c0_0, %c0_1] : memref<1x8x128xf32, #tpu.memory_space<vmem>>, vector<1x8x128xf32>
    %1 = vector.shape_cast %0 : vector<1x8x128xf32> to vector<8x128xf32>
    %c0_2 = arith.constant 0 : index
    %c0_3 = arith.constant 0 : index
    %c0_4 = arith.constant 0 : index
    %2 = vector.load %arg2[%c0_2, %c0_3, %c0_4] : memref<1x8x128xf32, #tpu.memory_space<vmem>>, vector<1x8x128xf32>
    %3 = vector.shape_cast %2 : vector<1x8x128xf32> to vector<8x128xf32>
    %4 = arith.truncf %1 : vector<8x128xf32> to vector<8x128xbf16>
    %c0_5 = arith.constant 0 : index
    %c0_6 = arith.constant 0 : index
    %5 = vector.load %arg3[%c0_5, %c0_6] : memref<128x128xbf16, #tpu.memory_space<vmem>>, vector<128x128xbf16>
    %cst = arith.constant dense<0.000000e+00> : vector<8x128xf32>
    %6 = tpu.matmul %4, %5, %cst {dimension_numbers = #tpu.dot_dimension_numbers<[1], [0], [0], [1], [0, 0, 1, 1], [], []>} : vector<8x128xbf16>, vector<128x128xbf16>, vector<8x128xf32> -> vector<8x128xf32>
    %c0_7 = arith.constant 0 : index
    %c0_8 = arith.constant 0 : index
    %7 = vector.load %arg4[%c0_7, %c0_8] : memref<1x128xf32, #tpu.memory_space<vmem>>, vector<1x128xf32>
    %8 = vector.broadcast %7 : vector<1x128xf32> to vector<8x128xf32>
    %9 = arith.addf %6, %8 : vector<8x128xf32>
    %10 = arith.addf %3, %9 : vector<8x128xf32>
    %cst_9 = arith.constant dense<0.000000e+00> : vector<8xf32>
    %11 = vector.multi_reduction <add>, %10, %cst_9 [1] : vector<8x128xf32> to vector<8xf32>
    %12 = vector.shape_cast %11 : vector<8xf32> to vector<8x1xf32>
    %cst_10 = arith.constant 1.280000e+02 : f32
    %13 = vector.broadcast %cst_10 : f32 to vector<8x1xf32>
    %14 = arith.divf %12, %13 : vector<8x1xf32>
    %15 = vector.broadcast %14 : vector<8x1xf32> to vector<8x128xf32>
    %16 = arith.subf %10, %15 : vector<8x128xf32>
    %17 = arith.mulf %16, %16 : vector<8x128xf32>
    %cst_11 = arith.constant dense<0.000000e+00> : vector<8xf32>
    %18 = vector.multi_reduction <add>, %17, %cst_11 [1] : vector<8x128xf32> to vector<8xf32>
    %19 = vector.shape_cast %18 : vector<8xf32> to vector<8x1xf32>
    %cst_12 = arith.constant 1.280000e+02 : f32
    %20 = vector.broadcast %cst_12 : f32 to vector<8x1xf32>
    %21 = arith.divf %19, %20 : vector<8x1xf32>
    %22 = vector.broadcast %14 : vector<8x1xf32> to vector<8x128xf32>
    %23 = arith.subf %10, %22 : vector<8x128xf32>
    %cst_13 = arith.constant 9.99999996E-13 : f32
    %24 = vector.broadcast %cst_13 : f32 to vector<8x1xf32>
    %25 = arith.addf %21, %24 : vector<8x1xf32>
    %26 = math.rsqrt %25 : vector<8x1xf32>
    %27 = vector.broadcast %26 : vector<8x1xf32> to vector<8x128xf32>
    %28 = arith.mulf %23, %27 : vector<8x128xf32>
    %c0_14 = arith.constant 0 : index
    %c0_15 = arith.constant 0 : index
    %29 = vector.load %arg5[%c0_14, %c0_15] : memref<1x128xf32, #tpu.memory_space<vmem>>, vector<1x128xf32>
    %30 = vector.broadcast %29 : vector<1x128xf32> to vector<8x128xf32>
    %31 = arith.mulf %28, %30 : vector<8x128xf32>
    %c0_16 = arith.constant 0 : index
    %c0_17 = arith.constant 0 : index
    %32 = vector.load %arg6[%c0_16, %c0_17] : memref<1x128xf32, #tpu.memory_space<vmem>>, vector<1x128xf32>
    %33 = vector.broadcast %32 : vector<1x128xf32> to vector<8x128xf32>
    %34 = arith.addf %31, %33 : vector<8x128xf32>
    %35 = arith.truncf %34 : vector<8x128xf32> to vector<8x128xbf16>
    %c0_18 = arith.constant 0 : index
    %c0_19 = arith.constant 0 : index
    %36 = vector.load %arg7[%c0_18, %c0_19] : memref<128x256xbf16, #tpu.memory_space<vmem>>, vector<128x256xbf16>
    %cst_20 = arith.constant dense<0.000000e+00> : vector<8x256xf32>
    %37 = tpu.matmul %35, %36, %cst_20 {dimension_numbers = #tpu.dot_dimension_numbers<[1], [0], [0], [1], [0, 0, 1, 1], [], []>} : vector<8x128xbf16>, vector<128x256xbf16>, vector<8x256xf32> -> vector<8x256xf32>
    %c0_21 = arith.constant 0 : index
    %c0_22 = arith.constant 0 : index
    %38 = vector.load %arg8[%c0_21, %c0_22] : memref<1x256xf32, #tpu.memory_space<vmem>>, vector<1x256xf32>
    %39 = vector.broadcast %38 : vector<1x256xf32> to vector<8x256xf32>
    %40 = arith.addf %37, %39 : vector<8x256xf32>
    %cst_23 = arith.constant 5.000000e-01 : f32
    %41 = vector.broadcast %cst_23 : f32 to vector<8x256xf32>
    %42 = arith.mulf %41, %40 : vector<8x256xf32>
    %cst_24 = arith.constant 0.707106769 : f32
    %43 = vector.broadcast %cst_24 : f32 to vector<8x256xf32>
    %44 = arith.mulf %40, %43 : vector<8x256xf32>
    %45 = math.erf %44 : vector<8x256xf32>
    %cst_25 = arith.constant 1.000000e+00 : f32
    %46 = vector.broadcast %cst_25 : f32 to vector<8x256xf32>
    %47 = arith.addf %46, %45 : vector<8x256xf32>
    %48 = arith.mulf %42, %47 : vector<8x256xf32>
    %49 = arith.truncf %48 : vector<8x256xf32> to vector<8x256xbf16>
    %c0_26 = arith.constant 0 : index
    %c0_27 = arith.constant 0 : index
    %50 = vector.load %arg9[%c0_26, %c0_27] : memref<256x128xbf16, #tpu.memory_space<vmem>>, vector<256x128xbf16>
    %cst_28 = arith.constant dense<0.000000e+00> : vector<8x128xf32>
    %51 = tpu.matmul %49, %50, %cst_28 {dimension_numbers = #tpu.dot_dimension_numbers<[1], [0], [0], [1], [0, 0, 1, 1], [], []>} : vector<8x256xbf16>, vector<256x128xbf16>, vector<8x128xf32> -> vector<8x128xf32>
    %c0_29 = arith.constant 0 : index
    %c0_30 = arith.constant 0 : index
    %52 = vector.load %arg10[%c0_29, %c0_30] : memref<1x128xf32, #tpu.memory_space<vmem>>, vector<1x128xf32>
    %53 = vector.broadcast %52 : vector<1x128xf32> to vector<8x128xf32>
    %54 = arith.addf %51, %53 : vector<8x128xf32>
    %55 = arith.addf %34, %54 : vector<8x128xf32>
    %cst_31 = arith.constant dense<0.000000e+00> : vector<8xf32>
    %56 = vector.multi_reduction <add>, %55, %cst_31 [1] : vector<8x128xf32> to vector<8xf32>
    %57 = vector.shape_cast %56 : vector<8xf32> to vector<8x1xf32>
    %cst_32 = arith.constant 1.280000e+02 : f32
    %58 = vector.broadcast %cst_32 : f32 to vector<8x1xf32>
    %59 = arith.divf %57, %58 : vector<8x1xf32>
    %60 = vector.broadcast %59 : vector<8x1xf32> to vector<8x128xf32>
    %61 = arith.subf %55, %60 : vector<8x128xf32>
    %62 = arith.mulf %61, %61 : vector<8x128xf32>
    %cst_33 = arith.constant dense<0.000000e+00> : vector<8xf32>
    %63 = vector.multi_reduction <add>, %62, %cst_33 [1] : vector<8x128xf32> to vector<8xf32>
    %64 = vector.shape_cast %63 : vector<8xf32> to vector<8x1xf32>
    %cst_34 = arith.constant 1.280000e+02 : f32
    %65 = vector.broadcast %cst_34 : f32 to vector<8x1xf32>
    %66 = arith.divf %64, %65 : vector<8x1xf32>
    %67 = vector.broadcast %59 : vector<8x1xf32> to vector<8x128xf32>
    %68 = arith.subf %55, %67 : vector<8x128xf32>
    %cst_35 = arith.constant 9.99999996E-13 : f32
    %69 = vector.broadcast %cst_35 : f32 to vector<8x1xf32>
    %70 = arith.addf %66, %69 : vector<8x1xf32>
    %71 = math.rsqrt %70 : vector<8x1xf32>
    %72 = vector.broadcast %71 : vector<8x1xf32> to vector<8x128xf32>
    %73 = arith.mulf %68, %72 : vector<8x128xf32>
    %c0_36 = arith.constant 0 : index
    %c0_37 = arith.constant 0 : index
    %74 = vector.load %arg11[%c0_36, %c0_37] : memref<1x128xf32, #tpu.memory_space<vmem>>, vector<1x128xf32>
    %75 = vector.broadcast %74 : vector<1x128xf32> to vector<8x128xf32>
    %76 = arith.mulf %73, %75 : vector<8x128xf32>
    %c0_38 = arith.constant 0 : index
    %c0_39 = arith.constant 0 : index
    %77 = vector.load %arg12[%c0_38, %c0_39] : memref<1x128xf32, #tpu.memory_space<vmem>>, vector<1x128xf32>
    %78 = vector.broadcast %77 : vector<1x128xf32> to vector<8x128xf32>
    %79 = arith.addf %76, %78 : vector<8x128xf32>
    %c0_40 = arith.constant 0 : index
    %c0_41 = arith.constant 0 : index
    %c0_42 = arith.constant 0 : index
    %80 = vector.load %arg13[%c0_40, %c0_41, %c0_42] : memref<1x8x128xf32, #tpu.memory_space<vmem>>, vector<1x8x128xf32>
    %81 = vector.shape_cast %80 : vector<1x8x128xf32> to vector<8x128xf32>
    %82 = vector.shape_cast %79 : vector<8x128xf32> to vector<1x8x128xf32>
    tpu.vector_store %arg13[%c0_40, %c0_41, %c0_42], %82 {strides = array<i32>} : memref<1x8x128xf32, #tpu.memory_space<vmem>>, vector<1x8x128xf32>,
    return
  }
  func.func @transform_0(%arg0: i32) -> (i32, i32, i32) {
    %c0_i32 = arith.constant 0 : i32
    %c0_i32_0 = arith.constant 0 : i32
    %c0_i32_1 = arith.constant 0 : i32
    return %arg0, %c0_i32, %c0_i32_0 : i32, i32, i32
  }
  func.func @transform_1(%arg0: i32) -> (i32, i32, i32) {
    %c0_i32 = arith.constant 0 : i32
    %c0_i32_0 = arith.constant 0 : i32
    %c0_i32_1 = arith.constant 0 : i32
    return %arg0, %c0_i32, %c0_i32_0 : i32, i32, i32
  }
  func.func @transform_2(%arg0: i32) -> (i32, i32) {
    %c0_i32 = arith.constant 0 : i32
    %c0_i32_0 = arith.constant 0 : i32
    %c0_i32_1 = arith.constant 0 : i32
    return %c0_i32, %c0_i32_0 : i32, i32
  }
  func.func @transform_3(%arg0: i32) -> (i32, i32) {
    %c0_i32 = arith.constant 0 : i32
    %c0_i32_0 = arith.constant 0 : i32
    %c0_i32_1 = arith.constant 0 : i32
    return %c0_i32, %c0_i32_0 : i32, i32
  }
  func.func @transform_4(%arg0: i32) -> (i32, i32) {
    %c0_i32 = arith.constant 0 : i32
    %c0_i32_0 = arith.constant 0 : i32
    %c0_i32_1 = arith.constant 0 : i32
    return %c0_i32, %c0_i32_0 : i32, i32
  }
  func.func @transform_5(%arg0: i32) -> (i32, i32) {
    %c0_i32 = arith.constant 0 : i32
    %c0_i32_0 = arith.constant 0 : i32
    %c0_i32_1 = arith.constant 0 : i32
    return %c0_i32, %c0_i32_0 : i32, i32
  }
  func.func @transform_6(%arg0: i32) -> (i32, i32) {
    %c0_i32 = arith.constant 0 : i32
    %c0_i32_0 = arith.constant 0 : i32
    %c0_i32_1 = arith.constant 0 : i32
    return %c0_i32, %c0_i32_0 : i32, i32
  }
  func.func @transform_7(%arg0: i32) -> (i32, i32) {
    %c0_i32 = arith.constant 0 : i32
    %c0_i32_0 = arith.constant 0 : i32
    %c0_i32_1 = arith.constant 0 : i32
    return %c0_i32, %c0_i32_0 : i32, i32
  }
  func.func @transform_8(%arg0: i32) -> (i32, i32) {
    %c0_i32 = arith.constant 0 : i32
    %c0_i32_0 = arith.constant 0 : i32
    %c0_i32_1 = arith.constant 0 : i32
    return %c0_i32, %c0_i32_0 : i32, i32
  }
  func.func @transform_9(%arg0: i32) -> (i32, i32) {
    %c0_i32 = arith.constant 0 : i32
    %c0_i32_0 = arith.constant 0 : i32
    %c0_i32_1 = arith.constant 0 : i32
    return %c0_i32, %c0_i32_0 : i32, i32
  }
  func.func @transform_10(%arg0: i32) -> (i32, i32) {
    %c0_i32 = arith.constant 0 : i32
    %c0_i32_0 = arith.constant 0 : i32
    %c0_i32_1 = arith.constant 0 : i32
    return %c0_i32, %c0_i32_0 : i32, i32
  }
  func.func @transform_11(%arg0: i32) -> (i32, i32) {
    %c0_i32 = arith.constant 0 : i32
    %c0_i32_0 = arith.constant 0 : i32
    %c0_i32_1 = arith.constant 0 : i32
    return %c0_i32, %c0_i32_0 : i32, i32
  }
  func.func @transform_12(%arg0: i32) -> (i32, i32, i32) {
    %c0_i32 = arith.constant 0 : i32
    %c0_i32_0 = arith.constant 0 : i32
    %c0_i32_1 = arith.constant 0 : i32
    return %arg0, %c0_i32, %c0_i32_0 : i32, i32, i32
  }
}

</mosaic_0001>

<llo_original>
// kernel: encoder_forward.3
$region0: #{encoder_forward.3}
  #allocation0 [shape = 'u32[]', space=smem, size = 0x4, offset = 0x4, fixed_abs, tag = 'smem constant byte address 0x4 - core index']
  #allocation1 [shape = 'u32[144,128]{1,0:T(1,128)}', space=vmem, size = 0x12000, scoped, tag = 'internal scratch']
  %s0 = inlined_call_operand.vmem [shape: f32[16,128], index: 0, kind: input, shape index: {}]
  %s1 = inlined_call_operand.hbm [shape: bf16[128,384], index: 1, kind: input, shape index: {}]
  %s2 = inlined_call_operand.vmem [shape: f32[16,384], index: 2, kind: output, shape index: {}]
  %s3 = sld [smem:[#allocation0]]
  $region45: #{encoder_forward.3} parent=0
    _
  %s5 = ssub.s32 1, %s3
  %s6 = scalar_select 0, %s5, %s3
  $region1: #{encoder_forward.3} parent=0
    #allocation2 [shape = 'u8[98304]{0}', space=vmem, size = 0x18000, scoped, tag = 'input window, operand 1, single buffered']
    #allocation3 [shape = 's32[2]{0}', space=sflag, size = 0x8, scoped, tag = 'scoped memory for encoder_forward.3']
    %7 = vsyncpa [#allocation3], 0
    loop: start=0, step=1, limit=4
    $region2: #{encoder_forward.3} parent=1 // loop_pre_header
      _
    $region3: #{encoder_forward.3} parent=1 // loop_header
      %s9 = sphi 0, %s13
      %p10 = scmp.ge.s32.totalorder %s9, 4
      %s19 = sphi 0, %s21
      %s22 = sphi 0, %s19
      %s23 = sphi 0, %s22
      %s39 = sphi 0, %s23
      %s43 = sphi 0, %s43
      %s45 = sphi 0, %s43
      %s46 = sphi 0, %s45
      %s60 = sphi 0, %s46
      %s66 = sphi 0, %s68
      %s69 = sphi 0, %s66
      %s70 = sphi 0, %s69
      %s86 = sphi 0, %s70
    $region4: #{encoder_forward.3} parent=1 // loop_header_branch
      %12 = sbr.rel (%p10) target = $region8
    $region5: #{encoder_forward.3} parent=1 // loop_body
      %s14 = ssub.s32 %s9, 1
      %s15 = ssub.s32 %s9, 2
      %s16 = sadd.s32 %s9, 1
      %s17 = ssub.s32 %s9, %s16
      %p18 = scmp.eq.s32.totalorder %s17, 0
      %s20 = sadd.s32 %s19, 1
      %s21 = scalar_select %p18, %s19, %s20
      %p24 = pneg %p18
      %p25 = scmp.eq.s32.totalorder %s9, 1
      %p26 = por %p24, %p25
      %p27 = scmp.ne.s32.totalorder %s19, %s22
      %p28 = scmp.eq.s32.totalorder %s9, 0
      %p29 = por %p27, %p28
      %p30 = scmp.ne.s32.totalorder %s19, %s22
      %p31 = scmp.eq.s32.totalorder %s14, 1
      %p32 = por %p30, %p31
      %p33 = scmp.ne.s32.totalorder %s22, %s23
      %p34 = scmp.eq.s32.totalorder %s14, 0
      %p35 = por %p33, %p34
      %p36 = scmp.ne.s32.totalorder %s22, %s23
      %p37 = scmp.eq.s32.totalorder %s15, 1
      %p38 = por %p36, %p37
      %p40 = scmp.ne.s32.totalorder %s23, %s39
      %p41 = scmp.eq.s32.totalorder %s15, 0
      %p42 = por %p40, %p41
      %s44 = sadd.s32 %s43, 1
      %p47 = scmp.eq.s32.totalorder %s9, 1
      %p48 = scmp.ne.s32.totalorder %s43, %s45
      %p49 = scmp.eq.s32.totalorder %s9, 0
      %p50 = por %p48, %p49
      %p51 = scmp.ne.s32.totalorder %s43, %s45
      %p52 = scmp.eq.s32.totalorder %s14, 1
      %p53 = por %p51, %p52
      %p54 = scmp.ne.s32.totalorder %s45, %s46
      %p55 = scmp.eq.s32.totalorder %s14, 0
      %p56 = por %p54, %p55
      %p57 = scmp.ne.s32.totalorder %s45, %s46
      %p58 = scmp.eq.s32.totalorder %s15, 1
      %p59 = por %p57, %p58
      %p61 = scmp.ne.s32.totalorder %s46, %s60
      %p62 = scmp.eq.s32.totalorder %s15, 0
      %p63 = por %p61, %p62
      %s64 = ssub.s32 %s9, %s16
      %p65 = scmp.eq.s32.totalorder %s64, 0
      %s67 = sadd.s32 %s66, 1
      %s68 = scalar_select %p65, %s66, %s67
      %p71 = pneg %p65
      %p72 = scmp.eq.s32.totalorder %s9, 1
      %p73 = por %p71, %p72
      %p74 = scmp.ne.s32.totalorder %s66, %s69
      %p75 = scmp.eq.s32.totalorder %s9, 0
      %p76 = por %p74, %p75
      %p77 = scmp.ne.s32.totalorder %s66, %s69
      %p78 = scmp.eq.s32.totalorder %s14, 1
      %p79 = por %p77, %p78
      %p80 = scmp.ne.s32.totalorder %s69, %s70
      %p81 = scmp.eq.s32.totalorder %s14, 0
      %p82 = por %p80, %p81
      %p83 = scmp.ne.s32.totalorder %s69, %s70
      %p84 = scmp.eq.s32.totalorder %s15, 1
      %p85 = por %p83, %p84
      %p87 = scmp.ne.s32.totalorder %s70, %s86
      %p88 = scmp.eq.s32.totalorder %s15, 0
      %p89 = por %p87, %p88
      %p90 = scmp.le.s32.totalorder 1, %s9
      %p91 = scmp.lt.s32.totalorder %s9, 3
      %p92 = pnand %p90, %p91
      %p93 = pneg %p92
      // Predicated region
      $region9: #{encoder_forward.3} parent=5 // pred_check
        _
      $region10: #{encoder_forward.3} parent=5 // pred_check_branch
        %95 = sbr.rel (%p92) target = $region12
      $region11: #{encoder_forward.3} parent=5 // pred_region
        %s96 = ssub.s32 %s9, 1
        // Predicated region
        $region13: #{encoder_forward.3} parent=11 // pred_check
          %p97 = pneg %p56
        $region14: #{encoder_forward.3} parent=11 // pred_check_branch
          %99 = sbr.rel (%p97) target = $region16
        $region15: #{encoder_forward.3} parent=11 // pred_region
          %s101 = ssub.s32 3072, 3072
          %102 = vsyncadd [#allocation3], %s101
          %s103 = sshll.u32 [#allocation2], 4
          %s104 = int_to_ptr.vmem [resolvable:$true] %s103
          %109 = dma.hbm_to_vmem [thread:$0]  %s1, 3072, %s104, [#allocation3], 192, 192, 12
        $region16: #{encoder_forward.3} parent=11 // pred_fallthru
          _
      $region12: #{encoder_forward.3} parent=5 // pred_fallthru
        _
      %p110 = scmp.lt.s32.totalorder %s9, 2
      // Predicated region
      $region17: #{encoder_forward.3} parent=5 // pred_check
        %p111 = pneg %p110
      $region18: #{encoder_forward.3} parent=5 // pred_check_branch
        %113 = sbr.rel (%p111) target = $region20
      $region19: #{encoder_forward.3} parent=5 // pred_region
        // Predicated region
        $region21: #{encoder_forward.3} parent=19 // pred_check
          %p114 = pneg %p29
        $region22: #{encoder_forward.3} parent=19 // pred_check_branch
          %116 = sbr.rel (%p114) target = $region24
        $region23: #{encoder_forward.3} parent=19 // pred_region
          %p117 = scmp.lt.s32.totalorder %s9, 1
          %s118 = scalar_select %p117, %s9, 1
          %s119 = smul.addr %s118, 8
          %s120 = scalar_lea.vmem %s0, %s119
        $region24: #{encoder_forward.3} parent=19 // pred_fallthru
          _
      $region20: #{encoder_forward.3} parent=5 // pred_fallthru
        _
      %p121 = scmp.le.s32.totalorder 1, %s9
      %p122 = scmp.lt.s32.totalorder %s9, 3
      %p123 = pnand %p121, %p122
      %p124 = pneg %p123
      // Predicated region
      $region25: #{encoder_forward.3} parent=5 // pred_check
        _
      $region26: #{encoder_forward.3} parent=5 // pred_check_branch
        %126 = sbr.rel (%p123) target = $region28
      $region27: #{encoder_forward.3} parent=5 // pred_region
        %s127 = ssub.s32 %s9, 1
        // Predicated region
        $region29: #{encoder_forward.3} parent=27 // pred_check
          %p128 = pneg %p56
        $region30: #{encoder_forward.3} parent=27 // pred_check_branch
          %130 = sbr.rel (%p128) target = $region32
        $region31: #{encoder_forward.3} parent=27 // pred_region
          %131 = dma.done [#allocation3], 3072
        $region32: #{encoder_forward.3} parent=27 // pred_fallthru
          _
        %p132 = scmp.lt.s32.totalorder %s14, 1
        %s133 = scalar_select %p132, %s14, 1
        %s134 = smul.addr %s133, 8
        %s135 = scalar_lea.vmem %s0, %s134
        %p136 = pneg %p35
        %p137 = pneg %p32
        %p138 = pneg %p56
        %p139 = pneg %p53
        %p140 = pneg %p82
        %p141 = pneg %p79
        %p142 = scmp.lt.s32.totalorder %s14, 1
        %s143 = scalar_select %p142, %s14, 1
        %s144 = smul.addr %s143, 3
        %s145 = smul.addr %s144, 8
        %s146 = scalar_lea.vmem %s2, %s145
        %p147 = scmp.lt.s32.totalorder %s14, 1
        %s148 = scalar_select %p147, %s14, 1
        %s149 = smul.addr %s148, 8
        %s150 = scalar_lea.vmem %s0, %s149
        %p151 = scmp.lt.s32.totalorder %s14, 1
        %s152 = scalar_select %p151, %s14, 1
        %s153 = smul.addr %s152, 3
        %s154 = smul.addr %s153, 8
        %s155 = scalar_lea.vmem %s2, %s154
        %v157 = vld [vmem:[%s150] sm:$0xff]
        %v158 = vpack.c.bf16 %v157, %v157
        %v159 = vld [vmem:[#allocation2] sm:$0xff]
        %v160 = vld [vmem:[#allocation2 + $0x8] sm:$0xf]
        %v161 = vld [vmem:[#allocation2 + $0xc] sm:$0xff]
        %v162 = vld [vmem:[#allocation2 + $0x14] sm:$0xf]
        %v163 = vld [vmem:[#allocation2 + $0x18] sm:$0xff]
        %v164 = vld [vmem:[#allocation2 + $0x20] sm:$0xf]
        %v165 = vld [vmem:[#allocation2 + $0x24] sm:$0xff]
        %v166 = vld [vmem:[#allocation2 + $0x2c] sm:$0xf]
        %v167 = vld [vmem:[#allocation2 + $0x30] sm:$0xff]
        %v168 = vld [vmem:[#allocation2 + $0x38] sm:$0xf]
        %v169 = vld [vmem:[#allocation2 + $0x3c] sm:$0xff]
        %v170 = vld [vmem:[#allocation2 + $0x44] sm:$0xf]
        %v171 = vld [vmem:[#allocation2 + $0x48] sm:$0xff]
        %v172 = vld [vmem:[#allocation2 + $0x50] sm:$0xf]
        %v173 = vld [vmem:[#allocation2 + $0x54] sm:$0xff]
        %v174 = vld [vmem:[#allocation2 + $0x5c] sm:$0xf]
        %v175 = vld [vmem:[#allocation2 + $0x60] sm:$0xff]
        %v176 = vld [vmem:[#allocation2 + $0x68] sm:$0xf]
        %v177 = vld [vmem:[#allocation2 + $0x6c] sm:$0xff]
        %v178 = vld [vmem:[#allocation2 + $0x74] sm:$0xf]
        %v179 = vld [vmem:[#allocation2 + $0x78] sm:$0xff]
        %v180 = vld [vmem:[#allocation2 + $0x80] sm:$0xf]
        %v181 = vld [vmem:[#allocation2 + $0x84] sm:$0xff]
        %v182 = vld [vmem:[#allocation2 + $0x8c] sm:$0xf]
        %v183 = vld [vmem:[#allocation2 + $0x90] sm:$0xff]
        %v184 = vld [vmem:[#allocation2 + $0x98] sm:$0xf]
        %v185 = vld [vmem:[#allocation2 + $0x9c] sm:$0xff]
        %v186 = vld [vmem:[#allocation2 + $0xa4] sm:$0xf]
        %v187 = vld [vmem:[#allocation2 + $0xa8] sm:$0xff]
        %v188 = vld [vmem:[#allocation2 + $0xb0] sm:$0xf]
        %v189 = vld [vmem:[#allocation2 + $0xb4] sm:$0xff]
        %v190 = vld [vmem:[#allocation2 + $0xbc] sm:$0xf]
        %v223 = vunpack.c.l.b16 %v159
        %v224 = vunpack.c.h.b16 %v159
        %v225 = vunpack.c.l.b16 %v160
        %v226 = vunpack.c.l.b16 %v161
        %v227 = vunpack.c.h.b16 %v161
        %v228 = vunpack.c.l.b16 %v162
        %v229 = vunpack.c.l.b16 %v163
        %v230 = vunpack.c.h.b16 %v163
        %v231 = vunpack.c.l.b16 %v164
        %v232 = vunpack.c.l.b16 %v165
        %v233 = vunpack.c.h.b16 %v165
        %v234 = vunpack.c.l.b16 %v166
        %v235 = vunpack.c.l.b16 %v167
        %v236 = vunpack.c.h.b16 %v167
        %v237 = vunpack.c.l.b16 %v168
        %v238 = vunpack.c.l.b16 %v169
        %v239 = vunpack.c.h.b16 %v169
        %v240 = vunpack.c.l.b16 %v170
        %v241 = vunpack.c.l.b16 %v171
        %v242 = vunpack.c.h.b16 %v171
        %v243 = vunpack.c.l.b16 %v172
        %v244 = vunpack.c.l.b16 %v173
        %v245 = vunpack.c.h.b16 %v173
        %v246 = vunpack.c.l.b16 %v174
        %v247 = vunpack.c.l.b16 %v175
        %v248 = vunpack.c.h.b16 %v175
        %v249 = vunpack.c.l.b16 %v176
        %v250 = vunpack.c.l.b16 %v177
        %v251 = vunpack.c.h.b16 %v177
        %v252 = vunpack.c.l.b16 %v178
        %v253 = vunpack.c.l.b16 %v179
        %v254 = vunpack.c.h.b16 %v179
        %v255 = vunpack.c.l.b16 %v180
        %v256 = vunpack.c.l.b16 %v181
        %v257 = vunpack.c.h.b16 %v181
        %v258 = vunpack.c.l.b16 %v182
        %v259 = vunpack.c.l.b16 %v183
        %v260 = vunpack.c.h.b16 %v183
        %v261 = vunpack.c.l.b16 %v184
        %v262 = vunpack.c.l.b16 %v185
        %v263 = vunpack.c.h.b16 %v185
        %v264 = vunpack.c.l.b16 %v186
        %v265 = vunpack.c.l.b16 %v187
        %v266 = vunpack.c.h.b16 %v187
        %v267 = vunpack.c.l.b16 %v188
        %v268 = vunpack.c.l.b16 %v189
        %v269 = vunpack.c.h.b16 %v189
        %v270 = vunpack.c.l.b16 %v190
        %v271 = vpack.c.b16 %v226, %v223
        %v272 = vpack.c.b16 %v227, %v224
        %v273 = vpack.c.b16 %v228, %v225
        %v274 = vpack.c.b16 %v232, %v229
        %v275 = vpack.c.b16 %v233, %v230
        %v276 = vpack.c.b16 %v234, %v231
        %v277 = vpack.c.b16 %v238, %v235
        %v278 = vpack.c.b16 %v239, %v236
        %v279 = vpack.c.b16 %v240, %v237
        %v280 = vpack.c.b16 %v244, %v241
        %v281 = vpack.c.b16 %v245, %v242
        %v282 = vpack.c.b16 %v246, %v243
        %v283 = vpack.c.b16 %v250, %v247
        %v284 = vpack.c.b16 %v251, %v248
        %v285 = vpack.c.b16 %v252, %v249
        %v286 = vpack.c.b16 %v256, %v253
        %v287 = vpack.c.b16 %v257, %v254
        %v288 = vpack.c.b16 %v258, %v255
        %v289 = vpack.c.b16 %v262, %v259
        %v290 = vpack.c.b16 %v263, %v260
        %v291 = vpack.c.b16 %v264, %v261
        %v292 = vpack.c.b16 %v268, %v265
        %v293 = vpack.c.b16 %v269, %v266
        %v294 = vpack.c.b16 %v270, %v267
        %319 = vmatprep.subr.bf16.mxu0 %v293
        %320 = vmatpush1.bf16.msra.mxu0 %v292
        %321 = vmatprep.subr.bf16.mxu0 %v290
        %322 = vmatpush1.bf16.msra.mxu0 %v289
        %323 = vmatprep.subr.bf16.mxu0 %v287
        %324 = vmatpush1.bf16.msra.mxu0 %v286
        %325 = vmatprep.subr.bf16.mxu0 %v284
        %326 = vmatpush1.bf16.msra.mxu0 %v283
        %327 = vmatprep.subr.bf16.mxu0 %v281
        %328 = vmatpush1.bf16.msra.mxu0 %v280
        %329 = vmatprep.subr.bf16.mxu0 %v278
        %330 = vmatpush1.bf16.msra.mxu0 %v277
        %331 = vmatprep.subr.bf16.mxu0 %v275
        %332 = vmatpush1.bf16.msra.mxu0 %v274
        %333 = vmatprep.subr.bf16.mxu0 %v272
        %334 = vmatpush1.bf16.msra.mxu0 %v271
        %335 = vmatprep.subr.bf16.mxu0 0
        %336 = vmatpush2.bf16.msra.mxu0 0
        %337 = vmatprep.subr.bf16.mxu0 0
        %338 = vmatpush2.bf16.msra.mxu0 0
        %339 = vmatprep.subr.bf16.mxu0 0
        %340 = vmatpush2.bf16.msra.mxu0 0
        %341 = vmatprep.subr.bf16.mxu0 0
        %342 = vmatpush2.bf16.msra.mxu0 0
        %343 = vmatprep.subr.bf16.mxu0 0
        %344 = vmatpush2.bf16.msra.mxu0 0
        %345 = vmatprep.subr.bf16.mxu0 0
        %346 = vmatpush2.bf16.msra.mxu0 0
        %347 = vmatprep.subr.bf16.mxu0 0
        %348 = vmatpush2.bf16.msra.mxu0 0
        %349 = vmatprep.subr.bf16.mxu0 0
        %350 = vmatpush2.bf16.msra.mxu0 0
        %351 = vmatprep.mubr.bf16.mxu0 0
        %352 = vmatmul.mubr.bf16.gmra.mxu0 %v158
        %v353 = vpop.f32.mrf.mxu0
        %v354 = vadd.f32 0.0, %v353
        %v355 = vpop.f32.mrf.mxu0
        %v356 = vadd.f32 0.0, %v355
        %v357 = vpop.f32.mrf.mxu0
        %v358 = vpop.f32.mrf.mxu0
        %359 = vdwg.mxu0
        %360 = vmatprep.subr.bf16.mxu0 0
        %361 = vmatpush1.bf16.msra.mxu0 %v294
        %362 = vmatprep.subr.bf16.mxu0 0
        %363 = vmatpush1.bf16.msra.mxu0 %v291
        %364 = vmatprep.subr.bf16.mxu0 0
        %365 = vmatpush1.bf16.msra.mxu0 %v288
        %366 = vmatprep.subr.bf16.mxu0 0
        %367 = vmatpush1.bf16.msra.mxu0 %v285
        %368 = vmatprep.subr.bf16.mxu0 0
        %369 = vmatpush1.bf16.msra.mxu0 %v282
        %370 = vmatprep.subr.bf16.mxu0 0
        %371 = vmatpush1.bf16.msra.mxu0 %v279
        %372 = vmatprep.subr.bf16.mxu0 0
        %373 = vmatpush1.bf16.msra.mxu0 %v276
        %374 = vmatprep.subr.bf16.mxu0 0
        %375 = vmatpush1.bf16.msra.mxu0 %v273
        %376 = vmatprep.subr.bf16.mxu0 0
        %377 = vmatpush2.bf16.msra.mxu0 0
        %378 = vmatprep.subr.bf16.mxu0 0
        %379 = vmatpush2.bf16.msra.mxu0 0
        %380 = vmatprep.subr.bf16.mxu0 0
        %381 = vmatpush2.bf16.msra.mxu0 0
        %382 = vmatprep.subr.bf16.mxu0 0
        %383 = vmatpush2.bf16.msra.mxu0 0
        %384 = vmatprep.subr.bf16.mxu0 0
        %385 = vmatpush2.bf16.msra.mxu0 0
        %386 = vmatprep.subr.bf16.mxu0 0
        %387 = vmatpush2.bf16.msra.mxu0 0
        %388 = vmatprep.subr.bf16.mxu0 0
        %389 = vmatpush2.bf16.msra.mxu0 0
        %390 = vmatprep.subr.bf16.mxu0 0
        %391 = vmatpush2.bf16.msra.mxu0 0
        %392 = vmatprep.mubr.bf16.mxu0 0
        %393 = vmatmul.mubr.bf16.gmra.mxu0 %v158
        %v394 = vpop.f32.mrf.mxu0
        %v395 = vadd.f32 0.0, %v394
        %v396 = vpop.f32.mrf.mxu0
        %v397 = vpop.f32.mrf.mxu0
        %v398 = vpop.f32.mrf.mxu0
        %399 = vdwg.mxu0
        %400 = vst [vmem:[%s155] sm:$0xff] %v354
        %401 = vst [vmem:[%s155 + $0x8] sm:$0xff] %v356
        %402 = vst [vmem:[%s155 + $0x10] sm:$0xff] %v395
        %p403 = scmp.lt.s32.totalorder %s14, 1
        %s404 = scalar_select %p403, %s14, 1
        %s405 = smul.addr %s404, 3
        %s406 = smul.addr %s405, 8
        %s407 = scalar_lea.vmem %s2, %s406
        // Predicated region
        $region33: #{encoder_forward.3} parent=27 // pred_check
          %p408 = pneg %p79
        $region34: #{encoder_forward.3} parent=27 // pred_check_branch
          %410 = sbr.rel (%p408) target = $region36
        $region35: #{encoder_forward.3} parent=27 // pred_region
          _
        $region36: #{encoder_forward.3} parent=27 // pred_fallthru
          _
      $region28: #{encoder_forward.3} parent=5 // pred_fallthru
        _
      %p411 = scmp.le.s32.totalorder 2, %s9
      // Predicated region
      $region37: #{encoder_forward.3} parent=5 // pred_check
        %p412 = pneg %p411
      $region38: #{encoder_forward.3} parent=5 // pred_check_branch
        %414 = sbr.rel (%p412) target = $region40
      $region39: #{encoder_forward.3} parent=5 // pred_region
        %s415 = ssub.s32 %s9, 2
        // Predicated region
        $region41: #{encoder_forward.3} parent=39 // pred_check
          %p416 = pneg %p85
        $region42: #{encoder_forward.3} parent=39 // pred_check_branch
          %418 = sbr.rel (%p416) target = $region44
        $region43: #{encoder_forward.3} parent=39 // pred_region
          %p419 = scmp.lt.s32.totalorder %s15, 1
          %s420 = scalar_select %p419, %s15, 1
          %s421 = smul.addr %s420, 3
          %s422 = smul.addr %s421, 8
          %s423 = scalar_lea.vmem %s2, %s422
        $region44: #{encoder_forward.3} parent=39 // pred_fallthru
          _
      $region40: #{encoder_forward.3} parent=5 // pred_fallthru
        _
    $region6: #{encoder_forward.3} parent=1 // loop_footer
      %s13 = sadd.s32 1, %s9
    $region7: #{encoder_forward.3} parent=1 // loop_footer_branch
      %8 = sbr.rel target = $region3
    $region8: #{encoder_forward.3} parent=1 // loop_exit
      _
    %424 = vsyncpa [#allocation3], 1
    %s425 = scalar_lea.sflag [#allocation3], 1
    %426 = vsyncpa %s425, 1

// kernel: encoder_forward.5
$region0: #{encoder_forward.5}
  #allocation0 [shape = 'u32[]', space=smem, size = 0x4, offset = 0x4, fixed_abs, tag = 'smem constant byte address 0x4 - core index']
  #allocation1 [shape = 'u32[144,128]{1,0:T(1,128)}', space=vmem, size = 0x12000, scoped, tag = 'internal scratch']
  %s0 = inlined_call_operand.vmem [shape: f32[2,8,128], index: 0, kind: input, shape index: {}]
  %s1 = inlined_call_operand.vmem [shape: f32[2,8,128], index: 1, kind: input, shape index: {}]
  %s2 = inlined_call_operand.vmem [shape: bf16[128,128], index: 2, kind: input, shape index: {}]
  %s3 = inlined_call_operand.vmem [shape: f32[1,128], index: 3, kind: input, shape index: {}]
  %s4 = inlined_call_operand.vmem [shape: f32[1,128], index: 4, kind: input, shape index: {}]
  %s5 = inlined_call_operand.vmem [shape: f32[1,128], index: 5, kind: input, shape index: {}]
  %s6 = inlined_call_operand.vmem [shape: bf16[128,256], index: 6, kind: input, shape index: {}]
  %s7 = inlined_call_operand.vmem [shape: f32[1,256], index: 7, kind: input, shape index: {}]
  %s8 = inlined_call_operand.vmem [shape: bf16[256,128], index: 8, kind: input, shape index: {}]
  %s9 = inlined_call_operand.vmem [shape: f32[1,128], index: 9, kind: input, shape index: {}]
  %s10 = inlined_call_operand.vmem [shape: f32[1,128], index: 10, kind: input, shape index: {}]
  %s11 = inlined_call_operand.vmem [shape: f32[1,128], index: 11, kind: input, shape index: {}]
  %s12 = inlined_call_operand.hbm [shape: f32[2,8,128], index: 12, kind: output, shape index: {}]
  %s13 = sld [smem:[#allocation0]]
  $region81: #{encoder_forward.5} parent=0
    _
  %s15 = ssub.s32 1, %s13
  %s16 = scalar_select 0, %s15, %s13
  $region1: #{encoder_forward.5} parent=0
    #allocation2 [shape = 'u8[8192]{0}', space=vmem, size = 0x2000, scoped, tag = 'output window, operand 0']
    #allocation3 [shape = 's32[2]{0}', space=sflag, size = 0x8, scoped, tag = 'scoped memory for encoder_forward.5']
    %17 = vsyncpa [#allocation3], 0
    %s18 = scalar_lea.sflag [#allocation3], 1
    %19 = vsyncpa %s18, 0
    loop: start=0, step=1, limit=4
    $region2: #{encoder_forward.5} parent=1 // loop_pre_header
      _
    $region3: #{encoder_forward.5} parent=1 // loop_header
      %s21 = sphi 0, %s25
      %p22 = scmp.ge.s32.totalorder %s21, 4
      %s31 = sphi 0, %s33
      %s34 = sphi 0, %s31
      %s35 = sphi 0, %s34
      %s51 = sphi 0, %s35
      %s57 = sphi 0, %s59
      %s60 = sphi 0, %s57
      %s61 = sphi 0, %s60
      %s77 = sphi 0, %s61
      %s81 = sphi 0, %s81
      %s83 = sphi 0, %s81
      %s84 = sphi 0, %s83
      %s98 = sphi 0, %s84
      %s102 = sphi 0, %s102
      %s104 = sphi 0, %s102
      %s105 = sphi 0, %s104
      %s119 = sphi 0, %s105
      %s123 = sphi 0, %s123
      %s125 = sphi 0, %s123
      %s126 = sphi 0, %s125
      %s140 = sphi 0, %s126
      %s144 = sphi 0, %s144
      %s146 = sphi 0, %s144
      %s147 = sphi 0, %s146
      %s161 = sphi 0, %s147
      %s165 = sphi 0, %s165
      %s167 = sphi 0, %s165
      %s168 = sphi 0, %s167
      %s182 = sphi 0, %s168
      %s186 = sphi 0, %s186
      %s188 = sphi 0, %s186
      %s189 = sphi 0, %s188
      %s203 = sphi 0, %s189
      %s207 = sphi 0, %s207
      %s209 = sphi 0, %s207
      %s210 = sphi 0, %s209
      %s224 = sphi 0, %s210
      %s228 = sphi 0, %s228
      %s230 = sphi 0, %s228
      %s231 = sphi 0, %s230
      %s245 = sphi 0, %s231
      %s249 = sphi 0, %s249
      %s251 = sphi 0, %s249
      %s252 = sphi 0, %s251
      %s266 = sphi 0, %s252
      %s270 = sphi 0, %s270
      %s272 = sphi 0, %s270
      %s273 = sphi 0, %s272
      %s287 = sphi 0, %s273
      %s293 = sphi 0, %s295
      %s296 = sphi 0, %s293
      %s297 = sphi 0, %s296
      %s313 = sphi 0, %s297
    $region4: #{encoder_forward.5} parent=1 // loop_header_branch
      %24 = sbr.rel (%p22) target = $region8
    $region5: #{encoder_forward.5} parent=1 // loop_body
      %s26 = ssub.s32 %s21, 1
      %s27 = ssub.s32 %s21, 2
      %s28 = sadd.s32 %s21, 1
      %s29 = ssub.s32 %s21, %s28
      %p30 = scmp.eq.s32.totalorder %s29, 0
      %s32 = sadd.s32 %s31, 1
      %s33 = scalar_select %p30, %s31, %s32
      %p36 = pneg %p30
      %p37 = scmp.eq.s32.totalorder %s21, 1
      %p38 = por %p36, %p37
      %p39 = scmp.ne.s32.totalorder %s31, %s34
      %p40 = scmp.eq.s32.totalorder %s21, 0
      %p41 = por %p39, %p40
      %p42 = scmp.ne.s32.totalorder %s31, %s34
      %p43 = scmp.eq.s32.totalorder %s26, 1
      %p44 = por %p42, %p43
      %p45 = scmp.ne.s32.totalorder %s34, %s35
      %p46 = scmp.eq.s32.totalorder %s26, 0
      %p47 = por %p45, %p46
      %p48 = scmp.ne.s32.totalorder %s34, %s35
      %p49 = scmp.eq.s32.totalorder %s27, 1
      %p50 = por %p48, %p49
      %p52 = scmp.ne.s32.totalorder %s35, %s51
      %p53 = scmp.eq.s32.totalorder %s27, 0
      %p54 = por %p52, %p53
      %s55 = ssub.s32 %s21, %s28
      %p56 = scmp.eq.s32.totalorder %s55, 0
      %s58 = sadd.s32 %s57, 1
      %s59 = scalar_select %p56, %s57, %s58
      %p62 = pneg %p56
      %p63 = scmp.eq.s32.totalorder %s21, 1
      %p64 = por %p62, %p63
      %p65 = scmp.ne.s32.totalorder %s57, %s60
      %p66 = scmp.eq.s32.totalorder %s21, 0
      %p67 = por %p65, %p66
      %p68 = scmp.ne.s32.totalorder %s57, %s60
      %p69 = scmp.eq.s32.totalorder %s26, 1
      %p70 = por %p68, %p69
      %p71 = scmp.ne.s32.totalorder %s60, %s61
      %p72 = scmp.eq.s32.totalorder %s26, 0
      %p73 = por %p71, %p72
      %p74 = scmp.ne.s32.totalorder %s60, %s61
      %p75 = scmp.eq.s32.totalorder %s27, 1
      %p76 = por %p74, %p75
      %p78 = scmp.ne.s32.totalorder %s61, %s77
      %p79 = scmp.eq.s32.totalorder %s27, 0
      %p80 = por %p78, %p79
      %s82 = sadd.s32 %s81, 1
      %p85 = scmp.eq.s32.totalorder %s21, 1
      %p86 = scmp.ne.s32.totalorder %s81, %s83
      %p87 = scmp.eq.s32.totalorder %s21, 0
      %p88 = por %p86, %p87
      %p89 = scmp.ne.s32.totalorder %s81, %s83
      %p90 = scmp.eq.s32.totalorder %s26, 1
      %p91 = por %p89, %p90
      %p92 = scmp.ne.s32.totalorder %s83, %s84
      %p93 = scmp.eq.s32.totalorder %s26, 0
      %p94 = por %p92, %p93
      %p95 = scmp.ne.s32.totalorder %s83, %s84
      %p96 = scmp.eq.s32.totalorder %s27, 1
      %p97 = por %p95, %p96
      %p99 = scmp.ne.s32.totalorder %s84, %s98
      %p100 = scmp.eq.s32.totalorder %s27, 0
      %p101 = por %p99, %p100
      %s103 = sadd.s32 %s102, 1
      %p106 = scmp.eq.s32.totalorder %s21, 1
      %p107 = scmp.ne.s32.totalorder %s102, %s104
      %p108 = scmp.eq.s32.totalorder %s21, 0
      %p109 = por %p107, %p108
      %p110 = scmp.ne.s32.totalorder %s102, %s104
      %p111 = scmp.eq.s32.totalorder %s26, 1
      %p112 = por %p110, %p111
      %p113 = scmp.ne.s32.totalorder %s104, %s105
      %p114 = scmp.eq.s32.totalorder %s26, 0
      %p115 = por %p113, %p114
      %p116 = scmp.ne.s32.totalorder %s104, %s105
      %p117 = scmp.eq.s32.totalorder %s27, 1
      %p118 = por %p116, %p117
      %p120 = scmp.ne.s32.totalorder %s105, %s119
      %p121 = scmp.eq.s32.totalorder %s27, 0
      %p122 = por %p120, %p121
      %s124 = sadd.s32 %s123, 1
      %p127 = scmp.eq.s32.totalorder %s21, 1
      %p128 = scmp.ne.s32.totalorder %s123, %s125
      %p129 = scmp.eq.s32.totalorder %s21, 0
      %p130 = por %p128, %p129
      %p131 = scmp.ne.s32.totalorder %s123, %s125
      %p132 = scmp.eq.s32.totalorder %s26, 1
      %p133 = por %p131, %p132
      %p134 = scmp.ne.s32.totalorder %s125, %s126
      %p135 = scmp.eq.s32.totalorder %s26, 0
      %p136 = por %p134, %p135
      %p137 = scmp.ne.s32.totalorder %s125, %s126
      %p138 = scmp.eq.s32.totalorder %s27, 1
      %p139 = por %p137, %p138
      %p141 = scmp.ne.s32.totalorder %s126, %s140
      %p142 = scmp.eq.s32.totalorder %s27, 0
      %p143 = por %p141, %p142
      %s145 = sadd.s32 %s144, 1
      %p148 = scmp.eq.s32.totalorder %s21, 1
      %p149 = scmp.ne.s32.totalorder %s144, %s146
      %p150 = scmp.eq.s32.totalorder %s21, 0
      %p151 = por %p149, %p150
      %p152 = scmp.ne.s32.totalorder %s144, %s146
      %p153 = scmp.eq.s32.totalorder %s26, 1
      %p154 = por %p152, %p153
      %p155 = scmp.ne.s32.totalorder %s146, %s147
      %p156 = scmp.eq.s32.totalorder %s26, 0
      %p157 = por %p155, %p156
      %p158 = scmp.ne.s32.totalorder %s146, %s147
      %p159 = scmp.eq.s32.totalorder %s27, 1
      %p160 = por %p158, %p159
      %p162 = scmp.ne.s32.totalorder %s147, %s161
      %p163 = scmp.eq.s32.totalorder %s27, 0
      %p164 = por %p162, %p163
      %s166 = sadd.s32 %s165, 1
      %p169 = scmp.eq.s32.totalorder %s21, 1
      %p170 = scmp.ne.s32.totalorder %s165, %s167
      %p171 = scmp.eq.s32.totalorder %s21, 0
      %p172 = por %p170, %p171
      %p173 = scmp.ne.s32.totalorder %s165, %s167
      %p174 = scmp.eq.s32.totalorder %s26, 1
      %p175 = por %p173, %p174
      %p176 = scmp.ne.s32.totalorder %s167, %s168
      %p177 = scmp.eq.s32.totalorder %s26, 0
      %p178 = por %p176, %p177
      %p179 = scmp.ne.s32.totalorder %s167, %s168
      %p180 = scmp.eq.s32.totalorder %s27, 1
      %p181 = por %p179, %p180
      %p183 = scmp.ne.s32.totalorder %s168, %s182
      %p184 = scmp.eq.s32.totalorder %s27, 0
      %p185 = por %p183, %p184
      %s187 = sadd.s32 %s186, 1
      %p190 = scmp.eq.s32.totalorder %s21, 1
      %p191 = scmp.ne.s32.totalorder %s186, %s188
      %p192 = scmp.eq.s32.totalorder %s21, 0
      %p193 = por %p191, %p192
      %p194 = scmp.ne.s32.totalorder %s186, %s188
      %p195 = scmp.eq.s32.totalorder %s26, 1
      %p196 = por %p194, %p195
      %p197 = scmp.ne.s32.totalorder %s188, %s189
      %p198 = scmp.eq.s32.totalorder %s26, 0
      %p199 = por %p197, %p198
      %p200 = scmp.ne.s32.totalorder %s188, %s189
      %p201 = scmp.eq.s32.totalorder %s27, 1
      %p202 = por %p200, %p201
      %p204 = scmp.ne.s32.totalorder %s189, %s203
      %p205 = scmp.eq.s32.totalorder %s27, 0
      %p206 = por %p204, %p205
      %s208 = sadd.s32 %s207, 1
      %p211 = scmp.eq.s32.totalorder %s21, 1
      %p212 = scmp.ne.s32.totalorder %s207, %s209
      %p213 = scmp.eq.s32.totalorder %s21, 0
      %p214 = por %p212, %p213
      %p215 = scmp.ne.s32.totalorder %s207, %s209
      %p216 = scmp.eq.s32.totalorder %s26, 1
      %p217 = por %p215, %p216
      %p218 = scmp.ne.s32.totalorder %s209, %s210
      %p219 = scmp.eq.s32.totalorder %s26, 0
      %p220 = por %p218, %p219
      %p221 = scmp.ne.s32.totalorder %s209, %s210
      %p222 = scmp.eq.s32.totalorder %s27, 1
      %p223 = por %p221, %p222
      %p225 = scmp.ne.s32.totalorder %s210, %s224
      %p226 = scmp.eq.s32.totalorder %s27, 0
      %p227 = por %p225, %p226
      %s229 = sadd.s32 %s228, 1
      %p232 = scmp.eq.s32.totalorder %s21, 1
      %p233 = scmp.ne.s32.totalorder %s228, %s230
      %p234 = scmp.eq.s32.totalorder %s21, 0
      %p235 = por %p233, %p234
      %p236 = scmp.ne.s32.totalorder %s228, %s230
      %p237 = scmp.eq.s32.totalorder %s26, 1
      %p238 = por %p236, %p237
      %p239 = scmp.ne.s32.totalorder %s230, %s231
      %p240 = scmp.eq.s32.totalorder %s26, 0
      %p241 = por %p239, %p240
      %p242 = scmp.ne.s32.totalorder %s230, %s231
      %p243 = scmp.eq.s32.totalorder %s27, 1
      %p244 = por %p242, %p243
      %p246 = scmp.ne.s32.totalorder %s231, %s245
      %p247 = scmp.eq.s32.totalorder %s27, 0
      %p248 = por %p246, %p247
      %s250 = sadd.s32 %s249, 1
      %p253 = scmp.eq.s32.totalorder %s21, 1
      %p254 = scmp.ne.s32.totalorder %s249, %s251
      %p255 = scmp.eq.s32.totalorder %s21, 0
      %p256 = por %p254, %p255
      %p257 = scmp.ne.s32.totalorder %s249, %s251
      %p258 = scmp.eq.s32.totalorder %s26, 1
      %p259 = por %p257, %p258
      %p260 = scmp.ne.s32.totalorder %s251, %s252
      %p261 = scmp.eq.s32.totalorder %s26, 0
      %p262 = por %p260, %p261
      %p263 = scmp.ne.s32.totalorder %s251, %s252
      %p264 = scmp.eq.s32.totalorder %s27, 1
      %p265 = por %p263, %p264
      %p267 = scmp.ne.s32.totalorder %s252, %s266
      %p268 = scmp.eq.s32.totalorder %s27, 0
      %p269 = por %p267, %p268
      %s271 = sadd.s32 %s270, 1
      %p274 = scmp.eq.s32.totalorder %s21, 1
      %p275 = scmp.ne.s32.totalorder %s270, %s272
      %p276 = scmp.eq.s32.totalorder %s21, 0
      %p277 = por %p275, %p276
      %p278 = scmp.ne.s32.totalorder %s270, %s272
      %p279 = scmp.eq.s32.totalorder %s26, 1
      %p280 = por %p278, %p279
      %p281 = scmp.ne.s32.totalorder %s272, %s273
      %p282 = scmp.eq.s32.totalorder %s26, 0
      %p283 = por %p281, %p282
      %p284 = scmp.ne.s32.totalorder %s272, %s273
      %p285 = scmp.eq.s32.totalorder %s27, 1
      %p286 = por %p284, %p285
      %p288 = scmp.ne.s32.totalorder %s273, %s287
      %p289 = scmp.eq.s32.totalorder %s27, 0
      %p290 = por %p288, %p289
      %s291 = ssub.s32 %s21, %s28
      %p292 = scmp.eq.s32.totalorder %s291, 0
      %s294 = sadd.s32 %s293, 1
      %s295 = scalar_select %p292, %s293, %s294
      %p298 = pneg %p292
      %p299 = scmp.eq.s32.totalorder %s21, 1
      %p300 = por %p298, %p299
      %p301 = scmp.ne.s32.totalorder %s293, %s296
      %p302 = scmp.eq.s32.totalorder %s21, 0
      %p303 = por %p301, %p302
      %p304 = scmp.ne.s32.totalorder %s293, %s296
      %p305 = scmp.eq.s32.totalorder %s26, 1
      %p306 = por %p304, %p305
      %p307 = scmp.ne.s32.totalorder %s296, %s297
      %p308 = scmp.eq.s32.totalorder %s26, 0
      %p309 = por %p307, %p308
      %p310 = scmp.ne.s32.totalorder %s296, %s297
      %p311 = scmp.eq.s32.totalorder %s27, 1
      %p312 = por %p310, %p311
      %p314 = scmp.ne.s32.totalorder %s297, %s313
      %p315 = scmp.eq.s32.totalorder %s27, 0
      %p316 = por %p314, %p315
      %p317 = scmp.le.s32.totalorder 1, %s21
      %p318 = scmp.lt.s32.totalorder %s21, 3
      %p319 = pnand %p317, %p318
      %p320 = pneg %p319
      // Predicated region
      $region9: #{encoder_forward.5} parent=5 // pred_check
        _
      $region10: #{encoder_forward.5} parent=5 // pred_check_branch
        %322 = sbr.rel (%p319) target = $region12
      $region11: #{encoder_forward.5} parent=5 // pred_region
        %s323 = ssub.s32 %s21, 1
        // Predicated region
        $region13: #{encoder_forward.5} parent=11 // pred_check
          %p324 = pneg %p94
        $region14: #{encoder_forward.5} parent=11 // pred_check_branch
          %326 = sbr.rel (%p324) target = $region16
        $region15: #{encoder_forward.5} parent=11 // pred_region
          _
        $region16: #{encoder_forward.5} parent=11 // pred_fallthru
          _
        // Predicated region
        $region17: #{encoder_forward.5} parent=11 // pred_check
          %p327 = pneg %p115
        $region18: #{encoder_forward.5} parent=11 // pred_check_branch
          %329 = sbr.rel (%p327) target = $region20
        $region19: #{encoder_forward.5} parent=11 // pred_region
          _
        $region20: #{encoder_forward.5} parent=11 // pred_fallthru
          _
        // Predicated region
        $region21: #{encoder_forward.5} parent=11 // pred_check
          %p330 = pneg %p136
        $region22: #{encoder_forward.5} parent=11 // pred_check_branch
          %332 = sbr.rel (%p330) target = $region24
        $region23: #{encoder_forward.5} parent=11 // pred_region
          _
        $region24: #{encoder_forward.5} parent=11 // pred_fallthru
          _
        // Predicated region
        $region25: #{encoder_forward.5} parent=11 // pred_check
          %p333 = pneg %p157
        $region26: #{encoder_forward.5} parent=11 // pred_check_branch
          %335 = sbr.rel (%p333) target = $region28
        $region27: #{encoder_forward.5} parent=11 // pred_region
          _
        $region28: #{encoder_forward.5} parent=11 // pred_fallthru
          _
        // Predicated region
        $region29: #{encoder_forward.5} parent=11 // pred_check
          %p336 = pneg %p178
        $region30: #{encoder_forward.5} parent=11 // pred_check_branch
          %338 = sbr.rel (%p336) target = $region32
        $region31: #{encoder_forward.5} parent=11 // pred_region
          _
        $region32: #{encoder_forward.5} parent=11 // pred_fallthru
          _
        // Predicated region
        $region33: #{encoder_forward.5} parent=11 // pred_check
          %p339 = pneg %p199
        $region34: #{encoder_forward.5} parent=11 // pred_check_branch
          %341 = sbr.rel (%p339) target = $region36
        $region35: #{encoder_forward.5} parent=11 // pred_region
          _
        $region36: #{encoder_forward.5} parent=11 // pred_fallthru
          _
        // Predicated region
        $region37: #{encoder_forward.5} parent=11 // pred_check
          %p342 = pneg %p220
        $region38: #{encoder_forward.5} parent=11 // pred_check_branch
          %344 = sbr.rel (%p342) target = $region40
        $region39: #{encoder_forward.5} parent=11 // pred_region
          _
        $region40: #{encoder_forward.5} parent=11 // pred_fallthru
          _
        // Predicated region
        $region41: #{encoder_forward.5} parent=11 // pred_check
          %p345 = pneg %p241
        $region42: #{encoder_forward.5} parent=11 // pred_check_branch
          %347 = sbr.rel (%p345) target = $region44
        $region43: #{encoder_forward.5} parent=11 // pred_region
          _
        $region44: #{encoder_forward.5} parent=11 // pred_fallthru
          _
        // Predicated region
        $region45: #{encoder_forward.5} parent=11 // pred_check
          %p348 = pneg %p262
        $region46: #{encoder_forward.5} parent=11 // pred_check_branch
          %350 = sbr.rel (%p348) target = $region48
        $region47: #{encoder_forward.5} parent=11 // pred_region
          _
        $region48: #{encoder_forward.5} parent=11 // pred_fallthru
          _
        // Predicated region
        $region49: #{encoder_forward.5} parent=11 // pred_check
          %p351 = pneg %p283
        $region50: #{encoder_forward.5} parent=11 // pred_check_branch
          %353 = sbr.rel (%p351) target = $region52
        $region51: #{encoder_forward.5} parent=11 // pred_region
          _
        $region52: #{encoder_forward.5} parent=11 // pred_fallthru
          _
      $region12: #{encoder_forward.5} parent=5 // pred_fallthru
        _
      %p354 = scmp.lt.s32.totalorder %s21, 2
      // Predicated region
      $region53: #{encoder_forward.5} parent=5 // pred_check
        %p355 = pneg %p354
      $region54: #{encoder_forward.5} parent=5 // pred_check_branch
        %357 = sbr.rel (%p355) target = $region56
      $region55: #{encoder_forward.5} parent=5 // pred_region
        // Predicated region
        $region57: #{encoder_forward.5} parent=55 // pred_check
          %p358 = pneg %p41
        $region58: #{encoder_forward.5} parent=55 // pred_check_branch
          %360 = sbr.rel (%p358) target = $region60
        $region59: #{encoder_forward.5} parent=55 // pred_region
          %p361 = scmp.lt.s32.totalorder %s21, 1
          %s362 = scalar_select %p361, %s21, 1
          %s363 = smul.addr %s362, 8
          %s364 = scalar_lea.vmem %s0, %s363
        $region60: #{encoder_forward.5} parent=55 // pred_fallthru
          _
        // Predicated region
        $region61: #{encoder_forward.5} parent=55 // pred_check
          %p365 = pneg %p67
        $region62: #{encoder_forward.5} parent=55 // pred_check_branch
          %367 = sbr.rel (%p365) target = $region64
        $region63: #{encoder_forward.5} parent=55 // pred_region
          %p368 = scmp.lt.s32.totalorder %s21, 1
          %s369 = scalar_select %p368, %s21, 1
          %s370 = smul.addr %s369, 8
          %s371 = scalar_lea.vmem %s1, %s370
        $region64: #{encoder_forward.5} parent=55 // pred_fallthru
          _
      $region56: #{encoder_forward.5} parent=5 // pred_fallthru
        _
      %p372 = scmp.le.s32.totalorder 1, %s21
      %p373 = scmp.lt.s32.totalorder %s21, 3
      %p374 = pnand %p372, %p373
      %p375 = pneg %p374
      // Predicated region
      $region65: #{encoder_forward.5} parent=5 // pred_check
        _
      $region66: #{encoder_forward.5} parent=5 // pred_check_branch
        %377 = sbr.rel (%p374) target = $region68
      $region67: #{encoder_forward.5} parent=5 // pred_region
        %s378 = ssub.s32 %s21, 1
        %p379 = scmp.lt.s32.totalorder %s26, 1
        %s380 = scalar_select %p379, %s26, 1
        %s381 = smul.addr %s380, 8
        %s382 = scalar_lea.vmem %s0, %s381
        %p383 = pneg %p47
        %p384 = pneg %p44
        %p385 = scmp.lt.s32.totalorder %s26, 1
        %s386 = scalar_select %p385, %s26, 1
        %s387 = smul.addr %s386, 8
        %s388 = scalar_lea.vmem %s1, %s387
        %p389 = pneg %p73
        %p390 = pneg %p70
        %p391 = pneg %p94
        %p392 = pneg %p91
        %p393 = pneg %p115
        %p394 = pneg %p112
        %p395 = pneg %p136
        %p396 = pneg %p133
        %p397 = pneg %p157
        %p398 = pneg %p154
        %p399 = pneg %p178
        %p400 = pneg %p175
        %p401 = pneg %p199
        %p402 = pneg %p196
        %p403 = pneg %p220
        %p404 = pneg %p217
        %p405 = pneg %p241
        %p406 = pneg %p238
        %p407 = pneg %p262
        %p408 = pneg %p259
        %p409 = pneg %p283
        %p410 = pneg %p280
        %p411 = pneg %p309
        %p412 = pneg %p306
        %s413 = sand.u32 %s296, 1
        %s414 = scalar_lea.sflag [#allocation3], %s413
        %s415 = sand.u32 %s296, 1
        %s416 = smul.addr %s415, 8
        %s417 = scalar_lea.vmem [#allocation2], %s416
        %p418 = scmp.lt.s32.totalorder %s26, 1
        %s419 = scalar_select %p418, %s26, 1
        %s420 = smul.addr %s419, 8
        %s421 = scalar_lea.vmem %s0, %s420
        %p422 = scmp.lt.s32.totalorder %s26, 1
        %s423 = scalar_select %p422, %s26, 1
        %s424 = smul.addr %s423, 8
        %s425 = scalar_lea.vmem %s1, %s424
        %v427 = vld [vmem:[%s421] sm:$0xff]
        %v428 = vld [vmem:[%s425] sm:$0xff]
        %v429 = vpack.c.bf16 %v427, %v427
        %v430 = vld [vmem:[%s2] sm:$0xf]
        %v431 = vld [vmem:[%s2 + $0x4] sm:$0xf]
        %v432 = vld [vmem:[%s2 + $0x8] sm:$0xf]
        %v433 = vld [vmem:[%s2 + $0xc] sm:$0xf]
        %v434 = vld [vmem:[%s2 + $0x10] sm:$0xf]
        %v435 = vld [vmem:[%s2 + $0x14] sm:$0xf]
        %v436 = vld [vmem:[%s2 + $0x18] sm:$0xf]
        %v437 = vld [vmem:[%s2 + $0x1c] sm:$0xf]
        %v438 = vld [vmem:[%s2 + $0x20] sm:$0xf]
        %v439 = vld [vmem:[%s2 + $0x24] sm:$0xf]
        %v440 = vld [vmem:[%s2 + $0x28] sm:$0xf]
        %v441 = vld [vmem:[%s2 + $0x2c] sm:$0xf]
        %v442 = vld [vmem:[%s2 + $0x30] sm:$0xf]
        %v443 = vld [vmem:[%s2 + $0x34] sm:$0xf]
        %v444 = vld [vmem:[%s2 + $0x38] sm:$0xf]
        %v445 = vld [vmem:[%s2 + $0x3c] sm:$0xf]
        %v446 = vld [vmem:[%s3] sm:$0x1]
        %v448 = vlaneseq
        %v449 = vshrl.u32 %v448, 7
        %v450 = vsub.s32 0, %v449
        %v451 = vrot.slane %v446, %v450
        %v469 = vunpack.c.l.b16 %v430
        %v470 = vunpack.c.l.b16 %v431
        %v471 = vunpack.c.l.b16 %v432
        %v472 = vunpack.c.l.b16 %v433
        %v473 = vunpack.c.l.b16 %v434
        %v474 = vunpack.c.l.b16 %v435
        %v475 = vunpack.c.l.b16 %v436
        %v476 = vunpack.c.l.b16 %v437
        %v477 = vunpack.c.l.b16 %v438
        %v478 = vunpack.c.l.b16 %v439
        %v479 = vunpack.c.l.b16 %v440
        %v480 = vunpack.c.l.b16 %v441
        %v481 = vunpack.c.l.b16 %v442
        %v482 = vunpack.c.l.b16 %v443
        %v483 = vunpack.c.l.b16 %v444
        %v484 = vunpack.c.l.b16 %v445
        %v485 = vpack.c.b16 %v470, %v469
        %v486 = vpack.c.b16 %v472, %v471
        %v487 = vpack.c.b16 %v474, %v473
        %v488 = vpack.c.b16 %v476, %v475
        %v489 = vpack.c.b16 %v478, %v477
        %v490 = vpack.c.b16 %v480, %v479
        %v491 = vpack.c.b16 %v482, %v481
        %v492 = vpack.c.b16 %v484, %v483
        %501 = vmatprep.subr.bf16.mxu0 0
        %502 = vmatpush1.bf16.msra.mxu0 %v492
        %503 = vmatprep.subr.bf16.mxu0 0
        %504 = vmatpush1.bf16.msra.mxu0 %v491
        %505 = vmatprep.subr.bf16.mxu0 0
        %506 = vmatpush1.bf16.msra.mxu0 %v490
        %507 = vmatprep.subr.bf16.mxu0 0
        %508 = vmatpush1.bf16.msra.mxu0 %v489
        %509 = vmatprep.subr.bf16.mxu0 0
        %510 = vmatpush1.bf16.msra.mxu0 %v488
        %511 = vmatprep.subr.bf16.mxu0 0
        %512 = vmatpush1.bf16.msra.mxu0 %v487
        %513 = vmatprep.subr.bf16.mxu0 0
        %514 = vmatpush1.bf16.msra.mxu0 %v486
        %515 = vmatprep.subr.bf16.mxu0 0
        %516 = vmatpush1.bf16.msra.mxu0 %v485
        %517 = vmatprep.subr.bf16.mxu0 0
        %518 = vmatpush2.bf16.msra.mxu0 0
        %519 = vmatprep.subr.bf16.mxu0 0
        %520 = vmatpush2.bf16.msra.mxu0 0
        %521 = vmatprep.subr.bf16.mxu0 0
        %522 = vmatpush2.bf16.msra.mxu0 0
        %523 = vmatprep.subr.bf16.mxu0 0
        %524 = vmatpush2.bf16.msra.mxu0 0
        %525 = vmatprep.subr.bf16.mxu0 0
        %526 = vmatpush2.bf16.msra.mxu0 0
        %527 = vmatprep.subr.bf16.mxu0 0
        %528 = vmatpush2.bf16.msra.mxu0 0
        %529 = vmatprep.subr.bf16.mxu0 0
        %530 = vmatpush2.bf16.msra.mxu0 0
        %531 = vmatprep.subr.bf16.mxu0 0
        %532 = vmatpush2.bf16.msra.mxu0 0
        %533 = vmatprep.mubr.bf16.mxu0 0
        %534 = vmatmul.mubr.bf16.gmra.mxu0 %v429
        %v535 = vpop.f32.mrf.mxu0
        %v536 = vadd.f32 %v451, %v535
        %v537 = vpop.f32.mrf.mxu0
        %v538 = vpop.f32.mrf.mxu0
        %v539 = vpop.f32.mrf.mxu0
        %540 = vdwg.mxu0
        %v541 = vadd.f32 %v428, %v536
        %542 = vadd.xlane.f32.xlu0 %v541
        %v543 = vpop.xlane.xlu0 %542
        %v544 = vrcp.pop 128.0
        %v545 = vmul.f32 %v543, %v544
        %v546 = vsub.f32 %v541, %v545
        %v547 = vmul.f32 %v546, %v546
        %548 = vadd.xlane.f32.xlu0 %v547
        %v549 = vpop.xlane.xlu0 %548
        %v550 = vmul.f32 %v549, %v544
        %v551 = vadd.f32 %v550, 1e-12
        %v552 = vrsqrt.pop %v551
        %v553 = vmul.f32 %v546, %v552
        %v554 = vld [vmem:[%s4] sm:$0x1]
        %v556 = vlaneseq
        %v557 = vshrl.u32 %v556, 7
        %v558 = vsub.s32 0, %v557
        %v559 = vrot.slane %v554, %v558
        %v561 = vmul.f32 %v553, %v559
        %v562 = vld [vmem:[%s5] sm:$0x1]
        %v564 = vlaneseq
        %v565 = vshrl.u32 %v564, 7
        %v566 = vsub.s32 0, %v565
        %v567 = vrot.slane %v562, %v566
        %v569 = vadd.f32 %v561, %v567
        %v570 = vpack.c.bf16 %v569, %v569
        %v571 = vld [vmem:[%s6] sm:$0xff]
        %v572 = vld [vmem:[%s6 + $0x8] sm:$0xff]
        %v573 = vld [vmem:[%s6 + $0x10] sm:$0xff]
        %v574 = vld [vmem:[%s6 + $0x18] sm:$0xff]
        %v575 = vld [vmem:[%s6 + $0x20] sm:$0xff]
        %v576 = vld [vmem:[%s6 + $0x28] sm:$0xff]
        %v577 = vld [vmem:[%s6 + $0x30] sm:$0xff]
        %v578 = vld [vmem:[%s6 + $0x38] sm:$0xff]
        %v579 = vld [vmem:[%s6 + $0x40] sm:$0xff]
        %v580 = vld [vmem:[%s6 + $0x48] sm:$0xff]
        %v581 = vld [vmem:[%s6 + $0x50] sm:$0xff]
        %v582 = vld [vmem:[%s6 + $0x58] sm:$0xff]
        %v583 = vld [vmem:[%s6 + $0x60] sm:$0xff]
        %v584 = vld [vmem:[%s6 + $0x68] sm:$0xff]
        %v585 = vld [vmem:[%s6 + $0x70] sm:$0xff]
        %v586 = vld [vmem:[%s6 + $0x78] sm:$0xff]
        %v587 = vld [vmem:[%s7] sm:$0x3]
        %v589 = vlaneseq
        %v590 = vshrl.u32 %v589, 7
        %v591 = vsub.s32 0, %v590
        %v592 = vrot.slane %v587, %v591
        %v593 = vlaneseq
        %v594 = vshrl.u32 %v593, 7
        %v595 = vsub.s32 1, %v594
        %v596 = vrot.slane %v587, %v595
        %v615 = vunpack.c.l.b16 %v571
        %v616 = vunpack.c.h.b16 %v571
        %v617 = vunpack.c.l.b16 %v572
        %v618 = vunpack.c.h.b16 %v572
        %v619 = vunpack.c.l.b16 %v573
        %v620 = vunpack.c.h.b16 %v573
        %v621 = vunpack.c.l.b16 %v574
        %v622 = vunpack.c.h.b16 %v574
        %v623 = vunpack.c.l.b16 %v575
        %v624 = vunpack.c.h.b16 %v575
        %v625 = vunpack.c.l.b16 %v576
        %v626 = vunpack.c.h.b16 %v576
        %v627 = vunpack.c.l.b16 %v577
        %v628 = vunpack.c.h.b16 %v577
        %v629 = vunpack.c.l.b16 %v578
        %v630 = vunpack.c.h.b16 %v578
        %v631 = vunpack.c.l.b16 %v579
        %v632 = vunpack.c.h.b16 %v579
        %v633 = vunpack.c.l.b16 %v580
        %v634 = vunpack.c.h.b16 %v580
        %v635 = vunpack.c.l.b16 %v581
        %v636 = vunpack.c.h.b16 %v581
        %v637 = vunpack.c.l.b16 %v582
        %v638 = vunpack.c.h.b16 %v582
        %v639 = vunpack.c.l.b16 %v583
        %v640 = vunpack.c.h.b16 %v583
        %v641 = vunpack.c.l.b16 %v584
        %v642 = vunpack.c.h.b16 %v584
        %v643 = vunpack.c.l.b16 %v585
        %v644 = vunpack.c.h.b16 %v585
        %v645 = vunpack.c.l.b16 %v586
        %v646 = vunpack.c.h.b16 %v586
        %v647 = vpack.c.b16 %v617, %v615
        %v648 = vpack.c.b16 %v618, %v616
        %v649 = vpack.c.b16 %v621, %v619
        %v650 = vpack.c.b16 %v622, %v620
        %v651 = vpack.c.b16 %v625, %v623
        %v652 = vpack.c.b16 %v626, %v624
        %v653 = vpack.c.b16 %v629, %v627
        %v654 = vpack.c.b16 %v630, %v628
        %v655 = vpack.c.b16 %v633, %v631
        %v656 = vpack.c.b16 %v634, %v632
        %v657 = vpack.c.b16 %v637, %v635
        %v658 = vpack.c.b16 %v638, %v636
        %v659 = vpack.c.b16 %v641, %v639
        %v660 = vpack.c.b16 %v642, %v640
        %v661 = vpack.c.b16 %v645, %v643
        %v662 = vpack.c.b16 %v646, %v644
        %679 = vmatprep.subr.bf16.mxu0 %v662
        %680 = vmatpush1.bf16.msra.mxu0 %v661
        %681 = vmatprep.subr.bf16.mxu0 %v660
        %682 = vmatpush1.bf16.msra.mxu0 %v659
        %683 = vmatprep.subr.bf16.mxu0 %v658
        %684 = vmatpush1.bf16.msra.mxu0 %v657
        %685 = vmatprep.subr.bf16.mxu0 %v656
        %686 = vmatpush1.bf16.msra.mxu0 %v655
        %687 = vmatprep.subr.bf16.mxu0 %v654
        %688 = vmatpush1.bf16.msra.mxu0 %v653
        %689 = vmatprep.subr.bf16.mxu0 %v652
        %690 = vmatpush1.bf16.msra.mxu0 %v651
        %691 = vmatprep.subr.bf16.mxu0 %v650
        %692 = vmatpush1.bf16.msra.mxu0 %v649
        %693 = vmatprep.subr.bf16.mxu0 %v648
        %694 = vmatpush1.bf16.msra.mxu0 %v647
        %695 = vmatprep.subr.bf16.mxu0 0
        %696 = vmatpush2.bf16.msra.mxu0 0
        %697 = vmatprep.subr.bf16.mxu0 0
        %698 = vmatpush2.bf16.msra.mxu0 0
        %699 = vmatprep.subr.bf16.mxu0 0
        %700 = vmatpush2.bf16.msra.mxu0 0
        %701 = vmatprep.subr.bf16.mxu0 0
        %702 = vmatpush2.bf16.msra.mxu0 0
        %703 = vmatprep.subr.bf16.mxu0 0
        %704 = vmatpush2.bf16.msra.mxu0 0
        %705 = vmatprep.subr.bf16.mxu0 0
        %706 = vmatpush2.bf16.msra.mxu0 0
        %707 = vmatprep.subr.bf16.mxu0 0
        %708 = vmatpush2.bf16.msra.mxu0 0
        %709 = vmatprep.subr.bf16.mxu0 0
        %710 = vmatpush2.bf16.msra.mxu0 0
        %711 = vmatprep.mubr.bf16.mxu0 0
        %712 = vmatmul.mubr.bf16.gmra.mxu0 %v570
        %v713 = vpop.f32.mrf.mxu0
        %v714 = vadd.f32 %v592, %v713
        %v715 = vpop.f32.mrf.mxu0
        %v716 = vadd.f32 %v596, %v715
        %v717 = vpop.f32.mrf.mxu0
        %v718 = vpop.f32.mrf.mxu0
        %719 = vdwg.mxu0
        %v720 = vmul.f32 %v714, 0.5
        %v721 = vmul.f32 %v716, 0.5
        %v722 = vmul.f32 %v714, 0.70710677
        %v723 = vmul.f32 %v716, 0.70710677
        %v724 = verf.f32.pop %v722
        %v725 = verf.f32.pop %v723
        %v726 = vadd.f32 %v724, 1.0
        %v727 = vadd.f32 %v725, 1.0
        %v728 = vmul.f32 %v720, %v726
        %v729 = vmul.f32 %v721, %v727
        %v730 = vpack.c.bf16 %v728, %v728
        %v731 = vpack.c.bf16 %v729, %v729
        %v732 = vld [vmem:[%s8] sm:$0xf]
        %v733 = vld [vmem:[%s8 + $0x4] sm:$0xf]
        %v734 = vld [vmem:[%s8 + $0x8] sm:$0xf]
        %v735 = vld [vmem:[%s8 + $0xc] sm:$0xf]
        %v736 = vld [vmem:[%s8 + $0x10] sm:$0xf]
        %v737 = vld [vmem:[%s8 + $0x14] sm:$0xf]
        %v738 = vld [vmem:[%s8 + $0x18] sm:$0xf]
        %v739 = vld [vmem:[%s8 + $0x1c] sm:$0xf]
        %v740 = vld [vmem:[%s8 + $0x20] sm:$0xf]
        %v741 = vld [vmem:[%s8 + $0x24] sm:$0xf]
        %v742 = vld [vmem:[%s8 + $0x28] sm:$0xf]
        %v743 = vld [vmem:[%s8 + $0x2c] sm:$0xf]
        %v744 = vld [vmem:[%s8 + $0x30] sm:$0xf]
        %v745 = vld [vmem:[%s8 + $0x34] sm:$0xf]
        %v746 = vld [vmem:[%s8 + $0x38] sm:$0xf]
        %v747 = vld [vmem:[%s8 + $0x3c] sm:$0xf]
        %v748 = vld [vmem:[%s8 + $0x40] sm:$0xf]
        %v749 = vld [vmem:[%s8 + $0x44] sm:$0xf]
        %v750 = vld [vmem:[%s8 + $0x48] sm:$0xf]
        %v751 = vld [vmem:[%s8 + $0x4c] sm:$0xf]
        %v752 = vld [vmem:[%s8 + $0x50] sm:$0xf]
        %v753 = vld [vmem:[%s8 + $0x54] sm:$0xf]
        %v754 = vld [vmem:[%s8 + $0x58] sm:$0xf]
        %v755 = vld [vmem:[%s8 + $0x5c] sm:$0xf]
        %v756 = vld [vmem:[%s8 + $0x60] sm:$0xf]
        %v757 = vld [vmem:[%s8 + $0x64] sm:$0xf]
        %v758 = vld [vmem:[%s8 + $0x68] sm:$0xf]
        %v759 = vld [vmem:[%s8 + $0x6c] sm:$0xf]
        %v760 = vld [vmem:[%s8 + $0x70] sm:$0xf]
        %v761 = vld [vmem:[%s8 + $0x74] sm:$0xf]
        %v762 = vld [vmem:[%s8 + $0x78] sm:$0xf]
        %v763 = vld [vmem:[%s8 + $0x7c] sm:$0xf]
        %v764 = vld [vmem:[%s9] sm:$0x1]
        %v766 = vlaneseq
        %v767 = vshrl.u32 %v766, 7
        %v768 = vsub.s32 0, %v767
        %v769 = vrot.slane %v764, %v768
        %v803 = vunpack.c.l.b16 %v732
        %v804 = vunpack.c.l.b16 %v733
        %v805 = vunpack.c.l.b16 %v734
        %v806 = vunpack.c.l.b16 %v735
        %v807 = vunpack.c.l.b16 %v736
        %v808 = vunpack.c.l.b16 %v737
        %v809 = vunpack.c.l.b16 %v738
        %v810 = vunpack.c.l.b16 %v739
        %v811 = vunpack.c.l.b16 %v740
        %v812 = vunpack.c.l.b16 %v741
        %v813 = vunpack.c.l.b16 %v742
        %v814 = vunpack.c.l.b16 %v743
        %v815 = vunpack.c.l.b16 %v744
        %v816 = vunpack.c.l.b16 %v745
        %v817 = vunpack.c.l.b16 %v746
        %v818 = vunpack.c.l.b16 %v747
        %v819 = vunpack.c.l.b16 %v748
        %v820 = vunpack.c.l.b16 %v749
        %v821 = vunpack.c.l.b16 %v750
        %v822 = vunpack.c.l.b16 %v751
        %v823 = vunpack.c.l.b16 %v752
        %v824 = vunpack.c.l.b16 %v753
        %v825 = vunpack.c.l.b16 %v754
        %v826 = vunpack.c.l.b16 %v755
        %v827 = vunpack.c.l.b16 %v756
        %v828 = vunpack.c.l.b16 %v757
        %v829 = vunpack.c.l.b16 %v758
        %v830 = vunpack.c.l.b16 %v759
        %v831 = vunpack.c.l.b16 %v760
        %v832 = vunpack.c.l.b16 %v761
        %v833 = vunpack.c.l.b16 %v762
        %v834 = vunpack.c.l.b16 %v763
        %v835 = vpack.c.b16 %v804, %v803
        %v836 = vpack.c.b16 %v806, %v805
        %v837 = vpack.c.b16 %v808, %v807
        %v838 = vpack.c.b16 %v810, %v809
        %v839 = vpack.c.b16 %v812, %v811
        %v840 = vpack.c.b16 %v814, %v813
        %v841 = vpack.c.b16 %v816, %v815
        %v842 = vpack.c.b16 %v818, %v817
        %v843 = vpack.c.b16 %v820, %v819
        %v844 = vpack.c.b16 %v822, %v821
        %v845 = vpack.c.b16 %v824, %v823
        %v846 = vpack.c.b16 %v826, %v825
        %v847 = vpack.c.b16 %v828, %v827
        %v848 = vpack.c.b16 %v830, %v829
        %v849 = vpack.c.b16 %v832, %v831
        %v850 = vpack.c.b16 %v834, %v833
        %867 = vmatprep.subr.bf16.mxu0 0
        %868 = vmatpush1.bf16.msra.mxu0 %v842
        %869 = vmatprep.subr.bf16.mxu0 0
        %870 = vmatpush1.bf16.msra.mxu0 %v841
        %871 = vmatprep.subr.bf16.mxu0 0
        %872 = vmatpush1.bf16.msra.mxu0 %v840
        %873 = vmatprep.subr.bf16.mxu0 0
        %874 = vmatpush1.bf16.msra.mxu0 %v839
        %875 = vmatprep.subr.bf16.mxu0 0
        %876 = vmatpush1.bf16.msra.mxu0 %v838
        %877 = vmatprep.subr.bf16.mxu0 0
        %878 = vmatpush1.bf16.msra.mxu0 %v837
        %879 = vmatprep.subr.bf16.mxu0 0
        %880 = vmatpush1.bf16.msra.mxu0 %v836
        %881 = vmatprep.subr.bf16.mxu0 0
        %882 = vmatpush1.bf16.msra.mxu0 %v835
        %883 = vmatprep.subr.bf16.mxu0 0
        %884 = vmatpush2.bf16.msra.mxu0 %v850
        %885 = vmatprep.subr.bf16.mxu0 0
        %886 = vmatpush2.bf16.msra.mxu0 %v849
        %887 = vmatprep.subr.bf16.mxu0 0
        %888 = vmatpush2.bf16.msra.mxu0 %v848
        %889 = vmatprep.subr.bf16.mxu0 0
        %890 = vmatpush2.bf16.msra.mxu0 %v847
        %891 = vmatprep.subr.bf16.mxu0 0
        %892 = vmatpush2.bf16.msra.mxu0 %v846
        %893 = vmatprep.subr.bf16.mxu0 0
        %894 = vmatpush2.bf16.msra.mxu0 %v845
        %895 = vmatprep.subr.bf16.mxu0 0
        %896 = vmatpush2.bf16.msra.mxu0 %v844
        %897 = vmatprep.subr.bf16.mxu0 0
        %898 = vmatpush2.bf16.msra.mxu0 %v843
        %899 = vmatprep.mubr.bf16.mxu0 %v731
        %900 = vmatmul.mubr.bf16.gmra.mxu0 %v730
        %v901 = vpop.f32.mrf.mxu0
        %v902 = vadd.f32 %v769, %v901
        %v903 = vpop.f32.mrf.mxu0
        %v904 = vpop.f32.mrf.mxu0
        %v905 = vpop.f32.mrf.mxu0
        %906 = vdwg.mxu0
        %v907 = vadd.f32 %v569, %v902
        %908 = vadd.xlane.f32.xlu0 %v907
        %v909 = vpop.xlane.xlu0 %908
        %v910 = vmul.f32 %v909, %v544
        %v911 = vsub.f32 %v907, %v910
        %v912 = vmul.f32 %v911, %v911
        %913 = vadd.xlane.f32.xlu0 %v912
        %v914 = vpop.xlane.xlu0 %913
        %v915 = vmul.f32 %v914, %v544
        %v916 = vadd.f32 %v915, 1e-12
        %v917 = vrsqrt.pop %v916
        %v918 = vmul.f32 %v911, %v917
        %v919 = vld [vmem:[%s10] sm:$0x1]
        %v921 = vlaneseq
        %v922 = vshrl.u32 %v921, 7
        %v923 = vsub.s32 0, %v922
        %v924 = vrot.slane %v919, %v923
        %v926 = vmul.f32 %v918, %v924
        %v927 = vld [vmem:[%s11] sm:$0x1]
        %v929 = vlaneseq
        %v930 = vshrl.u32 %v929, 7
        %v931 = vsub.s32 0, %v930
        %v932 = vrot.slane %v927, %v931
        %v934 = vadd.f32 %v926, %v932
        %935 = vst [vmem:[%s417] sm:$0xff] %v934
        %s936 = sand.u32 %s296, 1
        %s937 = scalar_lea.sflag [#allocation3], %s936
        %s938 = sand.u32 %s296, 1
        %s939 = smul.addr %s938, 8
        %s940 = scalar_lea.vmem [#allocation2], %s939
        // Predicated region
        $region69: #{encoder_forward.5} parent=67 // pred_check
          %p941 = pneg %p306
        $region70: #{encoder_forward.5} parent=67 // pred_check_branch
          %943 = sbr.rel (%p941) target = $region72
        $region71: #{encoder_forward.5} parent=67 // pred_region
          %s945 = ssub.s32 128, 128
          %946 = vsyncadd %s937, %s945
          %s947 = smul.addr %s26, 128
          %s948 = scalar_lea.hbm %s12, %s947
          %s950 = sshll.u32 %s940, 4
          %s951 = int_to_ptr.vmem [resolvable:$true] %s950
          %953 = dma.vmem_to_hbm [thread:$0]  %s951, 128, %s948, %s937
        $region72: #{encoder_forward.5} parent=67 // pred_fallthru
          _
      $region68: #{encoder_forward.5} parent=5 // pred_fallthru
        _
      %p954 = scmp.le.s32.totalorder 2, %s21
      // Predicated region
      $region73: #{encoder_forward.5} parent=5 // pred_check
        %p955 = pneg %p954
      $region74: #{encoder_forward.5} parent=5 // pred_check_branch
        %957 = sbr.rel (%p955) target = $region76
      $region75: #{encoder_forward.5} parent=5 // pred_region
        %s958 = ssub.s32 %s21, 2
        // Predicated region
        $region77: #{encoder_forward.5} parent=75 // pred_check
          %p959 = pneg %p312
        $region78: #{encoder_forward.5} parent=75 // pred_check_branch
          %961 = sbr.rel (%p959) target = $region80
        $region79: #{encoder_forward.5} parent=75 // pred_region
          %s962 = sand.u32 %s297, 1
          %s963 = scalar_lea.sflag [#allocation3], %s962
          %s964 = sand.u32 %s297, 1
          %s965 = smul.addr %s964, 8
          %s966 = scalar_lea.vmem [#allocation2], %s965
          %967 = dma.done %s963, 128
        $region80: #{encoder_forward.5} parent=75 // pred_fallthru
          _
      $region76: #{encoder_forward.5} parent=5 // pred_fallthru
        _
    $region6: #{encoder_forward.5} parent=1 // loop_footer
      %s25 = sadd.s32 1, %s21
    $region7: #{encoder_forward.5} parent=1 // loop_footer_branch
      %20 = sbr.rel target = $region3
    $region8: #{encoder_forward.5} parent=1 // loop_exit
      _
    %968 = vsyncpa [#allocation3], 1
    %s969 = scalar_lea.sflag [#allocation3], 1
    %970 = vsyncpa %s969, 1

// kernel: encoder_forward.4
$region0: #{encoder_forward.4}
  #allocation0 [shape = 'u32[]', space=smem, size = 0x4, offset = 0x4, fixed_abs, tag = 'smem constant byte address 0x4 - core index']
  #allocation1 [shape = 'u32[144,128]{1,0:T(1,128)}', space=vmem, size = 0x12000, scoped, tag = 'internal scratch']
  %s0 = inlined_call_operand.vmem [shape: f32[2,16,8,8], index: 0, kind: input, shape index: {}]
  %s1 = inlined_call_operand.vmem [shape: f32[2,16,8,8], index: 1, kind: input, shape index: {}]
  %s2 = inlined_call_operand.vmem [shape: f32[2,16,8,8], index: 2, kind: input, shape index: {}]
  %s3 = inlined_call_operand.vmem [shape: f32[2,16,8,8], index: 3, kind: output, shape index: {}]
  %s4 = sld [smem:[#allocation0]]
  $region45: #{encoder_forward.4} parent=0
    _
  %s6 = ssub.s32 1, %s4
  %s7 = scalar_select 0, %s6, %s4
  loop: start=0, step=1, limit=4
  $region2: #{encoder_forward.4} parent=0 // loop_pre_header
    _
  $region3: #{encoder_forward.4} parent=0 // loop_header
    %s9 = sphi 0, %s13
    %p10 = scmp.ge.s32.totalorder %s9, 4
    %s19 = sphi 0, %s21
    %s22 = sphi 0, %s19
    %s23 = sphi 0, %s22
    %s39 = sphi 0, %s23
    %s45 = sphi 0, %s47
    %s48 = sphi 0, %s45
    %s49 = sphi 0, %s48
    %s65 = sphi 0, %s49
    %s71 = sphi 0, %s73
    %s74 = sphi 0, %s71
    %s75 = sphi 0, %s74
    %s91 = sphi 0, %s75
    %s97 = sphi 0, %s99
    %s100 = sphi 0, %s97
    %s101 = sphi 0, %s100
    %s117 = sphi 0, %s101
  $region4: #{encoder_forward.4} parent=0 // loop_header_branch
    %12 = sbr.rel (%p10) target = $region8
  $region5: #{encoder_forward.4} parent=0 // loop_body
    %s14 = ssub.s32 %s9, 1
    %s15 = ssub.s32 %s9, 2
    %s16 = sadd.s32 %s9, 1
    %s17 = ssub.s32 %s9, %s16
    %p18 = scmp.eq.s32.totalorder %s17, 0
    %s20 = sadd.s32 %s19, 1
    %s21 = scalar_select %p18, %s19, %s20
    %p24 = pneg %p18
    %p25 = scmp.eq.s32.totalorder %s9, 1
    %p26 = por %p24, %p25
    %p27 = scmp.ne.s32.totalorder %s19, %s22
    %p28 = scmp.eq.s32.totalorder %s9, 0
    %p29 = por %p27, %p28
    %p30 = scmp.ne.s32.totalorder %s19, %s22
    %p31 = scmp.eq.s32.totalorder %s14, 1
    %p32 = por %p30, %p31
    %p33 = scmp.ne.s32.totalorder %s22, %s23
    %p34 = scmp.eq.s32.totalorder %s14, 0
    %p35 = por %p33, %p34
    %p36 = scmp.ne.s32.totalorder %s22, %s23
    %p37 = scmp.eq.s32.totalorder %s15, 1
    %p38 = por %p36, %p37
    %p40 = scmp.ne.s32.totalorder %s23, %s39
    %p41 = scmp.eq.s32.totalorder %s15, 0
    %p42 = por %p40, %p41
    %s43 = ssub.s32 %s9, %s16
    %p44 = scmp.eq.s32.totalorder %s43, 0
    %s46 = sadd.s32 %s45, 1
    %s47 = scalar_select %p44, %s45, %s46
    %p50 = pneg %p44
    %p51 = scmp.eq.s32.totalorder %s9, 1
    %p52 = por %p50, %p51
    %p53 = scmp.ne.s32.totalorder %s45, %s48
    %p54 = scmp.eq.s32.totalorder %s9, 0
    %p55 = por %p53, %p54
    %p56 = scmp.ne.s32.totalorder %s45, %s48
    %p57 = scmp.eq.s32.totalorder %s14, 1
    %p58 = por %p56, %p57
    %p59 = scmp.ne.s32.totalorder %s48, %s49
    %p60 = scmp.eq.s32.totalorder %s14, 0
    %p61 = por %p59, %p60
    %p62 = scmp.ne.s32.totalorder %s48, %s49
    %p63 = scmp.eq.s32.totalorder %s15, 1
    %p64 = por %p62, %p63
    %p66 = scmp.ne.s32.totalorder %s49, %s65
    %p67 = scmp.eq.s32.totalorder %s15, 0
    %p68 = por %p66, %p67
    %s69 = ssub.s32 %s9, %s16
    %p70 = scmp.eq.s32.totalorder %s69, 0
    %s72 = sadd.s32 %s71, 1
    %s73 = scalar_select %p70, %s71, %s72
    %p76 = pneg %p70
    %p77 = scmp.eq.s32.totalorder %s9, 1
    %p78 = por %p76, %p77
    %p79 = scmp.ne.s32.totalorder %s71, %s74
    %p80 = scmp.eq.s32.totalorder %s9, 0
    %p81 = por %p79, %p80
    %p82 = scmp.ne.s32.totalorder %s71, %s74
    %p83 = scmp.eq.s32.totalorder %s14, 1
    %p84 = por %p82, %p83
    %p85 = scmp.ne.s32.totalorder %s74, %s75
    %p86 = scmp.eq.s32.totalorder %s14, 0
    %p87 = por %p85, %p86
    %p88 = scmp.ne.s32.totalorder %s74, %s75
    %p89 = scmp.eq.s32.totalorder %s15, 1
    %p90 = por %p88, %p89
    %p92 = scmp.ne.s32.totalorder %s75, %s91
    %p93 = scmp.eq.s32.totalorder %s15, 0
    %p94 = por %p92, %p93
    %s95 = ssub.s32 %s9, %s16
    %p96 = scmp.eq.s32.totalorder %s95, 0
    %s98 = sadd.s32 %s97, 1
    %s99 = scalar_select %p96, %s97, %s98
    %p102 = pneg %p96
    %p103 = scmp.eq.s32.totalorder %s9, 1
    %p104 = por %p102, %p103
    %p105 = scmp.ne.s32.totalorder %s97, %s100
    %p106 = scmp.eq.s32.totalorder %s9, 0
    %p107 = por %p105, %p106
    %p108 = scmp.ne.s32.totalorder %s97, %s100
    %p109 = scmp.eq.s32.totalorder %s14, 1
    %p110 = por %p108, %p109
    %p111 = scmp.ne.s32.totalorder %s100, %s101
    %p112 = scmp.eq.s32.totalorder %s14, 0
    %p113 = por %p111, %p112
    %p114 = scmp.ne.s32.totalorder %s100, %s101
    %p115 = scmp.eq.s32.totalorder %s15, 1
    %p116 = por %p114, %p115
    %p118 = scmp.ne.s32.totalorder %s101, %s117
    %p119 = scmp.eq.s32.totalorder %s15, 0
    %p120 = por %p118, %p119
    %p121 = scmp.le.s32.totalorder 1, %s9
    %p122 = scmp.lt.s32.totalorder %s9, 3
    %p123 = pnand %p121, %p122
    %p124 = pneg %p123
    // Predicated region
    $region9: #{encoder_forward.4} parent=5 // pred_check
      _
    $region10: #{encoder_forward.4} parent=5 // pred_check_branch
      %126 = sbr.rel (%p123) target = $region12
    $region11: #{encoder_forward.4} parent=5 // pred_region
      %s127 = ssub.s32 %s9, 1
    $region12: #{encoder_forward.4} parent=5 // pred_fallthru
      _
    %p128 = scmp.lt.s32.totalorder %s9, 2
    // Predicated region
    $region13: #{encoder_forward.4} parent=5 // pred_check
      %p129 = pneg %p128
    $region14: #{encoder_forward.4} parent=5 // pred_check_branch
      %131 = sbr.rel (%p129) target = $region16
    $region15: #{encoder_forward.4} parent=5 // pred_region
      // Predicated region
      $region17: #{encoder_forward.4} parent=15 // pred_check
        %p132 = pneg %p29
      $region18: #{encoder_forward.4} parent=15 // pred_check_branch
        %134 = sbr.rel (%p132) target = $region20
      $region19: #{encoder_forward.4} parent=15 // pred_region
        %p135 = scmp.lt.s32.totalorder %s9, 1
        %s136 = scalar_select %p135, %s9, 1
        %s137 = smul.addr %s136, 16
        %s138 = smul.addr %s137, 8
        %s139 = scalar_lea.vmem %s0, %s138
      $region20: #{encoder_forward.4} parent=15 // pred_fallthru
        _
      // Predicated region
      $region21: #{encoder_forward.4} parent=15 // pred_check
        %p140 = pneg %p55
      $region22: #{encoder_forward.4} parent=15 // pred_check_branch
        %142 = sbr.rel (%p140) target = $region24
      $region23: #{encoder_forward.4} parent=15 // pred_region
        %p143 = scmp.lt.s32.totalorder %s9, 1
        %s144 = scalar_select %p143, %s9, 1
        %s145 = smul.addr %s144, 16
        %s146 = smul.addr %s145, 8
        %s147 = scalar_lea.vmem %s1, %s146
      $region24: #{encoder_forward.4} parent=15 // pred_fallthru
        _
      // Predicated region
      $region25: #{encoder_forward.4} parent=15 // pred_check
        %p148 = pneg %p81
      $region26: #{encoder_forward.4} parent=15 // pred_check_branch
        %150 = sbr.rel (%p148) target = $region28
      $region27: #{encoder_forward.4} parent=15 // pred_region
        %p151 = scmp.lt.s32.totalorder %s9, 1
        %s152 = scalar_select %p151, %s9, 1
        %s153 = smul.addr %s152, 16
        %s154 = smul.addr %s153, 8
        %s155 = scalar_lea.vmem %s2, %s154
      $region28: #{encoder_forward.4} parent=15 // pred_fallthru
        _
    $region16: #{encoder_forward.4} parent=5 // pred_fallthru
      _
    %p156 = scmp.le.s32.totalorder 1, %s9
    %p157 = scmp.lt.s32.totalorder %s9, 3
    %p158 = pnand %p156, %p157
    %p159 = pneg %p158
    // Predicated region
    $region29: #{encoder_forward.4} parent=5 // pred_check
      _
    $region30: #{encoder_forward.4} parent=5 // pred_check_branch
      %161 = sbr.rel (%p158) target = $region32
    $region31: #{encoder_forward.4} parent=5 // pred_region
      %s162 = ssub.s32 %s9, 1
      %p163 = scmp.lt.s32.totalorder %s14, 1
      %s164 = scalar_select %p163, %s14, 1
      %s165 = smul.addr %s164, 16
      %s166 = smul.addr %s165, 8
      %s167 = scalar_lea.vmem %s0, %s166
      %p168 = pneg %p35
      %p169 = pneg %p32
      %p170 = scmp.lt.s32.totalorder %s14, 1
      %s171 = scalar_select %p170, %s14, 1
      %s172 = smul.addr %s171, 16
      %s173 = smul.addr %s172, 8
      %s174 = scalar_lea.vmem %s1, %s173
      %p175 = pneg %p61
      %p176 = pneg %p58
      %p177 = scmp.lt.s32.totalorder %s14, 1
      %s178 = scalar_select %p177, %s14, 1
      %s179 = smul.addr %s178, 16
      %s180 = smul.addr %s179, 8
      %s181 = scalar_lea.vmem %s2, %s180
      %p182 = pneg %p87
      %p183 = pneg %p84
      %p184 = pneg %p113
      %p185 = pneg %p110
      %p186 = scmp.lt.s32.totalorder %s14, 1
      %s187 = scalar_select %p186, %s14, 1
      %s188 = smul.addr %s187, 16
      %s189 = smul.addr %s188, 8
      %s190 = scalar_lea.vmem %s3, %s189
      %p191 = scmp.lt.s32.totalorder %s14, 1
      %s192 = scalar_select %p191, %s14, 1
      %s193 = smul.addr %s192, 16
      %s194 = smul.addr %s193, 8
      %s195 = scalar_lea.vmem %s0, %s194
      %p196 = scmp.lt.s32.totalorder %s14, 1
      %s197 = scalar_select %p196, %s14, 1
      %s198 = smul.addr %s197, 16
      %s199 = smul.addr %s198, 8
      %s200 = scalar_lea.vmem %s1, %s199
      %p201 = scmp.lt.s32.totalorder %s14, 1
      %s202 = scalar_select %p201, %s14, 1
      %s203 = smul.addr %s202, 16
      %s204 = smul.addr %s203, 8
      %s205 = scalar_lea.vmem %s2, %s204
      %p206 = scmp.lt.s32.totalorder %s14, 1
      %s207 = scalar_select %p206, %s14, 1
      %s208 = smul.addr %s207, 16
      %s209 = smul.addr %s208, 8
      %s210 = scalar_lea.vmem %s3, %s209
      %v212 = vld [vmem:[%s195] sm:$0xff]
      %v213 = vld [vmem:[%s195 + $0x8] sm:$0xff]
      %v214 = vld [vmem:[%s195 + $0x10] sm:$0xff]
      %v215 = vld [vmem:[%s195 + $0x18] sm:$0xff]
      %v216 = vld [vmem:[%s195 + $0x20] sm:$0xff]
      %v217 = vld [vmem:[%s195 + $0x28] sm:$0xff]
      %v218 = vld [vmem:[%s195 + $0x30] sm:$0xff]
      %v219 = vld [vmem:[%s195 + $0x38] sm:$0xff]
      %v220 = vld [vmem:[%s195 + $0x40] sm:$0xff]
      %v221 = vld [vmem:[%s195 + $0x48] sm:$0xff]
      %v222 = vld [vmem:[%s195 + $0x50] sm:$0xff]
      %v223 = vld [vmem:[%s195 + $0x58] sm:$0xff]
      %v224 = vld [vmem:[%s195 + $0x60] sm:$0xff]
      %v225 = vld [vmem:[%s195 + $0x68] sm:$0xff]
      %v226 = vld [vmem:[%s195 + $0x70] sm:$0xff]
      %v227 = vld [vmem:[%s195 + $0x78] sm:$0xff]
      %v228 = vpack.c.bf16 %v212, %v212
      %v229 = vpack.c.bf16 %v213, %v213
      %v230 = vpack.c.bf16 %v214, %v214
      %v231 = vpack.c.bf16 %v215, %v215
      %v232 = vpack.c.bf16 %v216, %v216
      %v233 = vpack.c.bf16 %v217, %v217
      %v234 = vpack.c.bf16 %v218, %v218
      %v235 = vpack.c.bf16 %v219, %v219
      %v236 = vpack.c.bf16 %v220, %v220
      %v237 = vpack.c.bf16 %v221, %v221
      %v238 = vpack.c.bf16 %v222, %v222
      %v239 = vpack.c.bf16 %v223, %v223
      %v240 = vpack.c.bf16 %v224, %v224
      %v241 = vpack.c.bf16 %v225, %v225
      %v242 = vpack.c.bf16 %v226, %v226
      %v243 = vpack.c.bf16 %v227, %v227
      %v244 = vld [vmem:[%s200] sm:$0xff]
      %v245 = vld [vmem:[%s200 + $0x8] sm:$0xff]
      %v246 = vld [vmem:[%s200 + $0x10] sm:$0xff]
      %v247 = vld [vmem:[%s200 + $0x18] sm:$0xff]
      %v248 = vld [vmem:[%s200 + $0x20] sm:$0xff]
      %v249 = vld [vmem:[%s200 + $0x28] sm:$0xff]
      %v250 = vld [vmem:[%s200 + $0x30] sm:$0xff]
      %v251 = vld [vmem:[%s200 + $0x38] sm:$0xff]
      %v252 = vld [vmem:[%s200 + $0x40] sm:$0xff]
      %v253 = vld [vmem:[%s200 + $0x48] sm:$0xff]
      %v254 = vld [vmem:[%s200 + $0x50] sm:$0xff]
      %v255 = vld [vmem:[%s200 + $0x58] sm:$0xff]
      %v256 = vld [vmem:[%s200 + $0x60] sm:$0xff]
      %v257 = vld [vmem:[%s200 + $0x68] sm:$0xff]
      %v258 = vld [vmem:[%s200 + $0x70] sm:$0xff]
      %v259 = vld [vmem:[%s200 + $0x78] sm:$0xff]
      %v260 = vpack.c.bf16 %v244, %v244
      %v261 = vpack.c.bf16 %v245, %v245
      %v262 = vpack.c.bf16 %v246, %v246
      %v263 = vpack.c.bf16 %v247, %v247
      %v264 = vpack.c.bf16 %v248, %v248
      %v265 = vpack.c.bf16 %v249, %v249
      %v266 = vpack.c.bf16 %v250, %v250
      %v267 = vpack.c.bf16 %v251, %v251
      %v268 = vpack.c.bf16 %v252, %v252
      %v269 = vpack.c.bf16 %v253, %v253
      %v270 = vpack.c.bf16 %v254, %v254
      %v271 = vpack.c.bf16 %v255, %v255
      %v272 = vpack.c.bf16 %v256, %v256
      %v273 = vpack.c.bf16 %v257, %v257
      %v274 = vpack.c.bf16 %v258, %v258
      %v275 = vpack.c.bf16 %v259, %v259
      %v276 = vld [vmem:[%s205] sm:$0xff]
      %v277 = vld [vmem:[%s205 + $0x8] sm:$0xff]
      %v278 = vld [vmem:[%s205 + $0x10] sm:$0xff]
      %v279 = vld [vmem:[%s205 + $0x18] sm:$0xff]
      %v280 = vld [vmem:[%s205 + $0x20] sm:$0xff]
      %v281 = vld [vmem:[%s205 + $0x28] sm:$0xff]
      %v282 = vld [vmem:[%s205 + $0x30] sm:$0xff]
      %v283 = vld [vmem:[%s205 + $0x38] sm:$0xff]
      %v284 = vld [vmem:[%s205 + $0x40] sm:$0xff]
      %v285 = vld [vmem:[%s205 + $0x48] sm:$0xff]
      %v286 = vld [vmem:[%s205 + $0x50] sm:$0xff]
      %v287 = vld [vmem:[%s205 + $0x58] sm:$0xff]
      %v288 = vld [vmem:[%s205 + $0x60] sm:$0xff]
      %v289 = vld [vmem:[%s205 + $0x68] sm:$0xff]
      %v290 = vld [vmem:[%s205 + $0x70] sm:$0xff]
      %v291 = vld [vmem:[%s205 + $0x78] sm:$0xff]
      %v292 = vpack.c.bf16 %v276, %v276
      %v293 = vpack.c.bf16 %v277, %v277
      %v294 = vpack.c.bf16 %v278, %v278
      %v295 = vpack.c.bf16 %v279, %v279
      %v296 = vpack.c.bf16 %v280, %v280
      %v297 = vpack.c.bf16 %v281, %v281
      %v298 = vpack.c.bf16 %v282, %v282
      %v299 = vpack.c.bf16 %v283, %v283
      %v300 = vpack.c.bf16 %v284, %v284
      %v301 = vpack.c.bf16 %v285, %v285
      %v302 = vpack.c.bf16 %v286, %v286
      %v303 = vpack.c.bf16 %v287, %v287
      %v304 = vpack.c.bf16 %v288, %v288
      %v305 = vpack.c.bf16 %v289, %v289
      %v306 = vpack.c.bf16 %v290, %v290
      %v307 = vpack.c.bf16 %v291, %v291
      %vm308 = vcmask 64512
      %v310 = vsel %vm308, %v228, 0
      %v313 = vsel %vm308, %v260, 0
      %315 = vmatprep.subr.bf16.mxu0 0
      %316 = vmatpush1.bf16.xpose.msra.mxu0 0
      %317 = vmatprep.subr.bf16.mxu0 0
      %318 = vmatpush1.bf16.xpose.msra.mxu0 0
      %319 = vmatprep.subr.bf16.mxu0 0
      %320 = vmatpush1.bf16.xpose.msra.mxu0 0
      %321 = vmatprep.subr.bf16.mxu0 0
      %322 = vmatpush1.bf16.xpose.msra.mxu0 0
      %323 = vmatprep.subr.bf16.mxu0 0
      %324 = vmatpush1.bf16.xpose.msra.mxu0 0
      %325 = vmatprep.subr.bf16.mxu0 0
      %326 = vmatpush1.bf16.xpose.msra.mxu0 0
      %327 = vmatprep.subr.bf16.mxu0 0
      %328 = vmatpush1.bf16.xpose.msra.mxu0 0
      %329 = vmatprep.subr.bf16.mxu0 0
      %330 = vmatpush1.bf16.xpose.msra.mxu0 %v313
      %331 = vmatprep.subr.bf16.mxu0 0
      %332 = vmatpush2.bf16.xpose.msra.mxu0 0
      %333 = vmatprep.subr.bf16.mxu0 0
      %334 = vmatpush2.bf16.xpose.msra.mxu0 0
      %335 = vmatprep.subr.bf16.mxu0 0
      %336 = vmatpush2.bf16.xpose.msra.mxu0 0
      %337 = vmatprep.subr.bf16.mxu0 0
      %338 = vmatpush2.bf16.xpose.msra.mxu0 0
      %339 = vmatprep.subr.bf16.mxu0 0
      %340 = vmatpush2.bf16.xpose.msra.mxu0 0
      %341 = vmatprep.subr.bf16.mxu0 0
      %342 = vmatpush2.bf16.xpose.msra.mxu0 0
      %343 = vmatprep.subr.bf16.mxu0 0
      %344 = vmatpush2.bf16.xpose.msra.mxu0 0
      %345 = vmatprep.subr.bf16.mxu0 0
      %346 = vmatpush2.bf16.xpose.msra.mxu0 0
      %347 = vmatprep.mubr.bf16.mxu0 0
      %348 = vmatmul.mubr.bf16.gmra.mxu0 %v310
      %v349 = vpop.f32.mrf.mxu0
      %v350 = vadd.f32 0.0, %v349
      %v351 = vpop.f32.mrf.mxu0
      %v352 = vpop.f32.mrf.mxu0
      %v353 = vpop.f32.mrf.mxu0
      %354 = vdwg.mxu0
      %v356 = vsel %vm308, %v229, 0
      %v359 = vsel %vm308, %v261, 0
      %361 = vmatprep.subr.bf16.mxu0 0
      %362 = vmatpush1.bf16.xpose.msra.mxu0 0
      %363 = vmatprep.subr.bf16.mxu0 0
      %364 = vmatpush1.bf16.xpose.msra.mxu0 0
      %365 = vmatprep.subr.bf16.mxu0 0
      %366 = vmatpush1.bf16.xpose.msra.mxu0 0
      %367 = vmatprep.subr.bf16.mxu0 0
      %368 = vmatpush1.bf16.xpose.msra.mxu0 0
      %369 = vmatprep.subr.bf16.mxu0 0
      %370 = vmatpush1.bf16.xpose.msra.mxu0 0
      %371 = vmatprep.subr.bf16.mxu0 0
      %372 = vmatpush1.bf16.xpose.msra.mxu0 0
      %373 = vmatprep.subr.bf16.mxu0 0
      %374 = vmatpush1.bf16.xpose.msra.mxu0 0
      %375 = vmatprep.subr.bf16.mxu0 0
      %376 = vmatpush1.bf16.xpose.msra.mxu0 %v359
      %377 = vmatprep.subr.bf16.mxu0 0
      %378 = vmatpush2.bf16.xpose.msra.mxu0 0
      %379 = vmatprep.subr.bf16.mxu0 0
      %380 = vmatpush2.bf16.xpose.msra.mxu0 0
      %381 = vmatprep.subr.bf16.mxu0 0
      %382 = vmatpush2.bf16.xpose.msra.mxu0 0
      %383 = vmatprep.subr.bf16.mxu0 0
      %384 = vmatpush2.bf16.xpose.msra.mxu0 0
      %385 = vmatprep.subr.bf16.mxu0 0
      %386 = vmatpush2.bf16.xpose.msra.mxu0 0
      %387 = vmatprep.subr.bf16.mxu0 0
      %388 = vmatpush2.bf16.xpose.msra.mxu0 0
      %389 = vmatprep.subr.bf16.mxu0 0
      %390 = vmatpush2.bf16.xpose.msra.mxu0 0
      %391 = vmatprep.subr.bf16.mxu0 0
      %392 = vmatpush2.bf16.xpose.msra.mxu0 0
      %393 = vmatprep.mubr.bf16.mxu0 0
      %394 = vmatmul.mubr.bf16.gmra.mxu0 %v356
      %v395 = vpop.f32.mrf.mxu0
      %v396 = vadd.f32 0.0, %v395
      %v397 = vpop.f32.mrf.mxu0
      %v398 = vpop.f32.mrf.mxu0
      %v399 = vpop.f32.mrf.mxu0
      %400 = vdwg.mxu0
      %v402 = vsel %vm308, %v230, 0
      %v405 = vsel %vm308, %v262, 0
      %407 = vmatprep.subr.bf16.mxu0 0
      %408 = vmatpush1.bf16.xpose.msra.mxu0 0
      %409 = vmatprep.subr.bf16.mxu0 0
      %410 = vmatpush1.bf16.xpose.msra.mxu0 0
      %411 = vmatprep.subr.bf16.mxu0 0
      %412 = vmatpush1.bf16.xpose.msra.mxu0 0
      %413 = vmatprep.subr.bf16.mxu0 0
      %414 = vmatpush1.bf16.xpose.msra.mxu0 0
      %415 = vmatprep.subr.bf16.mxu0 0
      %416 = vmatpush1.bf16.xpose.msra.mxu0 0
      %417 = vmatprep.subr.bf16.mxu0 0
      %418 = vmatpush1.bf16.xpose.msra.mxu0 0
      %419 = vmatprep.subr.bf16.mxu0 0
      %420 = vmatpush1.bf16.xpose.msra.mxu0 0
      %421 = vmatprep.subr.bf16.mxu0 0
      %422 = vmatpush1.bf16.xpose.msra.mxu0 %v405
      %423 = vmatprep.subr.bf16.mxu0 0
      %424 = vmatpush2.bf16.xpose.msra.mxu0 0
      %425 = vmatprep.subr.bf16.mxu0 0
      %426 = vmatpush2.bf16.xpose.msra.mxu0 0
      %427 = vmatprep.subr.bf16.mxu0 0
      %428 = vmatpush2.bf16.xpose.msra.mxu0 0
      %429 = vmatprep.subr.bf16.mxu0 0
      %430 = vmatpush2.bf16.xpose.msra.mxu0 0
      %431 = vmatprep.subr.bf16.mxu0 0
      %432 = vmatpush2.bf16.xpose.msra.mxu0 0
      %433 = vmatprep.subr.bf16.mxu0 0
      %434 = vmatpush2.bf16.xpose.msra.mxu0 0
      %435 = vmatprep.subr.bf16.mxu0 0
      %436 = vmatpush2.bf16.xpose.msra.mxu0 0
      %437 = vmatprep.subr.bf16.mxu0 0
      %438 = vmatpush2.bf16.xpose.msra.mxu0 0
      %439 = vmatprep.mubr.bf16.mxu0 0
      %440 = vmatmul.mubr.bf16.gmra.mxu0 %v402
      %v441 = vpop.f32.mrf.mxu0
      %v442 = vadd.f32 0.0, %v441
      %v443 = vpop.f32.mrf.mxu0
      %v444 = vpop.f32.mrf.mxu0
      %v445 = vpop.f32.mrf.mxu0
      %446 = vdwg.mxu0
      %v448 = vsel %vm308, %v231, 0
      %v451 = vsel %vm308, %v263, 0
      %453 = vmatprep.subr.bf16.mxu0 0
      %454 = vmatpush1.bf16.xpose.msra.mxu0 0
      %455 = vmatprep.subr.bf16.mxu0 0
      %456 = vmatpush1.bf16.xpose.msra.mxu0 0
      %457 = vmatprep.subr.bf16.mxu0 0
      %458 = vmatpush1.bf16.xpose.msra.mxu0 0
      %459 = vmatprep.subr.bf16.mxu0 0
      %460 = vmatpush1.bf16.xpose.msra.mxu0 0
      %461 = vmatprep.subr.bf16.mxu0 0
      %462 = vmatpush1.bf16.xpose.msra.mxu0 0
      %463 = vmatprep.subr.bf16.mxu0 0
      %464 = vmatpush1.bf16.xpose.msra.mxu0 0
      %465 = vmatprep.subr.bf16.mxu0 0
      %466 = vmatpush1.bf16.xpose.msra.mxu0 0
      %467 = vmatprep.subr.bf16.mxu0 0
      %468 = vmatpush1.bf16.xpose.msra.mxu0 %v451
      %469 = vmatprep.subr.bf16.mxu0 0
      %470 = vmatpush2.bf16.xpose.msra.mxu0 0
      %471 = vmatprep.subr.bf16.mxu0 0
      %472 = vmatpush2.bf16.xpose.msra.mxu0 0
      %473 = vmatprep.subr.bf16.mxu0 0
      %474 = vmatpush2.bf16.xpose.msra.mxu0 0
      %475 = vmatprep.subr.bf16.mxu0 0
      %476 = vmatpush2.bf16.xpose.msra.mxu0 0
      %477 = vmatprep.subr.bf16.mxu0 0
      %478 = vmatpush2.bf16.xpose.msra.mxu0 0
      %479 = vmatprep.subr.bf16.mxu0 0
      %480 = vmatpush2.bf16.xpose.msra.mxu0 0
      %481 = vmatprep.subr.bf16.mxu0 0
      %482 = vmatpush2.bf16.xpose.msra.mxu0 0
      %483 = vmatprep.subr.bf16.mxu0 0
      %484 = vmatpush2.bf16.xpose.msra.mxu0 0
      %485 = vmatprep.mubr.bf16.mxu0 0
      %486 = vmatmul.mubr.bf16.gmra.mxu0 %v448
      %v487 = vpop.f32.mrf.mxu0
      %v488 = vadd.f32 0.0, %v487
      %v489 = vpop.f32.mrf.mxu0
      %v490 = vpop.f32.mrf.mxu0
      %v491 = vpop.f32.mrf.mxu0
      %492 = vdwg.mxu0
      %v494 = vsel %vm308, %v232, 0
      %v497 = vsel %vm308, %v264, 0
      %499 = vmatprep.subr.bf16.mxu0 0
      %500 = vmatpush1.bf16.xpose.msra.mxu0 0
      %501 = vmatprep.subr.bf16.mxu0 0
      %502 = vmatpush1.bf16.xpose.msra.mxu0 0
      %503 = vmatprep.subr.bf16.mxu0 0
      %504 = vmatpush1.bf16.xpose.msra.mxu0 0
      %505 = vmatprep.subr.bf16.mxu0 0
      %506 = vmatpush1.bf16.xpose.msra.mxu0 0
      %507 = vmatprep.subr.bf16.mxu0 0
      %508 = vmatpush1.bf16.xpose.msra.mxu0 0
      %509 = vmatprep.subr.bf16.mxu0 0
      %510 = vmatpush1.bf16.xpose.msra.mxu0 0
      %511 = vmatprep.subr.bf16.mxu0 0
      %512 = vmatpush1.bf16.xpose.msra.mxu0 0
      %513 = vmatprep.subr.bf16.mxu0 0
      %514 = vmatpush1.bf16.xpose.msra.mxu0 %v497
      %515 = vmatprep.subr.bf16.mxu0 0
      %516 = vmatpush2.bf16.xpose.msra.mxu0 0
      %517 = vmatprep.subr.bf16.mxu0 0
      %518 = vmatpush2.bf16.xpose.msra.mxu0 0
      %519 = vmatprep.subr.bf16.mxu0 0
      %520 = vmatpush2.bf16.xpose.msra.mxu0 0
      %521 = vmatprep.subr.bf16.mxu0 0
      %522 = vmatpush2.bf16.xpose.msra.mxu0 0
      %523 = vmatprep.subr.bf16.mxu0 0
      %524 = vmatpush2.bf16.xpose.msra.mxu0 0
      %525 = vmatprep.subr.bf16.mxu0 0
      %526 = vmatpush2.bf16.xpose.msra.mxu0 0
      %527 = vmatprep.subr.bf16.mxu0 0
      %528 = vmatpush2.bf16.xpose.msra.mxu0 0
      %529 = vmatprep.subr.bf16.mxu0 0
      %530 = vmatpush2.bf16.xpose.msra.mxu0 0
      %531 = vmatprep.mubr.bf16.mxu0 0
      %532 = vmatmul.mubr.bf16.gmra.mxu0 %v494
      %v533 = vpop.f32.mrf.mxu0
      %v534 = vadd.f32 0.0, %v533
      %v535 = vpop.f32.mrf.mxu0
      %v536 = vpop.f32.mrf.mxu0
      %v537 = vpop.f32.mrf.mxu0
      %538 = vdwg.mxu0
      %v540 = vsel %vm308, %v233, 0
      %v543 = vsel %vm308, %v265, 0
      %545 = vmatprep.subr.bf16.mxu0 0
      %546 = vmatpush1.bf16.xpose.msra.mxu0 0
      %547 = vmatprep.subr.bf16.mxu0 0
      %548 = vmatpush1.bf16.xpose.msra.mxu0 0
      %549 = vmatprep.subr.bf16.mxu0 0
      %550 = vmatpush1.bf16.xpose.msra.mxu0 0
      %551 = vmatprep.subr.bf16.mxu0 0
      %552 = vmatpush1.bf16.xpose.msra.mxu0 0
      %553 = vmatprep.subr.bf16.mxu0 0
      %554 = vmatpush1.bf16.xpose.msra.mxu0 0
      %555 = vmatprep.subr.bf16.mxu0 0
      %556 = vmatpush1.bf16.xpose.msra.mxu0 0
      %557 = vmatprep.subr.bf16.mxu0 0
      %558 = vmatpush1.bf16.xpose.msra.mxu0 0
      %559 = vmatprep.subr.bf16.mxu0 0
      %560 = vmatpush1.bf16.xpose.msra.mxu0 %v543
      %561 = vmatprep.subr.bf16.mxu0 0
      %562 = vmatpush2.bf16.xpose.msra.mxu0 0
      %563 = vmatprep.subr.bf16.mxu0 0
      %564 = vmatpush2.bf16.xpose.msra.mxu0 0
      %565 = vmatprep.subr.bf16.mxu0 0
      %566 = vmatpush2.bf16.xpose.msra.mxu0 0
      %567 = vmatprep.subr.bf16.mxu0 0
      %568 = vmatpush2.bf16.xpose.msra.mxu0 0
      %569 = vmatprep.subr.bf16.mxu0 0
      %570 = vmatpush2.bf16.xpose.msra.mxu0 0
      %571 = vmatprep.subr.bf16.mxu0 0
      %572 = vmatpush2.bf16.xpose.msra.mxu0 0
      %573 = vmatprep.subr.bf16.mxu0 0
      %574 = vmatpush2.bf16.xpose.msra.mxu0 0
      %575 = vmatprep.subr.bf16.mxu0 0
      %576 = vmatpush2.bf16.xpose.msra.mxu0 0
      %577 = vmatprep.mubr.bf16.mxu0 0
      %578 = vmatmul.mubr.bf16.gmra.mxu0 %v540
      %v579 = vpop.f32.mrf.mxu0
      %v580 = vadd.f32 0.0, %v579
      %v581 = vpop.f32.mrf.mxu0
      %v582 = vpop.f32.mrf.mxu0
      %v583 = vpop.f32.mrf.mxu0
      %584 = vdwg.mxu0
      %v586 = vsel %vm308, %v234, 0
      %v589 = vsel %vm308, %v266, 0
      %591 = vmatprep.subr.bf16.mxu0 0
      %592 = vmatpush1.bf16.xpose.msra.mxu0 0
      %593 = vmatprep.subr.bf16.mxu0 0
      %594 = vmatpush1.bf16.xpose.msra.mxu0 0
      %595 = vmatprep.subr.bf16.mxu0 0
      %596 = vmatpush1.bf16.xpose.msra.mxu0 0
      %597 = vmatprep.subr.bf16.mxu0 0
      %598 = vmatpush1.bf16.xpose.msra.mxu0 0
      %599 = vmatprep.subr.bf16.mxu0 0
      %600 = vmatpush1.bf16.xpose.msra.mxu0 0
      %601 = vmatprep.subr.bf16.mxu0 0
      %602 = vmatpush1.bf16.xpose.msra.mxu0 0
      %603 = vmatprep.subr.bf16.mxu0 0
      %604 = vmatpush1.bf16.xpose.msra.mxu0 0
      %605 = vmatprep.subr.bf16.mxu0 0
      %606 = vmatpush1.bf16.xpose.msra.mxu0 %v589
      %607 = vmatprep.subr.bf16.mxu0 0
      %608 = vmatpush2.bf16.xpose.msra.mxu0 0
      %609 = vmatprep.subr.bf16.mxu0 0
      %610 = vmatpush2.bf16.xpose.msra.mxu0 0
      %611 = vmatprep.subr.bf16.mxu0 0
      %612 = vmatpush2.bf16.xpose.msra.mxu0 0
      %613 = vmatprep.subr.bf16.mxu0 0
      %614 = vmatpush2.bf16.xpose.msra.mxu0 0
      %615 = vmatprep.subr.bf16.mxu0 0
      %616 = vmatpush2.bf16.xpose.msra.mxu0 0
      %617 = vmatprep.subr.bf16.mxu0 0
      %618 = vmatpush2.bf16.xpose.msra.mxu0 0
      %619 = vmatprep.subr.bf16.mxu0 0
      %620 = vmatpush2.bf16.xpose.msra.mxu0 0
      %621 = vmatprep.subr.bf16.mxu0 0
      %622 = vmatpush2.bf16.xpose.msra.mxu0 0
      %623 = vmatprep.mubr.bf16.mxu0 0
      %624 = vmatmul.mubr.bf16.gmra.mxu0 %v586
      %v625 = vpop.f32.mrf.mxu0
      %v626 = vadd.f32 0.0, %v625
      %v627 = vpop.f32.mrf.mxu0
      %v628 = vpop.f32.mrf.mxu0
      %v629 = vpop.f32.mrf.mxu0
      %630 = vdwg.mxu0
      %v632 = vsel %vm308, %v235, 0
      %v635 = vsel %vm308, %v267, 0
      %637 = vmatprep.subr.bf16.mxu0 0
      %638 = vmatpush1.bf16.xpose.msra.mxu0 0
      %639 = vmatprep.subr.bf16.mxu0 0
      %640 = vmatpush1.bf16.xpose.msra.mxu0 0
      %641 = vmatprep.subr.bf16.mxu0 0
      %642 = vmatpush1.bf16.xpose.msra.mxu0 0
      %643 = vmatprep.subr.bf16.mxu0 0
      %644 = vmatpush1.bf16.xpose.msra.mxu0 0
      %645 = vmatprep.subr.bf16.mxu0 0
      %646 = vmatpush1.bf16.xpose.msra.mxu0 0
      %647 = vmatprep.subr.bf16.mxu0 0
      %648 = vmatpush1.bf16.xpose.msra.mxu0 0
      %649 = vmatprep.subr.bf16.mxu0 0
      %650 = vmatpush1.bf16.xpose.msra.mxu0 0
      %651 = vmatprep.subr.bf16.mxu0 0
      %652 = vmatpush1.bf16.xpose.msra.mxu0 %v635
      %653 = vmatprep.subr.bf16.mxu0 0
      %654 = vmatpush2.bf16.xpose.msra.mxu0 0
      %655 = vmatprep.subr.bf16.mxu0 0
      %656 = vmatpush2.bf16.xpose.msra.mxu0 0
      %657 = vmatprep.subr.bf16.mxu0 0
      %658 = vmatpush2.bf16.xpose.msra.mxu0 0
      %659 = vmatprep.subr.bf16.mxu0 0
      %660 = vmatpush2.bf16.xpose.msra.mxu0 0
      %661 = vmatprep.subr.bf16.mxu0 0
      %662 = vmatpush2.bf16.xpose.msra.mxu0 0
      %663 = vmatprep.subr.bf16.mxu0 0
      %664 = vmatpush2.bf16.xpose.msra.mxu0 0
      %665 = vmatprep.subr.bf16.mxu0 0
      %666 = vmatpush2.bf16.xpose.msra.mxu0 0
      %667 = vmatprep.subr.bf16.mxu0 0
      %668 = vmatpush2.bf16.xpose.msra.mxu0 0
      %669 = vmatprep.mubr.bf16.mxu0 0
      %670 = vmatmul.mubr.bf16.gmra.mxu0 %v632
      %v671 = vpop.f32.mrf.mxu0
      %v672 = vadd.f32 0.0, %v671
      %v673 = vpop.f32.mrf.mxu0
      %v674 = vpop.f32.mrf.mxu0
      %v675 = vpop.f32.mrf.mxu0
      %676 = vdwg.mxu0
      %v678 = vsel %vm308, %v236, 0
      %v681 = vsel %vm308, %v268, 0
      %683 = vmatprep.subr.bf16.mxu0 0
      %684 = vmatpush1.bf16.xpose.msra.mxu0 0
      %685 = vmatprep.subr.bf16.mxu0 0
      %686 = vmatpush1.bf16.xpose.msra.mxu0 0
      %687 = vmatprep.subr.bf16.mxu0 0
      %688 = vmatpush1.bf16.xpose.msra.mxu0 0
      %689 = vmatprep.subr.bf16.mxu0 0
      %690 = vmatpush1.bf16.xpose.msra.mxu0 0
      %691 = vmatprep.subr.bf16.mxu0 0
      %692 = vmatpush1.bf16.xpose.msra.mxu0 0
      %693 = vmatprep.subr.bf16.mxu0 0
      %694 = vmatpush1.bf16.xpose.msra.mxu0 0
      %695 = vmatprep.subr.bf16.mxu0 0
      %696 = vmatpush1.bf16.xpose.msra.mxu0 0
      %697 = vmatprep.subr.bf16.mxu0 0
      %698 = vmatpush1.bf16.xpose.msra.mxu0 %v681
      %699 = vmatprep.subr.bf16.mxu0 0
      %700 = vmatpush2.bf16.xpose.msra.mxu0 0
      %701 = vmatprep.subr.bf16.mxu0 0
      %702 = vmatpush2.bf16.xpose.msra.mxu0 0
      %703 = vmatprep.subr.bf16.mxu0 0
      %704 = vmatpush2.bf16.xpose.msra.mxu0 0
      %705 = vmatprep.subr.bf16.mxu0 0
      %706 = vmatpush2.bf16.xpose.msra.mxu0 0
      %707 = vmatprep.subr.bf16.mxu0 0
      %708 = vmatpush2.bf16.xpose.msra.mxu0 0
      %709 = vmatprep.subr.bf16.mxu0 0
      %710 = vmatpush2.bf16.xpose.msra.mxu0 0
      %711 = vmatprep.subr.bf16.mxu0 0
      %712 = vmatpush2.bf16.xpose.msra.mxu0 0
      %713 = vmatprep.subr.bf16.mxu0 0
      %714 = vmatpush2.bf16.xpose.msra.mxu0 0
      %715 = vmatprep.mubr.bf16.mxu0 0
      %716 = vmatmul.mubr.bf16.gmra.mxu0 %v678
      %v717 = vpop.f32.mrf.mxu0
      %v718 = vadd.f32 0.0, %v717
      %v719 = vpop.f32.mrf.mxu0
      %v720 = vpop.f32.mrf.mxu0
      %v721 = vpop.f32.mrf.mxu0
      %722 = vdwg.mxu0
      %v724 = vsel %vm308, %v237, 0
      %v727 = vsel %vm308, %v269, 0
      %729 = vmatprep.subr.bf16.mxu0 0
      %730 = vmatpush1.bf16.xpose.msra.mxu0 0
      %731 = vmatprep.subr.bf16.mxu0 0
      %732 = vmatpush1.bf16.xpose.msra.mxu0 0
      %733 = vmatprep.subr.bf16.mxu0 0
      %734 = vmatpush1.bf16.xpose.msra.mxu0 0
      %735 = vmatprep.subr.bf16.mxu0 0
      %736 = vmatpush1.bf16.xpose.msra.mxu0 0
      %737 = vmatprep.subr.bf16.mxu0 0
      %738 = vmatpush1.bf16.xpose.msra.mxu0 0
      %739 = vmatprep.subr.bf16.mxu0 0
      %740 = vmatpush1.bf16.xpose.msra.mxu0 0
      %741 = vmatprep.subr.bf16.mxu0 0
      %742 = vmatpush1.bf16.xpose.msra.mxu0 0
      %743 = vmatprep.subr.bf16.mxu0 0
      %744 = vmatpush1.bf16.xpose.msra.mxu0 %v727
      %745 = vmatprep.subr.bf16.mxu0 0
      %746 = vmatpush2.bf16.xpose.msra.mxu0 0
      %747 = vmatprep.subr.bf16.mxu0 0
      %748 = vmatpush2.bf16.xpose.msra.mxu0 0
      %749 = vmatprep.subr.bf16.mxu0 0
      %750 = vmatpush2.bf16.xpose.msra.mxu0 0
      %751 = vmatprep.subr.bf16.mxu0 0
      %752 = vmatpush2.bf16.xpose.msra.mxu0 0
      %753 = vmatprep.subr.bf16.mxu0 0
      %754 = vmatpush2.bf16.xpose.msra.mxu0 0
      %755 = vmatprep.subr.bf16.mxu0 0
      %756 = vmatpush2.bf16.xpose.msra.mxu0 0
      %757 = vmatprep.subr.bf16.mxu0 0
      %758 = vmatpush2.bf16.xpose.msra.mxu0 0
      %759 = vmatprep.subr.bf16.mxu0 0
      %760 = vmatpush2.bf16.xpose.msra.mxu0 0
      %761 = vmatprep.mubr.bf16.mxu0 0
      %762 = vmatmul.mubr.bf16.gmra.mxu0 %v724
      %v763 = vpop.f32.mrf.mxu0
      %v764 = vadd.f32 0.0, %v763
      %v765 = vpop.f32.mrf.mxu0
      %v766 = vpop.f32.mrf.mxu0
      %v767 = vpop.f32.mrf.mxu0
      %768 = vdwg.mxu0
      %v770 = vsel %vm308, %v238, 0
      %v773 = vsel %vm308, %v270, 0
      %775 = vmatprep.subr.bf16.mxu0 0
      %776 = vmatpush1.bf16.xpose.msra.mxu0 0
      %777 = vmatprep.subr.bf16.mxu0 0
      %778 = vmatpush1.bf16.xpose.msra.mxu0 0
      %779 = vmatprep.subr.bf16.mxu0 0
      %780 = vmatpush1.bf16.xpose.msra.mxu0 0
      %781 = vmatprep.subr.bf16.mxu0 0
      %782 = vmatpush1.bf16.xpose.msra.mxu0 0
      %783 = vmatprep.subr.bf16.mxu0 0
      %784 = vmatpush1.bf16.xpose.msra.mxu0 0
      %785 = vmatprep.subr.bf16.mxu0 0
      %786 = vmatpush1.bf16.xpose.msra.mxu0 0
      %787 = vmatprep.subr.bf16.mxu0 0
      %788 = vmatpush1.bf16.xpose.msra.mxu0 0
      %789 = vmatprep.subr.bf16.mxu0 0
      %790 = vmatpush1.bf16.xpose.msra.mxu0 %v773
      %791 = vmatprep.subr.bf16.mxu0 0
      %792 = vmatpush2.bf16.xpose.msra.mxu0 0
      %793 = vmatprep.subr.bf16.mxu0 0
      %794 = vmatpush2.bf16.xpose.msra.mxu0 0
      %795 = vmatprep.subr.bf16.mxu0 0
      %796 = vmatpush2.bf16.xpose.msra.mxu0 0
      %797 = vmatprep.subr.bf16.mxu0 0
      %798 = vmatpush2.bf16.xpose.msra.mxu0 0
      %799 = vmatprep.subr.bf16.mxu0 0
      %800 = vmatpush2.bf16.xpose.msra.mxu0 0
      %801 = vmatprep.subr.bf16.mxu0 0
      %802 = vmatpush2.bf16.xpose.msra.mxu0 0
      %803 = vmatprep.subr.bf16.mxu0 0
      %804 = vmatpush2.bf16.xpose.msra.mxu0 0
      %805 = vmatprep.subr.bf16.mxu0 0
      %806 = vmatpush2.bf16.xpose.msra.mxu0 0
      %807 = vmatprep.mubr.bf16.mxu0 0
      %808 = vmatmul.mubr.bf16.gmra.mxu0 %v770
      %v809 = vpop.f32.mrf.mxu0
      %v810 = vadd.f32 0.0, %v809
      %v811 = vpop.f32.mrf.mxu0
      %v812 = vpop.f32.mrf.mxu0
      %v813 = vpop.f32.mrf.mxu0
      %814 = vdwg.mxu0
      %v816 = vsel %vm308, %v239, 0
      %v819 = vsel %vm308, %v271, 0
      %821 = vmatprep.subr.bf16.mxu0 0
      %822 = vmatpush1.bf16.xpose.msra.mxu0 0
      %823 = vmatprep.subr.bf16.mxu0 0
      %824 = vmatpush1.bf16.xpose.msra.mxu0 0
      %825 = vmatprep.subr.bf16.mxu0 0
      %826 = vmatpush1.bf16.xpose.msra.mxu0 0
      %827 = vmatprep.subr.bf16.mxu0 0
      %828 = vmatpush1.bf16.xpose.msra.mxu0 0
      %829 = vmatprep.subr.bf16.mxu0 0
      %830 = vmatpush1.bf16.xpose.msra.mxu0 0
      %831 = vmatprep.subr.bf16.mxu0 0
      %832 = vmatpush1.bf16.xpose.msra.mxu0 0
      %833 = vmatprep.subr.bf16.mxu0 0
      %834 = vmatpush1.bf16.xpose.msra.mxu0 0
      %835 = vmatprep.subr.bf16.mxu0 0
      %836 = vmatpush1.bf16.xpose.msra.mxu0 %v819
      %837 = vmatprep.subr.bf16.mxu0 0
      %838 = vmatpush2.bf16.xpose.msra.mxu0 0
      %839 = vmatprep.subr.bf16.mxu0 0
      %840 = vmatpush2.bf16.xpose.msra.mxu0 0
      %841 = vmatprep.subr.bf16.mxu0 0
      %842 = vmatpush2.bf16.xpose.msra.mxu0 0
      %843 = vmatprep.subr.bf16.mxu0 0
      %844 = vmatpush2.bf16.xpose.msra.mxu0 0
      %845 = vmatprep.subr.bf16.mxu0 0
      %846 = vmatpush2.bf16.xpose.msra.mxu0 0
      %847 = vmatprep.subr.bf16.mxu0 0
      %848 = vmatpush2.bf16.xpose.msra.mxu0 0
      %849 = vmatprep.subr.bf16.mxu0 0
      %850 = vmatpush2.bf16.xpose.msra.mxu0 0
      %851 = vmatprep.subr.bf16.mxu0 0
      %852 = vmatpush2.bf16.xpose.msra.mxu0 0
      %853 = vmatprep.mubr.bf16.mxu0 0
      %854 = vmatmul.mubr.bf16.gmra.mxu0 %v816
      %v855 = vpop.f32.mrf.mxu0
      %v856 = vadd.f32 0.0, %v855
      %v857 = vpop.f32.mrf.mxu0
      %v858 = vpop.f32.mrf.mxu0
      %v859 = vpop.f32.mrf.mxu0
      %860 = vdwg.mxu0
      %v862 = vsel %vm308, %v240, 0
      %v865 = vsel %vm308, %v272, 0
      %867 = vmatprep.subr.bf16.mxu0 0
      %868 = vmatpush1.bf16.xpose.msra.mxu0 0
      %869 = vmatprep.subr.bf16.mxu0 0
      %870 = vmatpush1.bf16.xpose.msra.mxu0 0
      %871 = vmatprep.subr.bf16.mxu0 0
      %872 = vmatpush1.bf16.xpose.msra.mxu0 0
      %873 = vmatprep.subr.bf16.mxu0 0
      %874 = vmatpush1.bf16.xpose.msra.mxu0 0
      %875 = vmatprep.subr.bf16.mxu0 0
      %876 = vmatpush1.bf16.xpose.msra.mxu0 0
      %877 = vmatprep.subr.bf16.mxu0 0
      %878 = vmatpush1.bf16.xpose.msra.mxu0 0
      %879 = vmatprep.subr.bf16.mxu0 0
      %880 = vmatpush1.bf16.xpose.msra.mxu0 0
      %881 = vmatprep.subr.bf16.mxu0 0
      %882 = vmatpush1.bf16.xpose.msra.mxu0 %v865
      %883 = vmatprep.subr.bf16.mxu0 0
      %884 = vmatpush2.bf16.xpose.msra.mxu0 0
      %885 = vmatprep.subr.bf16.mxu0 0
      %886 = vmatpush2.bf16.xpose.msra.mxu0 0
      %887 = vmatprep.subr.bf16.mxu0 0
      %888 = vmatpush2.bf16.xpose.msra.mxu0 0
      %889 = vmatprep.subr.bf16.mxu0 0
      %890 = vmatpush2.bf16.xpose.msra.mxu0 0
      %891 = vmatprep.subr.bf16.mxu0 0
      %892 = vmatpush2.bf16.xpose.msra.mxu0 0
      %893 = vmatprep.subr.bf16.mxu0 0
      %894 = vmatpush2.bf16.xpose.msra.mxu0 0
      %895 = vmatprep.subr.bf16.mxu0 0
      %896 = vmatpush2.bf16.xpose.msra.mxu0 0
      %897 = vmatprep.subr.bf16.mxu0 0
      %898 = vmatpush2.bf16.xpose.msra.mxu0 0
      %899 = vmatprep.mubr.bf16.mxu0 0
      %900 = vmatmul.mubr.bf16.gmra.mxu0 %v862
      %v901 = vpop.f32.mrf.mxu0
      %v902 = vadd.f32 0.0, %v901
      %v903 = vpop.f32.mrf.mxu0
      %v904 = vpop.f32.mrf.mxu0
      %v905 = vpop.f32.mrf.mxu0
      %906 = vdwg.mxu0
      %v908 = vsel %vm308, %v241, 0
      %v911 = vsel %vm308, %v273, 0
      %913 = vmatprep.subr.bf16.mxu0 0
      %914 = vmatpush1.bf16.xpose.msra.mxu0 0
      %915 = vmatprep.subr.bf16.mxu0 0
      %916 = vmatpush1.bf16.xpose.msra.mxu0 0
      %917 = vmatprep.subr.bf16.mxu0 0
      %918 = vmatpush1.bf16.xpose.msra.mxu0 0
      %919 = vmatprep.subr.bf16.mxu0 0
      %920 = vmatpush1.bf16.xpose.msra.mxu0 0
      %921 = vmatprep.subr.bf16.mxu0 0
      %922 = vmatpush1.bf16.xpose.msra.mxu0 0
      %923 = vmatprep.subr.bf16.mxu0 0
      %924 = vmatpush1.bf16.xpose.msra.mxu0 0
      %925 = vmatprep.subr.bf16.mxu0 0
      %926 = vmatpush1.bf16.xpose.msra.mxu0 0
      %927 = vmatprep.subr.bf16.mxu0 0
      %928 = vmatpush1.bf16.xpose.msra.mxu0 %v911
      %929 = vmatprep.subr.bf16.mxu0 0
      %930 = vmatpush2.bf16.xpose.msra.mxu0 0
      %931 = vmatprep.subr.bf16.mxu0 0
      %932 = vmatpush2.bf16.xpose.msra.mxu0 0
      %933 = vmatprep.subr.bf16.mxu0 0
      %934 = vmatpush2.bf16.xpose.msra.mxu0 0
      %935 = vmatprep.subr.bf16.mxu0 0
      %936 = vmatpush2.bf16.xpose.msra.mxu0 0
      %937 = vmatprep.subr.bf16.mxu0 0
      %938 = vmatpush2.bf16.xpose.msra.mxu0 0
      %939 = vmatprep.subr.bf16.mxu0 0
      %940 = vmatpush2.bf16.xpose.msra.mxu0 0
      %941 = vmatprep.subr.bf16.mxu0 0
      %942 = vmatpush2.bf16.xpose.msra.mxu0 0
      %943 = vmatprep.subr.bf16.mxu0 0
      %944 = vmatpush2.bf16.xpose.msra.mxu0 0
      %945 = vmatprep.mubr.bf16.mxu0 0
      %946 = vmatmul.mubr.bf16.gmra.mxu0 %v908
      %v947 = vpop.f32.mrf.mxu0
      %v948 = vadd.f32 0.0, %v947
      %v949 = vpop.f32.mrf.mxu0
      %v950 = vpop.f32.mrf.mxu0
      %v951 = vpop.f32.mrf.mxu0
      %952 = vdwg.mxu0
      %v954 = vsel %vm308, %v242, 0
      %v957 = vsel %vm308, %v274, 0
      %959 = vmatprep.subr.bf16.mxu0 0
      %960 = vmatpush1.bf16.xpose.msra.mxu0 0
      %961 = vmatprep.subr.bf16.mxu0 0
      %962 = vmatpush1.bf16.xpose.msra.mxu0 0
      %963 = vmatprep.subr.bf16.mxu0 0
      %964 = vmatpush1.bf16.xpose.msra.mxu0 0
      %965 = vmatprep.subr.bf16.mxu0 0
      %966 = vmatpush1.bf16.xpose.msra.mxu0 0
      %967 = vmatprep.subr.bf16.mxu0 0
      %968 = vmatpush1.bf16.xpose.msra.mxu0 0
      %969 = vmatprep.subr.bf16.mxu0 0
      %970 = vmatpush1.bf16.xpose.msra.mxu0 0
      %971 = vmatprep.subr.bf16.mxu0 0
      %972 = vmatpush1.bf16.xpose.msra.mxu0 0
      %973 = vmatprep.subr.bf16.mxu0 0
      %974 = vmatpush1.bf16.xpose.msra.mxu0 %v957
      %975 = vmatprep.subr.bf16.mxu0 0
      %976 = vmatpush2.bf16.xpose.msra.mxu0 0
      %977 = vmatprep.subr.bf16.mxu0 0
      %978 = vmatpush2.bf16.xpose.msra.mxu0 0
      %979 = vmatprep.subr.bf16.mxu0 0
      %980 = vmatpush2.bf16.xpose.msra.mxu0 0
      %981 = vmatprep.subr.bf16.mxu0 0
      %982 = vmatpush2.bf16.xpose.msra.mxu0 0
      %983 = vmatprep.subr.bf16.mxu0 0
      %984 = vmatpush2.bf16.xpose.msra.mxu0 0
      %985 = vmatprep.subr.bf16.mxu0 0
      %986 = vmatpush2.bf16.xpose.msra.mxu0 0
      %987 = vmatprep.subr.bf16.mxu0 0
      %988 = vmatpush2.bf16.xpose.msra.mxu0 0
      %989 = vmatprep.subr.bf16.mxu0 0
      %990 = vmatpush2.bf16.xpose.msra.mxu0 0
      %991 = vmatprep.mubr.bf16.mxu0 0
      %992 = vmatmul.mubr.bf16.gmra.mxu0 %v954
      %v993 = vpop.f32.mrf.mxu0
      %v994 = vadd.f32 0.0, %v993
      %v995 = vpop.f32.mrf.mxu0
      %v996 = vpop.f32.mrf.mxu0
      %v997 = vpop.f32.mrf.mxu0
      %998 = vdwg.mxu0
      %v1000 = vsel %vm308, %v243, 0
      %v1003 = vsel %vm308, %v275, 0
      %1005 = vmatprep.subr.bf16.mxu0 0
      %1006 = vmatpush1.bf16.xpose.msra.mxu0 0
      %1007 = vmatprep.subr.bf16.mxu0 0
      %1008 = vmatpush1.bf16.xpose.msra.mxu0 0
      %1009 = vmatprep.subr.bf16.mxu0 0
      %1010 = vmatpush1.bf16.xpose.msra.mxu0 0
      %1011 = vmatprep.subr.bf16.mxu0 0
      %1012 = vmatpush1.bf16.xpose.msra.mxu0 0
      %1013 = vmatprep.subr.bf16.mxu0 0
      %1014 = vmatpush1.bf16.xpose.msra.mxu0 0
      %1015 = vmatprep.subr.bf16.mxu0 0
      %1016 = vmatpush1.bf16.xpose.msra.mxu0 0
      %1017 = vmatprep.subr.bf16.mxu0 0
      %1018 = vmatpush1.bf16.xpose.msra.mxu0 0
      %1019 = vmatprep.subr.bf16.mxu0 0
      %1020 = vmatpush1.bf16.xpose.msra.mxu0 %v1003
      %1021 = vmatprep.subr.bf16.mxu0 0
      %1022 = vmatpush2.bf16.xpose.msra.mxu0 0
      %1023 = vmatprep.subr.bf16.mxu0 0
      %1024 = vmatpush2.bf16.xpose.msra.mxu0 0
      %1025 = vmatprep.subr.bf16.mxu0 0
      %1026 = vmatpush2.bf16.xpose.msra.mxu0 0
      %1027 = vmatprep.subr.bf16.mxu0 0
      %1028 = vmatpush2.bf16.xpose.msra.mxu0 0
      %1029 = vmatprep.subr.bf16.mxu0 0
      %1030 = vmatpush2.bf16.xpose.msra.mxu0 0
      %1031 = vmatprep.subr.bf16.mxu0 0
      %1032 = vmatpush2.bf16.xpose.msra.mxu0 0
      %1033 = vmatprep.subr.bf16.mxu0 0
      %1034 = vmatpush2.bf16.xpose.msra.mxu0 0
      %1035 = vmatprep.subr.bf16.mxu0 0
      %1036 = vmatpush2.bf16.xpose.msra.mxu0 0
      %1037 = vmatprep.mubr.bf16.mxu0 0
      %1038 = vmatmul.mubr.bf16.gmra.mxu0 %v1000
      %v1039 = vpop.f32.mrf.mxu0
      %v1040 = vadd.f32 0.0, %v1039
      %v1041 = vpop.f32.mrf.mxu0
      %v1042 = vpop.f32.mrf.mxu0
      %v1043 = vpop.f32.mrf.mxu0
      %1044 = vdwg.mxu0
      %v1045 = vmul.f32 %v350, 0.35355338
      %v1046 = vmul.f32 %v396, 0.35355338
      %v1047 = vmul.f32 %v442, 0.35355338
      %v1048 = vmul.f32 %v488, 0.35355338
      %v1049 = vmul.f32 %v534, 0.35355338
      %v1050 = vmul.f32 %v580, 0.35355338
      %v1051 = vmul.f32 %v626, 0.35355338
      %v1052 = vmul.f32 %v672, 0.35355338
      %v1053 = vmul.f32 %v718, 0.35355338
      %v1054 = vmul.f32 %v764, 0.35355338
      %v1055 = vmul.f32 %v810, 0.35355338
      %v1056 = vmul.f32 %v856, 0.35355338
      %v1057 = vmul.f32 %v902, 0.35355338
      %v1058 = vmul.f32 %v948, 0.35355338
      %v1059 = vmul.f32 %v994, 0.35355338
      %v1060 = vmul.f32 %v1040, 0.35355338
      %v1061 = vsel %vm308, %v1045, -inf
      %1062 = vmax.xlane.f32.xlu0 %v1061
      %v1063 = vpop.xlane.xlu0 %1062
      %v1064 = vsel %vm308, %v1046, -inf
      %1065 = vmax.xlane.f32.xlu0 %v1064
      %v1066 = vpop.xlane.xlu0 %1065
      %v1067 = vsel %vm308, %v1047, -inf
      %1068 = vmax.xlane.f32.xlu0 %v1067
      %v1069 = vpop.xlane.xlu0 %1068
      %v1070 = vsel %vm308, %v1048, -inf
      %1071 = vmax.xlane.f32.xlu0 %v1070
      %v1072 = vpop.xlane.xlu0 %1071
      %v1073 = vsel %vm308, %v1049, -inf
      %1074 = vmax.xlane.f32.xlu0 %v1073
      %v1075 = vpop.xlane.xlu0 %1074
      %v1076 = vsel %vm308, %v1050, -inf
      %1077 = vmax.xlane.f32.xlu0 %v1076
      %v1078 = vpop.xlane.xlu0 %1077
      %v1079 = vsel %vm308, %v1051, -inf
      %1080 = vmax.xlane.f32.xlu0 %v1079
      %v1081 = vpop.xlane.xlu0 %1080
      %v1082 = vsel %vm308, %v1052, -inf
      %1083 = vmax.xlane.f32.xlu0 %v1082
      %v1084 = vpop.xlane.xlu0 %1083
      %v1085 = vsel %vm308, %v1053, -inf
      %1086 = vmax.xlane.f32.xlu0 %v1085
      %v1087 = vpop.xlane.xlu0 %1086
      %v1088 = vsel %vm308, %v1054, -inf
      %1089 = vmax.xlane.f32.xlu0 %v1088
      %v1090 = vpop.xlane.xlu0 %1089
      %v1091 = vsel %vm308, %v1055, -inf
      %1092 = vmax.xlane.f32.xlu0 %v1091
      %v1093 = vpop.xlane.xlu0 %1092
      %v1094 = vsel %vm308, %v1056, -inf
      %1095 = vmax.xlane.f32.xlu0 %v1094
      %v1096 = vpop.xlane.xlu0 %1095
      %v1097 = vsel %vm308, %v1057, -inf
      %1098 = vmax.xlane.f32.xlu0 %v1097
      %v1099 = vpop.xlane.xlu0 %1098
      %v1100 = vsel %vm308, %v1058, -inf
      %1101 = vmax.xlane.f32.xlu0 %v1100
      %v1102 = vpop.xlane.xlu0 %1101
      %v1103 = vsel %vm308, %v1059, -inf
      %1104 = vmax.xlane.f32.xlu0 %v1103
      %v1105 = vpop.xlane.xlu0 %1104
      %v1106 = vsel %vm308, %v1060, -inf
      %1107 = vmax.xlane.f32.xlu0 %v1106
      %v1108 = vpop.xlane.xlu0 %1107
      %v1109 = vsub.f32 %v1045, %v1063
      %v1110 = vsub.f32 %v1046, %v1066
      %v1111 = vsub.f32 %v1047, %v1069
      %v1112 = vsub.f32 %v1048, %v1072
      %v1113 = vsub.f32 %v1049, %v1075
      %v1114 = vsub.f32 %v1050, %v1078
      %v1115 = vsub.f32 %v1051, %v1081
      %v1116 = vsub.f32 %v1052, %v1084
      %v1117 = vsub.f32 %v1053, %v1087
      %v1118 = vsub.f32 %v1054, %v1090
      %v1119 = vsub.f32 %v1055, %v1093
      %v1120 = vsub.f32 %v1056, %v1096
      %v1121 = vsub.f32 %v1057, %v1099
      %v1122 = vsub.f32 %v1058, %v1102
      %v1123 = vsub.f32 %v1059, %v1105
      %v1124 = vsub.f32 %v1060, %v1108
      %v1125 = vmul.f32 %v1109, 1.442695
      %v1126 = vpow.pop %v1125
      %v1127 = vmul.f32 %v1110, 1.442695
      %v1128 = vpow.pop %v1127
      %v1129 = vmul.f32 %v1111, 1.442695
      %v1130 = vpow.pop %v1129
      %v1131 = vmul.f32 %v1112, 1.442695
      %v1132 = vpow.pop %v1131
      %v1133 = vmul.f32 %v1113, 1.442695
      %v1134 = vpow.pop %v1133
      %v1135 = vmul.f32 %v1114, 1.442695
      %v1136 = vpow.pop %v1135
      %v1137 = vmul.f32 %v1115, 1.442695
      %v1138 = vpow.pop %v1137
      %v1139 = vmul.f32 %v1116, 1.442695
      %v1140 = vpow.pop %v1139
      %v1141 = vmul.f32 %v1117, 1.442695
      %v1142 = vpow.pop %v1141
      %v1143 = vmul.f32 %v1118, 1.442695
      %v1144 = vpow.pop %v1143
      %v1145 = vmul.f32 %v1119, 1.442695
      %v1146 = vpow.pop %v1145
      %v1147 = vmul.f32 %v1120, 1.442695
      %v1148 = vpow.pop %v1147
      %v1149 = vmul.f32 %v1121, 1.442695
      %v1150 = vpow.pop %v1149
      %v1151 = vmul.f32 %v1122, 1.442695
      %v1152 = vpow.pop %v1151
      %v1153 = vmul.f32 %v1123, 1.442695
      %v1154 = vpow.pop %v1153
      %v1155 = vmul.f32 %v1124, 1.442695
      %v1156 = vpow.pop %v1155
      %v1157 = vsel %vm308, %v1126, 0.0
      %1158 = vadd.xlane.f32.xlu0 %v1157
      %v1159 = vpop.xlane.xlu0 %1158
      %v1160 = vsel %vm308, %v1128, 0.0
      %1161 = vadd.xlane.f32.xlu0 %v1160
      %v1162 = vpop.xlane.xlu0 %1161
      %v1163 = vsel %vm308, %v1130, 0.0
      %1164 = vadd.xlane.f32.xlu0 %v1163
      %v1165 = vpop.xlane.xlu0 %1164
      %v1166 = vsel %vm308, %v1132, 0.0
      %1167 = vadd.xlane.f32.xlu0 %v1166
      %v1168 = vpop.xlane.xlu0 %1167
      %v1169 = vsel %vm308, %v1134, 0.0
      %1170 = vadd.xlane.f32.xlu0 %v1169
      %v1171 = vpop.xlane.xlu0 %1170
      %v1172 = vsel %vm308, %v1136, 0.0
      %1173 = vadd.xlane.f32.xlu0 %v1172
      %v1174 = vpop.xlane.xlu0 %1173
      %v1175 = vsel %vm308, %v1138, 0.0
      %1176 = vadd.xlane.f32.xlu0 %v1175
      %v1177 = vpop.xlane.xlu0 %1176
      %v1178 = vsel %vm308, %v1140, 0.0
      %1179 = vadd.xlane.f32.xlu0 %v1178
      %v1180 = vpop.xlane.xlu0 %1179
      %v1181 = vsel %vm308, %v1142, 0.0
      %1182 = vadd.xlane.f32.xlu0 %v1181
      %v1183 = vpop.xlane.xlu0 %1182
      %v1184 = vsel %vm308, %v1144, 0.0
      %1185 = vadd.xlane.f32.xlu0 %v1184
      %v1186 = vpop.xlane.xlu0 %1185
      %v1187 = vsel %vm308, %v1146, 0.0
      %1188 = vadd.xlane.f32.xlu0 %v1187
      %v1189 = vpop.xlane.xlu0 %1188
      %v1190 = vsel %vm308, %v1148, 0.0
      %1191 = vadd.xlane.f32.xlu0 %v1190
      %v1192 = vpop.xlane.xlu0 %1191
      %v1193 = vsel %vm308, %v1150, 0.0
      %1194 = vadd.xlane.f32.xlu0 %v1193
      %v1195 = vpop.xlane.xlu0 %1194
      %v1196 = vsel %vm308, %v1152, 0.0
      %1197 = vadd.xlane.f32.xlu0 %v1196
      %v1198 = vpop.xlane.xlu0 %1197
      %v1199 = vsel %vm308, %v1154, 0.0
      %1200 = vadd.xlane.f32.xlu0 %v1199
      %v1201 = vpop.xlane.xlu0 %1200
      %v1202 = vsel %vm308, %v1156, 0.0
      %1203 = vadd.xlane.f32.xlu0 %v1202
      %v1204 = vpop.xlane.xlu0 %1203
      %v1205 = vrcp.pop %v1159
      %v1206 = vrcp.pop %v1162
      %v1207 = vrcp.pop %v1165
      %v1208 = vrcp.pop %v1168
      %v1209 = vrcp.pop %v1171
      %v1210 = vrcp.pop %v1174
      %v1211 = vrcp.pop %v1177
      %v1212 = vrcp.pop %v1180
      %v1213 = vrcp.pop %v1183
      %v1214 = vrcp.pop %v1186
      %v1215 = vrcp.pop %v1189
      %v1216 = vrcp.pop %v1192
      %v1217 = vrcp.pop %v1195
      %v1218 = vrcp.pop %v1198
      %v1219 = vrcp.pop %v1201
      %v1220 = vrcp.pop %v1204
      %v1221 = vmul.f32 %v1126, %v1205
      %v1222 = vmul.f32 %v1128, %v1206
      %v1223 = vmul.f32 %v1130, %v1207
      %v1224 = vmul.f32 %v1132, %v1208
      %v1225 = vmul.f32 %v1134, %v1209
      %v1226 = vmul.f32 %v1136, %v1210
      %v1227 = vmul.f32 %v1138, %v1211
      %v1228 = vmul.f32 %v1140, %v1212
      %v1229 = vmul.f32 %v1142, %v1213
      %v1230 = vmul.f32 %v1144, %v1214
      %v1231 = vmul.f32 %v1146, %v1215
      %v1232 = vmul.f32 %v1148, %v1216
      %v1233 = vmul.f32 %v1150, %v1217
      %v1234 = vmul.f32 %v1152, %v1218
      %v1235 = vmul.f32 %v1154, %v1219
      %v1236 = vmul.f32 %v1156, %v1220
      %v1237 = vpack.c.bf16 %v1221, %v1221
      %v1238 = vpack.c.bf16 %v1222, %v1222
      %v1239 = vpack.c.bf16 %v1223, %v1223
      %v1240 = vpack.c.bf16 %v1224, %v1224
      %v1241 = vpack.c.bf16 %v1225, %v1225
      %v1242 = vpack.c.bf16 %v1226, %v1226
      %v1243 = vpack.c.bf16 %v1227, %v1227
      %v1244 = vpack.c.bf16 %v1228, %v1228
      %v1245 = vpack.c.bf16 %v1229, %v1229
      %v1246 = vpack.c.bf16 %v1230, %v1230
      %v1247 = vpack.c.bf16 %v1231, %v1231
      %v1248 = vpack.c.bf16 %v1232, %v1232
      %v1249 = vpack.c.bf16 %v1233, %v1233
      %v1250 = vpack.c.bf16 %v1234, %v1234
      %v1251 = vpack.c.bf16 %v1235, %v1235
      %v1252 = vpack.c.bf16 %v1236, %v1236
      %v1254 = vsel %vm308, %v1237, 0
      %vm1256 = vcmask 1043456
      %v1258 = vsel %vm1256, %v292, 0
      %1260 = vmatprep.subr.bf16.mxu0 0
      %1261 = vmatpush1.bf16.msra.mxu0 0
      %1262 = vmatprep.subr.bf16.mxu0 0
      %1263 = vmatpush1.bf16.msra.mxu0 0
      %1264 = vmatprep.subr.bf16.mxu0 0
      %1265 = vmatpush1.bf16.msra.mxu0 0
      %1266 = vmatprep.subr.bf16.mxu0 0
      %1267 = vmatpush1.bf16.msra.mxu0 0
      %1268 = vmatprep.subr.bf16.mxu0 0
      %1269 = vmatpush1.bf16.msra.mxu0 0
      %1270 = vmatprep.subr.bf16.mxu0 0
      %1271 = vmatpush1.bf16.msra.mxu0 0
      %1272 = vmatprep.subr.bf16.mxu0 0
      %1273 = vmatpush1.bf16.msra.mxu0 0
      %1274 = vmatprep.subr.bf16.mxu0 0
      %1275 = vmatpush1.bf16.msra.mxu0 %v1258
      %1276 = vmatprep.subr.bf16.mxu0 0
      %1277 = vmatpush2.bf16.msra.mxu0 0
      %1278 = vmatprep.subr.bf16.mxu0 0
      %1279 = vmatpush2.bf16.msra.mxu0 0
      %1280 = vmatprep.subr.bf16.mxu0 0
      %1281 = vmatpush2.bf16.msra.mxu0 0
      %1282 = vmatprep.subr.bf16.mxu0 0
      %1283 = vmatpush2.bf16.msra.mxu0 0
      %1284 = vmatprep.subr.bf16.mxu0 0
      %1285 = vmatpush2.bf16.msra.mxu0 0
      %1286 = vmatprep.subr.bf16.mxu0 0
      %1287 = vmatpush2.bf16.msra.mxu0 0
      %1288 = vmatprep.subr.bf16.mxu0 0
      %1289 = vmatpush2.bf16.msra.mxu0 0
      %1290 = vmatprep.subr.bf16.mxu0 0
      %1291 = vmatpush2.bf16.msra.mxu0 0
      %1292 = vmatprep.mubr.bf16.mxu0 0
      %1293 = vmatmul.mubr.bf16.gmra.mxu0 %v1254
      %v1294 = vpop.f32.mrf.mxu0
      %v1295 = vadd.f32 0.0, %v1294
      %v1296 = vpop.f32.mrf.mxu0
      %v1297 = vpop.f32.mrf.mxu0
      %v1298 = vpop.f32.mrf.mxu0
      %1299 = vdwg.mxu0
      %v1301 = vsel %vm308, %v1238, 0
      %v1304 = vsel %vm1256, %v293, 0
      %1306 = vmatprep.subr.bf16.mxu0 0
      %1307 = vmatpush1.bf16.msra.mxu0 0
      %1308 = vmatprep.subr.bf16.mxu0 0
      %1309 = vmatpush1.bf16.msra.mxu0 0
      %1310 = vmatprep.subr.bf16.mxu0 0
      %1311 = vmatpush1.bf16.msra.mxu0 0
      %1312 = vmatprep.subr.bf16.mxu0 0
      %1313 = vmatpush1.bf16.msra.mxu0 0
      %1314 = vmatprep.subr.bf16.mxu0 0
      %1315 = vmatpush1.bf16.msra.mxu0 0
      %1316 = vmatprep.subr.bf16.mxu0 0
      %1317 = vmatpush1.bf16.msra.mxu0 0
      %1318 = vmatprep.subr.bf16.mxu0 0
      %1319 = vmatpush1.bf16.msra.mxu0 0
      %1320 = vmatprep.subr.bf16.mxu0 0
      %1321 = vmatpush1.bf16.msra.mxu0 %v1304
      %1322 = vmatprep.subr.bf16.mxu0 0
      %1323 = vmatpush2.bf16.msra.mxu0 0
      %1324 = vmatprep.subr.bf16.mxu0 0
      %1325 = vmatpush2.bf16.msra.mxu0 0
      %1326 = vmatprep.subr.bf16.mxu0 0
      %1327 = vmatpush2.bf16.msra.mxu0 0
      %1328 = vmatprep.subr.bf16.mxu0 0
      %1329 = vmatpush2.bf16.msra.mxu0 0
      %1330 = vmatprep.subr.bf16.mxu0 0
      %1331 = vmatpush2.bf16.msra.mxu0 0
      %1332 = vmatprep.subr.bf16.mxu0 0
      %1333 = vmatpush2.bf16.msra.mxu0 0
      %1334 = vmatprep.subr.bf16.mxu0 0
      %1335 = vmatpush2.bf16.msra.mxu0 0
      %1336 = vmatprep.subr.bf16.mxu0 0
      %1337 = vmatpush2.bf16.msra.mxu0 0
      %1338 = vmatprep.mubr.bf16.mxu0 0
      %1339 = vmatmul.mubr.bf16.gmra.mxu0 %v1301
      %v1340 = vpop.f32.mrf.mxu0
      %v1341 = vadd.f32 0.0, %v1340
      %v1342 = vpop.f32.mrf.mxu0
      %v1343 = vpop.f32.mrf.mxu0
      %v1344 = vpop.f32.mrf.mxu0
      %1345 = vdwg.mxu0
      %v1347 = vsel %vm308, %v1239, 0
      %v1350 = vsel %vm1256, %v294, 0
      %1352 = vmatprep.subr.bf16.mxu0 0
      %1353 = vmatpush1.bf16.msra.mxu0 0
      %1354 = vmatprep.subr.bf16.mxu0 0
      %1355 = vmatpush1.bf16.msra.mxu0 0
      %1356 = vmatprep.subr.bf16.mxu0 0
      %1357 = vmatpush1.bf16.msra.mxu0 0
      %1358 = vmatprep.subr.bf16.mxu0 0
      %1359 = vmatpush1.bf16.msra.mxu0 0
      %1360 = vmatprep.subr.bf16.mxu0 0
      %1361 = vmatpush1.bf16.msra.mxu0 0
      %1362 = vmatprep.subr.bf16.mxu0 0
      %1363 = vmatpush1.bf16.msra.mxu0 0
      %1364 = vmatprep.subr.bf16.mxu0 0
      %1365 = vmatpush1.bf16.msra.mxu0 0
      %1366 = vmatprep.subr.bf16.mxu0 0
      %1367 = vmatpush1.bf16.msra.mxu0 %v1350
      %1368 = vmatprep.subr.bf16.mxu0 0
      %1369 = vmatpush2.bf16.msra.mxu0 0
      %1370 = vmatprep.subr.bf16.mxu0 0
      %1371 = vmatpush2.bf16.msra.mxu0 0
      %1372 = vmatprep.subr.bf16.mxu0 0
      %1373 = vmatpush2.bf16.msra.mxu0 0
      %1374 = vmatprep.subr.bf16.mxu0 0
      %1375 = vmatpush2.bf16.msra.mxu0 0
      %1376 = vmatprep.subr.bf16.mxu0 0
      %1377 = vmatpush2.bf16.msra.mxu0 0
      %1378 = vmatprep.subr.bf16.mxu0 0
      %1379 = vmatpush2.bf16.msra.mxu0 0
      %1380 = vmatprep.subr.bf16.mxu0 0
      %1381 = vmatpush2.bf16.msra.mxu0 0
      %1382 = vmatprep.subr.bf16.mxu0 0
      %1383 = vmatpush2.bf16.msra.mxu0 0
      %1384 = vmatprep.mubr.bf16.mxu0 0
      %1385 = vmatmul.mubr.bf16.gmra.mxu0 %v1347
      %v1386 = vpop.f32.mrf.mxu0
      %v1387 = vadd.f32 0.0, %v1386
      %v1388 = vpop.f32.mrf.mxu0
      %v1389 = vpop.f32.mrf.mxu0
      %v1390 = vpop.f32.mrf.mxu0
      %1391 = vdwg.mxu0
      %v1393 = vsel %vm308, %v1240, 0
      %v1396 = vsel %vm1256, %v295, 0
      %1398 = vmatprep.subr.bf16.mxu0 0
      %1399 = vmatpush1.bf16.msra.mxu0 0
      %1400 = vmatprep.subr.bf16.mxu0 0
      %1401 = vmatpush1.bf16.msra.mxu0 0
      %1402 = vmatprep.subr.bf16.mxu0 0
      %1403 = vmatpush1.bf16.msra.mxu0 0
      %1404 = vmatprep.subr.bf16.mxu0 0
      %1405 = vmatpush1.bf16.msra.mxu0 0
      %1406 = vmatprep.subr.bf16.mxu0 0
      %1407 = vmatpush1.bf16.msra.mxu0 0
      %1408 = vmatprep.subr.bf16.mxu0 0
      %1409 = vmatpush1.bf16.msra.mxu0 0
      %1410 = vmatprep.subr.bf16.mxu0 0
      %1411 = vmatpush1.bf16.msra.mxu0 0
      %1412 = vmatprep.subr.bf16.mxu0 0
      %1413 = vmatpush1.bf16.msra.mxu0 %v1396
      %1414 = vmatprep.subr.bf16.mxu0 0
      %1415 = vmatpush2.bf16.msra.mxu0 0
      %1416 = vmatprep.subr.bf16.mxu0 0
      %1417 = vmatpush2.bf16.msra.mxu0 0
      %1418 = vmatprep.subr.bf16.mxu0 0
      %1419 = vmatpush2.bf16.msra.mxu0 0
      %1420 = vmatprep.subr.bf16.mxu0 0
      %1421 = vmatpush2.bf16.msra.mxu0 0
      %1422 = vmatprep.subr.bf16.mxu0 0
      %1423 = vmatpush2.bf16.msra.mxu0 0
      %1424 = vmatprep.subr.bf16.mxu0 0
      %1425 = vmatpush2.bf16.msra.mxu0 0
      %1426 = vmatprep.subr.bf16.mxu0 0
      %1427 = vmatpush2.bf16.msra.mxu0 0
      %1428 = vmatprep.subr.bf16.mxu0 0
      %1429 = vmatpush2.bf16.msra.mxu0 0
      %1430 = vmatprep.mubr.bf16.mxu0 0
      %1431 = vmatmul.mubr.bf16.gmra.mxu0 %v1393
      %v1432 = vpop.f32.mrf.mxu0
      %v1433 = vadd.f32 0.0, %v1432
      %v1434 = vpop.f32.mrf.mxu0
      %v1435 = vpop.f32.mrf.mxu0
      %v1436 = vpop.f32.mrf.mxu0
      %1437 = vdwg.mxu0
      %v1439 = vsel %vm308, %v1241, 0
      %v1442 = vsel %vm1256, %v296, 0
      %1444 = vmatprep.subr.bf16.mxu0 0
      %1445 = vmatpush1.bf16.msra.mxu0 0
      %1446 = vmatprep.subr.bf16.mxu0 0
      %1447 = vmatpush1.bf16.msra.mxu0 0
      %1448 = vmatprep.subr.bf16.mxu0 0
      %1449 = vmatpush1.bf16.msra.mxu0 0
      %1450 = vmatprep.subr.bf16.mxu0 0
      %1451 = vmatpush1.bf16.msra.mxu0 0
      %1452 = vmatprep.subr.bf16.mxu0 0
      %1453 = vmatpush1.bf16.msra.mxu0 0
      %1454 = vmatprep.subr.bf16.mxu0 0
      %1455 = vmatpush1.bf16.msra.mxu0 0
      %1456 = vmatprep.subr.bf16.mxu0 0
      %1457 = vmatpush1.bf16.msra.mxu0 0
      %1458 = vmatprep.subr.bf16.mxu0 0
      %1459 = vmatpush1.bf16.msra.mxu0 %v1442
      %1460 = vmatprep.subr.bf16.mxu0 0
      %1461 = vmatpush2.bf16.msra.mxu0 0
      %1462 = vmatprep.subr.bf16.mxu0 0
      %1463 = vmatpush2.bf16.msra.mxu0 0
      %1464 = vmatprep.subr.bf16.mxu0 0
      %1465 = vmatpush2.bf16.msra.mxu0 0
      %1466 = vmatprep.subr.bf16.mxu0 0
      %1467 = vmatpush2.bf16.msra.mxu0 0
      %1468 = vmatprep.subr.bf16.mxu0 0
      %1469 = vmatpush2.bf16.msra.mxu0 0
      %1470 = vmatprep.subr.bf16.mxu0 0
      %1471 = vmatpush2.bf16.msra.mxu0 0
      %1472 = vmatprep.subr.bf16.mxu0 0
      %1473 = vmatpush2.bf16.msra.mxu0 0
      %1474 = vmatprep.subr.bf16.mxu0 0
      %1475 = vmatpush2.bf16.msra.mxu0 0
      %1476 = vmatprep.mubr.bf16.mxu0 0
      %1477 = vmatmul.mubr.bf16.gmra.mxu0 %v1439
      %v1478 = vpop.f32.mrf.mxu0
      %v1479 = vadd.f32 0.0, %v1478
      %v1480 = vpop.f32.mrf.mxu0
      %v1481 = vpop.f32.mrf.mxu0
      %v1482 = vpop.f32.mrf.mxu0
      %1483 = vdwg.mxu0
      %v1485 = vsel %vm308, %v1242, 0
      %v1488 = vsel %vm1256, %v297, 0
      %1490 = vmatprep.subr.bf16.mxu0 0
      %1491 = vmatpush1.bf16.msra.mxu0 0
      %1492 = vmatprep.subr.bf16.mxu0 0
      %1493 = vmatpush1.bf16.msra.mxu0 0
      %1494 = vmatprep.subr.bf16.mxu0 0
      %1495 = vmatpush1.bf16.msra.mxu0 0
      %1496 = vmatprep.subr.bf16.mxu0 0
      %1497 = vmatpush1.bf16.msra.mxu0 0
      %1498 = vmatprep.subr.bf16.mxu0 0
      %1499 = vmatpush1.bf16.msra.mxu0 0
      %1500 = vmatprep.subr.bf16.mxu0 0
      %1501 = vmatpush1.bf16.msra.mxu0 0
      %1502 = vmatprep.subr.bf16.mxu0 0
      %1503 = vmatpush1.bf16.msra.mxu0 0
      %1504 = vmatprep.subr.bf16.mxu0 0
      %1505 = vmatpush1.bf16.msra.mxu0 %v1488
      %1506 = vmatprep.subr.bf16.mxu0 0
      %1507 = vmatpush2.bf16.msra.mxu0 0
      %1508 = vmatprep.subr.bf16.mxu0 0
      %1509 = vmatpush2.bf16.msra.mxu0 0
      %1510 = vmatprep.subr.bf16.mxu0 0
      %1511 = vmatpush2.bf16.msra.mxu0 0
      %1512 = vmatprep.subr.bf16.mxu0 0
      %1513 = vmatpush2.bf16.msra.mxu0 0
      %1514 = vmatprep.subr.bf16.mxu0 0
      %1515 = vmatpush2.bf16.msra.mxu0 0
      %1516 = vmatprep.subr.bf16.mxu0 0
      %1517 = vmatpush2.bf16.msra.mxu0 0
      %1518 = vmatprep.subr.bf16.mxu0 0
      %1519 = vmatpush2.bf16.msra.mxu0 0
      %1520 = vmatprep.subr.bf16.mxu0 0
      %1521 = vmatpush2.bf16.msra.mxu0 0
      %1522 = vmatprep.mubr.bf16.mxu0 0
      %1523 = vmatmul.mubr.bf16.gmra.mxu0 %v1485
      %v1524 = vpop.f32.mrf.mxu0
      %v1525 = vadd.f32 0.0, %v1524
      %v1526 = vpop.f32.mrf.mxu0
      %v1527 = vpop.f32.mrf.mxu0
      %v1528 = vpop.f32.mrf.mxu0
      %1529 = vdwg.mxu0
      %v1531 = vsel %vm308, %v1243, 0
      %v1534 = vsel %vm1256, %v298, 0
      %1536 = vmatprep.subr.bf16.mxu0 0
      %1537 = vmatpush1.bf16.msra.mxu0 0
      %1538 = vmatprep.subr.bf16.mxu0 0
      %1539 = vmatpush1.bf16.msra.mxu0 0
      %1540 = vmatprep.subr.bf16.mxu0 0
      %1541 = vmatpush1.bf16.msra.mxu0 0
      %1542 = vmatprep.subr.bf16.mxu0 0
      %1543 = vmatpush1.bf16.msra.mxu0 0
      %1544 = vmatprep.subr.bf16.mxu0 0
      %1545 = vmatpush1.bf16.msra.mxu0 0
      %1546 = vmatprep.subr.bf16.mxu0 0
      %1547 = vmatpush1.bf16.msra.mxu0 0
      %1548 = vmatprep.subr.bf16.mxu0 0
      %1549 = vmatpush1.bf16.msra.mxu0 0
      %1550 = vmatprep.subr.bf16.mxu0 0
      %1551 = vmatpush1.bf16.msra.mxu0 %v1534
      %1552 = vmatprep.subr.bf16.mxu0 0
      %1553 = vmatpush2.bf16.msra.mxu0 0
      %1554 = vmatprep.subr.bf16.mxu0 0
      %1555 = vmatpush2.bf16.msra.mxu0 0
      %1556 = vmatprep.subr.bf16.mxu0 0
      %1557 = vmatpush2.bf16.msra.mxu0 0
      %1558 = vmatprep.subr.bf16.mxu0 0
      %1559 = vmatpush2.bf16.msra.mxu0 0
      %1560 = vmatprep.subr.bf16.mxu0 0
      %1561 = vmatpush2.bf16.msra.mxu0 0
      %1562 = vmatprep.subr.bf16.mxu0 0
      %1563 = vmatpush2.bf16.msra.mxu0 0
      %1564 = vmatprep.subr.bf16.mxu0 0
      %1565 = vmatpush2.bf16.msra.mxu0 0
      %1566 = vmatprep.subr.bf16.mxu0 0
      %1567 = vmatpush2.bf16.msra.mxu0 0
      %1568 = vmatprep.mubr.bf16.mxu0 0
      %1569 = vmatmul.mubr.bf16.gmra.mxu0 %v1531
      %v1570 = vpop.f32.mrf.mxu0
      %v1571 = vadd.f32 0.0, %v1570
      %v1572 = vpop.f32.mrf.mxu0
      %v1573 = vpop.f32.mrf.mxu0
      %v1574 = vpop.f32.mrf.mxu0
      %1575 = vdwg.mxu0
      %v1577 = vsel %vm308, %v1244, 0
      %v1580 = vsel %vm1256, %v299, 0
      %1582 = vmatprep.subr.bf16.mxu0 0
      %1583 = vmatpush1.bf16.msra.mxu0 0
      %1584 = vmatprep.subr.bf16.mxu0 0
      %1585 = vmatpush1.bf16.msra.mxu0 0
      %1586 = vmatprep.subr.bf16.mxu0 0
      %1587 = vmatpush1.bf16.msra.mxu0 0
      %1588 = vmatprep.subr.bf16.mxu0 0
      %1589 = vmatpush1.bf16.msra.mxu0 0
      %1590 = vmatprep.subr.bf16.mxu0 0
      %1591 = vmatpush1.bf16.msra.mxu0 0
      %1592 = vmatprep.subr.bf16.mxu0 0
      %1593 = vmatpush1.bf16.msra.mxu0 0
      %1594 = vmatprep.subr.bf16.mxu0 0
      %1595 = vmatpush1.bf16.msra.mxu0 0
      %1596 = vmatprep.subr.bf16.mxu0 0
      %1597 = vmatpush1.bf16.msra.mxu0 %v1580
      %1598 = vmatprep.subr.bf16.mxu0 0
      %1599 = vmatpush2.bf16.msra.mxu0 0
      %1600 = vmatprep.subr.bf16.mxu0 0
      %1601 = vmatpush2.bf16.msra.mxu0 0
      %1602 = vmatprep.subr.bf16.mxu0 0
      %1603 = vmatpush2.bf16.msra.mxu0 0
      %1604 = vmatprep.subr.bf16.mxu0 0
      %1605 = vmatpush2.bf16.msra.mxu0 0
      %1606 = vmatprep.subr.bf16.mxu0 0
      %1607 = vmatpush2.bf16.msra.mxu0 0
      %1608 = vmatprep.subr.bf16.mxu0 0
      %1609 = vmatpush2.bf16.msra.mxu0 0
      %1610 = vmatprep.subr.bf16.mxu0 0
      %1611 = vmatpush2.bf16.msra.mxu0 0
      %1612 = vmatprep.subr.bf16.mxu0 0
      %1613 = vmatpush2.bf16.msra.mxu0 0
      %1614 = vmatprep.mubr.bf16.mxu0 0
      %1615 = vmatmul.mubr.bf16.gmra.mxu0 %v1577
      %v1616 = vpop.f32.mrf.mxu0
      %v1617 = vadd.f32 0.0, %v1616
      %v1618 = vpop.f32.mrf.mxu0
      %v1619 = vpop.f32.mrf.mxu0
      %v1620 = vpop.f32.mrf.mxu0
      %1621 = vdwg.mxu0
      %v1623 = vsel %vm308, %v1245, 0
      %v1626 = vsel %vm1256, %v300, 0
      %1628 = vmatprep.subr.bf16.mxu0 0
      %1629 = vmatpush1.bf16.msra.mxu0 0
      %1630 = vmatprep.subr.bf16.mxu0 0
      %1631 = vmatpush1.bf16.msra.mxu0 0
      %1632 = vmatprep.subr.bf16.mxu0 0
      %1633 = vmatpush1.bf16.msra.mxu0 0
      %1634 = vmatprep.subr.bf16.mxu0 0
      %1635 = vmatpush1.bf16.msra.mxu0 0
      %1636 = vmatprep.subr.bf16.mxu0 0
      %1637 = vmatpush1.bf16.msra.mxu0 0
      %1638 = vmatprep.subr.bf16.mxu0 0
      %1639 = vmatpush1.bf16.msra.mxu0 0
      %1640 = vmatprep.subr.bf16.mxu0 0
      %1641 = vmatpush1.bf16.msra.mxu0 0
      %1642 = vmatprep.subr.bf16.mxu0 0
      %1643 = vmatpush1.bf16.msra.mxu0 %v1626
      %1644 = vmatprep.subr.bf16.mxu0 0
      %1645 = vmatpush2.bf16.msra.mxu0 0
      %1646 = vmatprep.subr.bf16.mxu0 0
      %1647 = vmatpush2.bf16.msra.mxu0 0
      %1648 = vmatprep.subr.bf16.mxu0 0
      %1649 = vmatpush2.bf16.msra.mxu0 0
      %1650 = vmatprep.subr.bf16.mxu0 0
      %1651 = vmatpush2.bf16.msra.mxu0 0
      %1652 = vmatprep.subr.bf16.mxu0 0
      %1653 = vmatpush2.bf16.msra.mxu0 0
      %1654 = vmatprep.subr.bf16.mxu0 0
      %1655 = vmatpush2.bf16.msra.mxu0 0
      %1656 = vmatprep.subr.bf16.mxu0 0
      %1657 = vmatpush2.bf16.msra.mxu0 0
      %1658 = vmatprep.subr.bf16.mxu0 0
      %1659 = vmatpush2.bf16.msra.mxu0 0
      %1660 = vmatprep.mubr.bf16.mxu0 0
      %1661 = vmatmul.mubr.bf16.gmra.mxu0 %v1623
      %v1662 = vpop.f32.mrf.mxu0
      %v1663 = vadd.f32 0.0, %v1662
      %v1664 = vpop.f32.mrf.mxu0
      %v1665 = vpop.f32.mrf.mxu0
      %v1666 = vpop.f32.mrf.mxu0
      %1667 = vdwg.mxu0
      %v1669 = vsel %vm308, %v1246, 0
      %v1672 = vsel %vm1256, %v301, 0
      %1674 = vmatprep.subr.bf16.mxu0 0
      %1675 = vmatpush1.bf16.msra.mxu0 0
      %1676 = vmatprep.subr.bf16.mxu0 0
      %1677 = vmatpush1.bf16.msra.mxu0 0
      %1678 = vmatprep.subr.bf16.mxu0 0
      %1679 = vmatpush1.bf16.msra.mxu0 0
      %1680 = vmatprep.subr.bf16.mxu0 0
      %1681 = vmatpush1.bf16.msra.mxu0 0
      %1682 = vmatprep.subr.bf16.mxu0 0
      %1683 = vmatpush1.bf16.msra.mxu0 0
      %1684 = vmatprep.subr.bf16.mxu0 0
      %1685 = vmatpush1.bf16.msra.mxu0 0
      %1686 = vmatprep.subr.bf16.mxu0 0
      %1687 = vmatpush1.bf16.msra.mxu0 0
      %1688 = vmatprep.subr.bf16.mxu0 0
      %1689 = vmatpush1.bf16.msra.mxu0 %v1672
      %1690 = vmatprep.subr.bf16.mxu0 0
      %1691 = vmatpush2.bf16.msra.mxu0 0
      %1692 = vmatprep.subr.bf16.mxu0 0
      %1693 = vmatpush2.bf16.msra.mxu0 0
      %1694 = vmatprep.subr.bf16.mxu0 0
      %1695 = vmatpush2.bf16.msra.mxu0 0
      %1696 = vmatprep.subr.bf16.mxu0 0
      %1697 = vmatpush2.bf16.msra.mxu0 0
      %1698 = vmatprep.subr.bf16.mxu0 0
      %1699 = vmatpush2.bf16.msra.mxu0 0
      %1700 = vmatprep.subr.bf16.mxu0 0
      %1701 = vmatpush2.bf16.msra.mxu0 0
      %1702 = vmatprep.subr.bf16.mxu0 0
      %1703 = vmatpush2.bf16.msra.mxu0 0
      %1704 = vmatprep.subr.bf16.mxu0 0
      %1705 = vmatpush2.bf16.msra.mxu0 0
      %1706 = vmatprep.mubr.bf16.mxu0 0
      %1707 = vmatmul.mubr.bf16.gmra.mxu0 %v1669
      %v1708 = vpop.f32.mrf.mxu0
      %v1709 = vadd.f32 0.0, %v1708
      %v1710 = vpop.f32.mrf.mxu0
      %v1711 = vpop.f32.mrf.mxu0
      %v1712 = vpop.f32.mrf.mxu0
      %1713 = vdwg.mxu0
      %v1715 = vsel %vm308, %v1247, 0
      %v1718 = vsel %vm1256, %v302, 0
      %1720 = vmatprep.subr.bf16.mxu0 0
      %1721 = vmatpush1.bf16.msra.mxu0 0
      %1722 = vmatprep.subr.bf16.mxu0 0
      %1723 = vmatpush1.bf16.msra.mxu0 0
      %1724 = vmatprep.subr.bf16.mxu0 0
      %1725 = vmatpush1.bf16.msra.mxu0 0
      %1726 = vmatprep.subr.bf16.mxu0 0
      %1727 = vmatpush1.bf16.msra.mxu0 0
      %1728 = vmatprep.subr.bf16.mxu0 0
      %1729 = vmatpush1.bf16.msra.mxu0 0
      %1730 = vmatprep.subr.bf16.mxu0 0
      %1731 = vmatpush1.bf16.msra.mxu0 0
      %1732 = vmatprep.subr.bf16.mxu0 0
      %1733 = vmatpush1.bf16.msra.mxu0 0
      %1734 = vmatprep.subr.bf16.mxu0 0
      %1735 = vmatpush1.bf16.msra.mxu0 %v1718
      %1736 = vmatprep.subr.bf16.mxu0 0
      %1737 = vmatpush2.bf16.msra.mxu0 0
      %1738 = vmatprep.subr.bf16.mxu0 0
      %1739 = vmatpush2.bf16.msra.mxu0 0
      %1740 = vmatprep.subr.bf16.mxu0 0
      %1741 = vmatpush2.bf16.msra.mxu0 0
      %1742 = vmatprep.subr.bf16.mxu0 0
      %1743 = vmatpush2.bf16.msra.mxu0 0
      %1744 = vmatprep.subr.bf16.mxu0 0
      %1745 = vmatpush2.bf16.msra.mxu0 0
      %1746 = vmatprep.subr.bf16.mxu0 0
      %1747 = vmatpush2.bf16.msra.mxu0 0
      %1748 = vmatprep.subr.bf16.mxu0 0
      %1749 = vmatpush2.bf16.msra.mxu0 0
      %1750 = vmatprep.subr.bf16.mxu0 0
      %1751 = vmatpush2.bf16.msra.mxu0 0
      %1752 = vmatprep.mubr.bf16.mxu0 0
      %1753 = vmatmul.mubr.bf16.gmra.mxu0 %v1715
      %v1754 = vpop.f32.mrf.mxu0
      %v1755 = vadd.f32 0.0, %v1754
      %v1756 = vpop.f32.mrf.mxu0
      %v1757 = vpop.f32.mrf.mxu0
      %v1758 = vpop.f32.mrf.mxu0
      %1759 = vdwg.mxu0
      %v1761 = vsel %vm308, %v1248, 0
      %v1764 = vsel %vm1256, %v303, 0
      %1766 = vmatprep.subr.bf16.mxu0 0
      %1767 = vmatpush1.bf16.msra.mxu0 0
      %1768 = vmatprep.subr.bf16.mxu0 0
      %1769 = vmatpush1.bf16.msra.mxu0 0
      %1770 = vmatprep.subr.bf16.mxu0 0
      %1771 = vmatpush1.bf16.msra.mxu0 0
      %1772 = vmatprep.subr.bf16.mxu0 0
      %1773 = vmatpush1.bf16.msra.mxu0 0
      %1774 = vmatprep.subr.bf16.mxu0 0
      %1775 = vmatpush1.bf16.msra.mxu0 0
      %1776 = vmatprep.subr.bf16.mxu0 0
      %1777 = vmatpush1.bf16.msra.mxu0 0
      %1778 = vmatprep.subr.bf16.mxu0 0
      %1779 = vmatpush1.bf16.msra.mxu0 0
      %1780 = vmatprep.subr.bf16.mxu0 0
      %1781 = vmatpush1.bf16.msra.mxu0 %v1764
      %1782 = vmatprep.subr.bf16.mxu0 0
      %1783 = vmatpush2.bf16.msra.mxu0 0
      %1784 = vmatprep.subr.bf16.mxu0 0
      %1785 = vmatpush2.bf16.msra.mxu0 0
      %1786 = vmatprep.subr.bf16.mxu0 0
      %1787 = vmatpush2.bf16.msra.mxu0 0
      %1788 = vmatprep.subr.bf16.mxu0 0
      %1789 = vmatpush2.bf16.msra.mxu0 0
      %1790 = vmatprep.subr.bf16.mxu0 0
      %1791 = vmatpush2.bf16.msra.mxu0 0
      %1792 = vmatprep.subr.bf16.mxu0 0
      %1793 = vmatpush2.bf16.msra.mxu0 0
      %1794 = vmatprep.subr.bf16.mxu0 0
      %1795 = vmatpush2.bf16.msra.mxu0 0
      %1796 = vmatprep.subr.bf16.mxu0 0
      %1797 = vmatpush2.bf16.msra.mxu0 0
      %1798 = vmatprep.mubr.bf16.mxu0 0
      %1799 = vmatmul.mubr.bf16.gmra.mxu0 %v1761
      %v1800 = vpop.f32.mrf.mxu0
      %v1801 = vadd.f32 0.0, %v1800
      %v1802 = vpop.f32.mrf.mxu0
      %v1803 = vpop.f32.mrf.mxu0
      %v1804 = vpop.f32.mrf.mxu0
      %1805 = vdwg.mxu0
      %v1807 = vsel %vm308, %v1249, 0
      %v1810 = vsel %vm1256, %v304, 0
      %1812 = vmatprep.subr.bf16.mxu0 0
      %1813 = vmatpush1.bf16.msra.mxu0 0
      %1814 = vmatprep.subr.bf16.mxu0 0
      %1815 = vmatpush1.bf16.msra.mxu0 0
      %1816 = vmatprep.subr.bf16.mxu0 0
      %1817 = vmatpush1.bf16.msra.mxu0 0
      %1818 = vmatprep.subr.bf16.mxu0 0
      %1819 = vmatpush1.bf16.msra.mxu0 0
      %1820 = vmatprep.subr.bf16.mxu0 0
      %1821 = vmatpush1.bf16.msra.mxu0 0
      %1822 = vmatprep.subr.bf16.mxu0 0
      %1823 = vmatpush1.bf16.msra.mxu0 0
      %1824 = vmatprep.subr.bf16.mxu0 0
      %1825 = vmatpush1.bf16.msra.mxu0 0
      %1826 = vmatprep.subr.bf16.mxu0 0
      %1827 = vmatpush1.bf16.msra.mxu0 %v1810
      %1828 = vmatprep.subr.bf16.mxu0 0
      %1829 = vmatpush2.bf16.msra.mxu0 0
      %1830 = vmatprep.subr.bf16.mxu0 0
      %1831 = vmatpush2.bf16.msra.mxu0 0
      %1832 = vmatprep.subr.bf16.mxu0 0
      %1833 = vmatpush2.bf16.msra.mxu0 0
      %1834 = vmatprep.subr.bf16.mxu0 0
      %1835 = vmatpush2.bf16.msra.mxu0 0
      %1836 = vmatprep.subr.bf16.mxu0 0
      %1837 = vmatpush2.bf16.msra.mxu0 0
      %1838 = vmatprep.subr.bf16.mxu0 0
      %1839 = vmatpush2.bf16.msra.mxu0 0
      %1840 = vmatprep.subr.bf16.mxu0 0
      %1841 = vmatpush2.bf16.msra.mxu0 0
      %1842 = vmatprep.subr.bf16.mxu0 0
      %1843 = vmatpush2.bf16.msra.mxu0 0
      %1844 = vmatprep.mubr.bf16.mxu0 0
      %1845 = vmatmul.mubr.bf16.gmra.mxu0 %v1807
      %v1846 = vpop.f32.mrf.mxu0
      %v1847 = vadd.f32 0.0, %v1846
      %v1848 = vpop.f32.mrf.mxu0
      %v1849 = vpop.f32.mrf.mxu0
      %v1850 = vpop.f32.mrf.mxu0
      %1851 = vdwg.mxu0
      %v1853 = vsel %vm308, %v1250, 0
      %v1856 = vsel %vm1256, %v305, 0
      %1858 = vmatprep.subr.bf16.mxu0 0
      %1859 = vmatpush1.bf16.msra.mxu0 0
      %1860 = vmatprep.subr.bf16.mxu0 0
      %1861 = vmatpush1.bf16.msra.mxu0 0
      %1862 = vmatprep.subr.bf16.mxu0 0
      %1863 = vmatpush1.bf16.msra.mxu0 0
      %1864 = vmatprep.subr.bf16.mxu0 0
      %1865 = vmatpush1.bf16.msra.mxu0 0
      %1866 = vmatprep.subr.bf16.mxu0 0
      %1867 = vmatpush1.bf16.msra.mxu0 0
      %1868 = vmatprep.subr.bf16.mxu0 0
      %1869 = vmatpush1.bf16.msra.mxu0 0
      %1870 = vmatprep.subr.bf16.mxu0 0
      %1871 = vmatpush1.bf16.msra.mxu0 0
      %1872 = vmatprep.subr.bf16.mxu0 0
      %1873 = vmatpush1.bf16.msra.mxu0 %v1856
      %1874 = vmatprep.subr.bf16.mxu0 0
      %1875 = vmatpush2.bf16.msra.mxu0 0
      %1876 = vmatprep.subr.bf16.mxu0 0
      %1877 = vmatpush2.bf16.msra.mxu0 0
      %1878 = vmatprep.subr.bf16.mxu0 0
      %1879 = vmatpush2.bf16.msra.mxu0 0
      %1880 = vmatprep.subr.bf16.mxu0 0
      %1881 = vmatpush2.bf16.msra.mxu0 0
      %1882 = vmatprep.subr.bf16.mxu0 0
      %1883 = vmatpush2.bf16.msra.mxu0 0
      %1884 = vmatprep.subr.bf16.mxu0 0
      %1885 = vmatpush2.bf16.msra.mxu0 0
      %1886 = vmatprep.subr.bf16.mxu0 0
      %1887 = vmatpush2.bf16.msra.mxu0 0
      %1888 = vmatprep.subr.bf16.mxu0 0
      %1889 = vmatpush2.bf16.msra.mxu0 0
      %1890 = vmatprep.mubr.bf16.mxu0 0
      %1891 = vmatmul.mubr.bf16.gmra.mxu0 %v1853
      %v1892 = vpop.f32.mrf.mxu0
      %v1893 = vadd.f32 0.0, %v1892
      %v1894 = vpop.f32.mrf.mxu0
      %v1895 = vpop.f32.mrf.mxu0
      %v1896 = vpop.f32.mrf.mxu0
      %1897 = vdwg.mxu0
      %v1899 = vsel %vm308, %v1251, 0
      %v1902 = vsel %vm1256, %v306, 0
      %1904 = vmatprep.subr.bf16.mxu0 0
      %1905 = vmatpush1.bf16.msra.mxu0 0
      %1906 = vmatprep.subr.bf16.mxu0 0
      %1907 = vmatpush1.bf16.msra.mxu0 0
      %1908 = vmatprep.subr.bf16.mxu0 0
      %1909 = vmatpush1.bf16.msra.mxu0 0
      %1910 = vmatprep.subr.bf16.mxu0 0
      %1911 = vmatpush1.bf16.msra.mxu0 0
      %1912 = vmatprep.subr.bf16.mxu0 0
      %1913 = vmatpush1.bf16.msra.mxu0 0
      %1914 = vmatprep.subr.bf16.mxu0 0
      %1915 = vmatpush1.bf16.msra.mxu0 0
      %1916 = vmatprep.subr.bf16.mxu0 0
      %1917 = vmatpush1.bf16.msra.mxu0 0
      %1918 = vmatprep.subr.bf16.mxu0 0
      %1919 = vmatpush1.bf16.msra.mxu0 %v1902
      %1920 = vmatprep.subr.bf16.mxu0 0
      %1921 = vmatpush2.bf16.msra.mxu0 0
      %1922 = vmatprep.subr.bf16.mxu0 0
      %1923 = vmatpush2.bf16.msra.mxu0 0
      %1924 = vmatprep.subr.bf16.mxu0 0
      %1925 = vmatpush2.bf16.msra.mxu0 0
      %1926 = vmatprep.subr.bf16.mxu0 0
      %1927 = vmatpush2.bf16.msra.mxu0 0
      %1928 = vmatprep.subr.bf16.mxu0 0
      %1929 = vmatpush2.bf16.msra.mxu0 0
      %1930 = vmatprep.subr.bf16.mxu0 0
      %1931 = vmatpush2.bf16.msra.mxu0 0
      %1932 = vmatprep.subr.bf16.mxu0 0
      %1933 = vmatpush2.bf16.msra.mxu0 0
      %1934 = vmatprep.subr.bf16.mxu0 0
      %1935 = vmatpush2.bf16.msra.mxu0 0
      %1936 = vmatprep.mubr.bf16.mxu0 0
      %1937 = vmatmul.mubr.bf16.gmra.mxu0 %v1899
      %v1938 = vpop.f32.mrf.mxu0
      %v1939 = vadd.f32 0.0, %v1938
      %v1940 = vpop.f32.mrf.mxu0
      %v1941 = vpop.f32.mrf.mxu0
      %v1942 = vpop.f32.mrf.mxu0
      %1943 = vdwg.mxu0
      %v1945 = vsel %vm308, %v1252, 0
      %v1948 = vsel %vm1256, %v307, 0
      %1950 = vmatprep.subr.bf16.mxu0 0
      %1951 = vmatpush1.bf16.msra.mxu0 0
      %1952 = vmatprep.subr.bf16.mxu0 0
      %1953 = vmatpush1.bf16.msra.mxu0 0
      %1954 = vmatprep.subr.bf16.mxu0 0
      %1955 = vmatpush1.bf16.msra.mxu0 0
      %1956 = vmatprep.subr.bf16.mxu0 0
      %1957 = vmatpush1.bf16.msra.mxu0 0
      %1958 = vmatprep.subr.bf16.mxu0 0
      %1959 = vmatpush1.bf16.msra.mxu0 0
      %1960 = vmatprep.subr.bf16.mxu0 0
      %1961 = vmatpush1.bf16.msra.mxu0 0
      %1962 = vmatprep.subr.bf16.mxu0 0
      %1963 = vmatpush1.bf16.msra.mxu0 0
      %1964 = vmatprep.subr.bf16.mxu0 0
      %1965 = vmatpush1.bf16.msra.mxu0 %v1948
      %1966 = vmatprep.subr.bf16.mxu0 0
      %1967 = vmatpush2.bf16.msra.mxu0 0
      %1968 = vmatprep.subr.bf16.mxu0 0
      %1969 = vmatpush2.bf16.msra.mxu0 0
      %1970 = vmatprep.subr.bf16.mxu0 0
      %1971 = vmatpush2.bf16.msra.mxu0 0
      %1972 = vmatprep.subr.bf16.mxu0 0
      %1973 = vmatpush2.bf16.msra.mxu0 0
      %1974 = vmatprep.subr.bf16.mxu0 0
      %1975 = vmatpush2.bf16.msra.mxu0 0
      %1976 = vmatprep.subr.bf16.mxu0 0
      %1977 = vmatpush2.bf16.msra.mxu0 0
      %1978 = vmatprep.subr.bf16.mxu0 0
      %1979 = vmatpush2.bf16.msra.mxu0 0
      %1980 = vmatprep.subr.bf16.mxu0 0
      %1981 = vmatpush2.bf16.msra.mxu0 0
      %1982 = vmatprep.mubr.bf16.mxu0 0
      %1983 = vmatmul.mubr.bf16.gmra.mxu0 %v1945
      %v1984 = vpop.f32.mrf.mxu0
      %v1985 = vadd.f32 0.0, %v1984
      %v1986 = vpop.f32.mrf.mxu0
      %v1987 = vpop.f32.mrf.mxu0
      %v1988 = vpop.f32.mrf.mxu0
      %1989 = vdwg.mxu0
      %1990 = vst.msk [vmem:[%s210] sm:$0xff] %vm308, %v1295
      %1991 = vst.msk [vmem:[%s210 + $0x8] sm:$0xff] %vm308, %v1341
      %1992 = vst.msk [vmem:[%s210 + $0x10] sm:$0xff] %vm308, %v1387
      %1993 = vst.msk [vmem:[%s210 + $0x18] sm:$0xff] %vm308, %v1433
      %1994 = vst.msk [vmem:[%s210 + $0x20] sm:$0xff] %vm308, %v1479
      %1995 = vst.msk [vmem:[%s210 + $0x28] sm:$0xff] %vm308, %v1525
      %1996 = vst.msk [vmem:[%s210 + $0x30] sm:$0xff] %vm308, %v1571
      %1997 = vst.msk [vmem:[%s210 + $0x38] sm:$0xff] %vm308, %v1617
      %1998 = vst.msk [vmem:[%s210 + $0x40] sm:$0xff] %vm308, %v1663
      %1999 = vst.msk [vmem:[%s210 + $0x48] sm:$0xff] %vm308, %v1709
      %2000 = vst.msk [vmem:[%s210 + $0x50] sm:$0xff] %vm308, %v1755
      %2001 = vst.msk [vmem:[%s210 + $0x58] sm:$0xff] %vm308, %v1801
      %2002 = vst.msk [vmem:[%s210 + $0x60] sm:$0xff] %vm308, %v1847
      %2003 = vst.msk [vmem:[%s210 + $0x68] sm:$0xff] %vm308, %v1893
      %2004 = vst.msk [vmem:[%s210 + $0x70] sm:$0xff] %vm308, %v1939
      %2005 = vst.msk [vmem:[%s210 + $0x78] sm:$0xff] %vm308, %v1985
      %p2006 = scmp.lt.s32.totalorder %s14, 1
      %s2007 = scalar_select %p2006, %s14, 1
      %s2008 = smul.addr %s2007, 16
      %s2009 = smul.addr %s2008, 8
      %s2010 = scalar_lea.vmem %s3, %s2009
      // Predicated region
      $region33: #{encoder_forward.4} parent=31 // pred_check
        %p2011 = pneg %p110
      $region34: #{encoder_forward.4} parent=31 // pred_check_branch
        %2013 = sbr.rel (%p2011) target = $region36
      $region35: #{encoder_forward.4} parent=31 // pred_region
        _
      $region36: #{encoder_forward.4} parent=31 // pred_fallthru
        _
    $region32: #{encoder_forward.4} parent=5 // pred_fallthru
      _
    %p2014 = scmp.le.s32.totalorder 2, %s9
    // Predicated region
    $region37: #{encoder_forward.4} parent=5 // pred_check
      %p2015 = pneg %p2014
    $region38: #{encoder_forward.4} parent=5 // pred_check_branch
      %2017 = sbr.rel (%p2015) target = $region40
    $region39: #{encoder_forward.4} parent=5 // pred_region
      %s2018 = ssub.s32 %s9, 2
      // Predicated region
      $region41: #{encoder_forward.4} parent=39 // pred_check
        %p2019 = pneg %p116
      $region42: #{encoder_forward.4} parent=39 // pred_check_branch
        %2021 = sbr.rel (%p2019) target = $region44
      $region43: #{encoder_forward.4} parent=39 // pred_region
        %p2022 = scmp.lt.s32.totalorder %s15, 1
        %s2023 = scalar_select %p2022, %s15, 1
        %s2024 = smul.addr %s2023, 16
        %s2025 = smul.addr %s2024, 8
        %s2026 = scalar_lea.vmem %s3, %s2025
      $region44: #{encoder_forward.4} parent=39 // pred_fallthru
        _
    $region40: #{encoder_forward.4} parent=5 // pred_fallthru
      _
  $region6: #{encoder_forward.4} parent=0 // loop_footer
    %s13 = sadd.s32 1, %s9
  $region7: #{encoder_forward.4} parent=0 // loop_footer_branch
    %8 = sbr.rel target = $region3
  $region8: #{encoder_forward.4} parent=0 // loop_exit
    _

</llo_original>
